<compile_context>
chip_gen: v7x
topology: tpu7x:2x2x1
jax: 0.10.0
libtpu: 0.0.40
codegen_flags: <defaults>
</compile_context>

<pallas_src>
import jax
import jax.numpy as jnp
import numpy as np
from jax.experimental import pallas as pl
from jax.experimental.pallas import tpu as pltpu

_LANE = 128       # lane width: pad channel dims to a multiple of this
_HALO_OFF = 8     # sublane-aligned column offset of the 3x3 halo interior


def _pad_to(n, m):
    return ((n + m - 1) // m) * m


# ----------------------------- Pallas kernel ------------------------------

def _bottleneck_kernel(x_ref, w1_ref, s1_ref, b1_ref,
                       w2_ref, s2_ref, b2_ref,
                       w3_ref, s3_ref, b3_ref,
                       o_ref, o1h_ref):
    # x_ref : (Bblk, H, W, Cin_p)
    # w1    : (Cin_p, P_p)   w2: (9*P_p, P_p)   w3: (P_p, Cout_p)
    # s*/b* : (1, C_p) f32   o_ref: (Bblk, H, W, Cout_p)
    # o1h   : compute-dtype (Bblk, H+2, Whalo, P_p) halo scratch; the conv2
    #         interior lives at rows [1:H+1], cols [_HALO_OFF:_HALO_OFF+W]
    #         (sublane-aligned column offset -> unmasked interior store).
    b, h, w, cin_p = x_ref.shape
    p_p = w1_ref.shape[1]
    cout_p = w3_ref.shape[1]
    m = b * h * w
    off = _HALO_OFF
    whalo = o1h_ref.shape[2]
    hdt = o1h_ref.dtype

    x2d = x_ref[...].reshape(m, cin_p)

    # ---- conv1 (1x1) + bn1 + relu  (f32 accumulation, f32 bn math) --------
    a1 = jnp.dot(x2d, w1_ref[...], preferred_element_type=jnp.float32)
    o1 = jnp.maximum(a1 * s1_ref[...] + b1_ref[...], 0.0)

    # ---- conv2 (3x3, pad=1, stride=1): in-VMEM im2col -> ONE big-K matmul -
    # interior written once, in the compute dtype (single cast of o1)
    o1h_ref[:, 1:h + 1, off:off + w, :] = (
        o1.astype(hdt).reshape(b, h, w, p_p))
    # zero only the 1-pixel halo border; interior is fully rewritten each
    # step.  Not gated on program_id==0: scratch is per-core under "parallel".
    zrow = jnp.zeros((b, 1, whalo, p_p), hdt)
    o1h_ref[:, 0:1, :, :] = zrow
    o1h_ref[:, h + 1:h + 2, :, :] = zrow
    zcol = jnp.zeros((b, h, 1, p_p), hdt)
    o1h_ref[:, 1:h + 1, off - 1:off, :] = zcol
    o1h_ref[:, 1:h + 1, off + w:off + w + 1, :] = zcol

    # gather the 9 taps and fuse them on the lane axis: a single
    # (M, 9*P_p) x (9*P_p, P_p) matmul (K fills the MXU on v6e/v7x) instead
    # of 9 accumulated K=P_p dots + accumulator RMW traffic.
    taps = []
    for dh in range(3):
        for dw in range(3):
            taps.append(
                o1h_ref[:, dh:dh + h, off - 1 + dw:off - 1 + dw + w, :]
                .reshape(m, p_p))
    col = jnp.concatenate(taps, axis=-1)                        # (M, 9*P_p)
    a2 = jnp.dot(col, w2_ref[...], preferred_element_type=jnp.float32)
    o2 = jnp.maximum(a2 * s2_ref[...] + b2_ref[...], 0.0)

    # ---- conv3 (1x1) + bn3 + identity residual + relu ----------------------
    a3 = jnp.dot(o2.astype(w3_ref.dtype), w3_ref[...],
                 preferred_element_type=jnp.float32)
    out = a3 * s3_ref[...] + b3_ref[...] + x2d.astype(jnp.float32)
    out = jnp.maximum(out, 0.0)
    o_ref[...] = out.reshape(b, h, w, cout_p).astype(o_ref.dtype)


# ------------------------------ JAX wrappers --------------------------------

def _nm_prune(w_oihw, n_keep=2, m_group=4):
    """N:M structured sparsity: keep the N largest-|w| in every group of M
    consecutive input channels.  (Tie-breaking may differ from torch.topk.)"""
    o, c, kh, kw = w_oihw.shape
    assert c % m_group == 0
    wp = jnp.transpose(w_oihw, (0, 2, 3, 1)).reshape(-1, m_group)
    order = jnp.argsort(jnp.abs(wp), axis=1)
    ranks = jnp.argsort(order, axis=1)
    mask = (ranks >= (m_group - n_keep)).astype(w_oihw.dtype)
    wm = (wp * mask).reshape(o, kh, kw, c)
    return jnp.transpose(wm, (0, 3, 1, 2))


def init_params(key, inplanes, planes, n_sparse=2, m_sparse=4, eps=1e-5):
    ks = jax.random.split(key, 15)

    def conv_w(k, cout, cin, ksz):
        fan_in = cin * ksz * ksz
        w = jax.random.normal(k, (cout, cin, ksz, ksz), jnp.float32)
        w = w * (2.0 / fan_in) ** 0.5
        return _nm_prune(w, n_sparse, m_sparse)

    def bn_fold(kg, kb, km, kv, c):
        gamma = 1.0 + 0.1 * jax.random.normal(kg, (c,), jnp.float32)
        beta = 0.1 * jax.random.normal(kb, (c,), jnp.float32)
        rmean = 0.1 * jax.random.normal(km, (c,), jnp.float32)
        rvar = 1.0 + 0.1 * jnp.abs(jax.random.normal(kv, (c,), jnp.float32))
        scale = gamma / jnp.sqrt(rvar + eps)
        bias = beta - rmean * scale
        return scale.reshape(1, c), bias.reshape(1, c)

    p = {}
    p['w1'] = conv_w(ks[0], planes, inplanes, 1)
    p['w2'] = conv_w(ks[1], planes, planes, 3)
    p['w3'] = conv_w(ks[2], planes * 4, planes, 1)
    p['s1'], p['b1'] = bn_fold(ks[3], ks[4], ks[5], ks[6], planes)
    p['s2'], p['b2'] = bn_fold(ks[7], ks[8], ks[9], ks[10], planes)
    p['s3'], p['b3'] = bn_fold(ks[11], ks[12], ks[13], ks[14], planes * 4)
    return p


def prepare_kernel_params(params, compute_dtype=jnp.bfloat16):
    """Hoist per-forward weight packing out of the forward pass: weights in
    matmul-ready layouts (conv2 pre-flattened to (9*P_p, P_p) for the im2col
    matmul), channel dims zero-padded to the lane width, cast once to the MXU
    compute dtype.  Folded-BN scale/bias stay f32 (zero-padded so padded
    channels are exactly zero through every stage)."""
    w1 = params['w1'][:, :, 0, 0].T                       # (Cin, P)
    w3 = params['w3'][:, :, 0, 0].T                       # (P, 4P)
    w2 = jnp.transpose(params['w2'], (2, 3, 1, 0))        # (3, 3, P, P) HWIO

    cin, p = w1.shape
    cout = w3.shape[1]
    assert cin == cout, "identity residual requires inplanes == planes * 4"
    cin_p = _pad_to(cin, _LANE)
    p_p = _pad_to(p, _LANE)
    cout_p = _pad_to(cout, _LANE)

    def pad2(a, r, c):
        return jnp.pad(a, ((0, r - a.shape[0]), (0, c - a.shape[1])))

    w2p = jnp.pad(w2, ((0, 0), (0, 0), (0, p_p - p), (0, p_p - p)))
    kp = {
        'w1': pad2(w1, cin_p, p_p).astype(compute_dtype),
        'w2': w2p.reshape(9 * p_p, p_p).astype(compute_dtype),   # (9*P_p, P_p)
        'w3': pad2(w3, p_p, cout_p).astype(compute_dtype),
        's1': pad2(params['s1'], 1, p_p).astype(jnp.float32),
        'b1': pad2(params['b1'], 1, p_p).astype(jnp.float32),
        's2': pad2(params['s2'], 1, p_p).astype(jnp.float32),
        'b2': pad2(params['b2'], 1, p_p).astype(jnp.float32),
        's3': pad2(params['s3'], 1, cout_p).astype(jnp.float32),
        'b3': pad2(params['b3'], 1, cout_p).astype(jnp.float32),
        'dims': (cin, p, cout, cin_p, p_p, cout_p),
        'compute_dtype': compute_dtype,
    }
    return kp


def _pick_batch_block(n, max_blk=8):
    """Largest divisor of n that is <= max_blk while keeping at least two grid
    steps (so both v7x TensorCores get work under "parallel" semantics)."""
    if n <= 1:
        return 1
    best = 1
    for cand in range(1, min(max_blk, n // 2) + 1):
        if n % cand == 0:
            best = cand
    return best


def bottleneck_forward(x_nchw, kparams, stride=1, max_batch_block=8):
    """Fused Bottleneck forward (identity residual, i.e. downsample=None)."""
    if stride != 1:
        raise NotImplementedError(
            "stride != 1 requires the downsample branch (not modeled)")
    cin, p, cout, cin_p, p_p, cout_p = kparams['dims']
    dt = kparams['compute_dtype']

    n, c, h, w = x_nchw.shape
    assert c == cin, "input channel count must match conv1 in-channels"
    assert w % 8 == 0, "W must be a multiple of 8 (sublane) for cheap reshapes"

    b_blk = _pick_batch_block(n, max_batch_block)
    grid = (n // b_blk,)
    w_halo = _pad_to(_HALO_OFF + w + 1, 8)   # interior sublane-aligned @ col 8

    # NCHW -> NHWC, lane-pad channels.  (bf16 residual: x is cast here; keep
    # an f32 x copy for the residual add if tighter accuracy is ever needed.)
    x = jnp.transpose(x_nchw, (0, 2, 3, 1)).astype(dt)
    x = jnp.pad(x, ((0, 0), (0, 0), (0, 0), (0, cin_p - cin)))

    itemsize = jnp.dtype(dt).itemsize
    wbytes = sum(int(kparams[k].size) * kparams[k].dtype.itemsize
                 for k in ('w1', 'w2', 'w3', 's1', 'b1', 's2', 'b2', 's3', 'b3'))
    flops = 2 * n * h * w * (cin_p * p_p + 9 * p_p * p_p + p_p * cout_p)
    bytes_accessed = (int(x.size) * itemsize
                      + n * h * w * cout_p * itemsize + wbytes)

    # VMEM: double-buffered x/out blocks + (double-buffered) resident weights
    # + halo scratch + im2col temporary + f32 value temps.  Cap below the
    # v7x 64 MiB physical VMEM.
    est = (2 * b_blk * h * w * (cin_p + cout_p) * itemsize
           + 2 * wbytes
           + b_blk * (h + 2) * w_halo * p_p * itemsize
           + b_blk * h * w * 9 * p_p * itemsize
           + 6 * b_blk * h * w * max(p_p, cout_p) * 4)
    vmem_limit = int(min(48 * 2**20, max(32 * 2**20, 2 * est)))

    out = pl.pallas_call(
        _bottleneck_kernel,
        out_shape=jax.ShapeDtypeStruct((n, h, w, cout_p), dt),
        grid_spec=pltpu.PrefetchScalarGridSpec(
            num_scalar_prefetch=0,
            grid=grid,
            in_specs=[
                pl.BlockSpec((b_blk, h, w, cin_p), lambda i: (i, 0, 0, 0)),
                pl.BlockSpec((cin_p, p_p), lambda i: (0, 0)),
                pl.BlockSpec((1, p_p), lambda i: (0, 0)),
                pl.BlockSpec((1, p_p), lambda i: (0, 0)),
                pl.BlockSpec((9 * p_p, p_p), lambda i: (0, 0)),
                pl.BlockSpec((1, p_p), lambda i: (0, 0)),
                pl.BlockSpec((1, p_p), lambda i: (0, 0)),
                pl.BlockSpec((p_p, cout_p), lambda i: (0, 0)),
                pl.BlockSpec((1, cout_p), lambda i: (0, 0)),
                pl.BlockSpec((1, cout_p), lambda i: (0, 0)),
            ],
            out_specs=pl.BlockSpec((b_blk, h, w, cout_p),
                                   lambda i: (i, 0, 0, 0)),
            scratch_shapes=[
                # compute-dtype halo scratch (interior at col offset 8)
                pltpu.VMEM((b_blk, h + 2, w_halo, p_p), dt),
            ]),
        compiler_params=pltpu.CompilerParams(
            dimension_semantics=("parallel",),
            vmem_limit_bytes=vmem_limit),
        cost_estimate=pl.CostEstimate(flops=flops, transcendentals=0,
                                      bytes_accessed=bytes_accessed),
    )(x, kparams['w1'], kparams['s1'], kparams['b1'],
      kparams['w2'], kparams['s2'], kparams['b2'],
      kparams['w3'], kparams['s3'], kparams['b3'])

    out = out[..., :cout]                                   # drop lane padding
    return jnp.transpose(out, (0, 3, 1, 2))                 # NHWC -> NCHW


# --------------------------- plain-JAX reference ----------------------------

def _conv_ref(x_nhwc, w_oihw, stride, pad):
    w_hwio = jnp.transpose(w_oihw, (2, 3, 1, 0))
    return jax.lax.conv_general_dilated(
        x_nhwc, w_hwio, (stride, stride), ((pad, pad), (pad, pad)),
        dimension_numbers=('NHWC', 'HWIO', 'NHWC'))


def bottleneck_reference(x_nchw, params, stride=1):
    x = jnp.transpose(x_nchw, (0, 2, 3, 1))
    o = _conv_ref(x, params['w1'], 1, 0)
    o = jnp.maximum(o * params['s1'][0] + params['b1'][0], 0.0)
    o = _conv_ref(o, params['w2'], stride, 1)
    o = jnp.maximum(o * params['s2'][0] + params['b2'][0], 0.0)
    o = _conv_ref(o, params['w3'], 1, 0)
    o = o * params['s3'][0] + params['b3'][0]
    o = jnp.maximum(o + x, 0.0)
    return jnp.transpose(o, (0, 3, 1, 2))


# --------------------------------- main --------------------------------------

if __name__ == "__main__":
    key = jax.random.PRNGKey(0)
    k_x, k_p, k_x8 = jax.random.split(key, 3)

    batch, planes, spatial, stride = 2, 4, 16, 1
    inplanes = planes * 4                                   # identity residual

    x = jax.random.normal(k_x, (batch, inplanes, spatial, spatial), jnp.float32)
    params = init_params(k_p, inplanes, planes)
    ref = jax.block_until_ready(bottleneck_reference(x, params, stride=stride))

    # f32 compute path: checks layout / halo im2col / weight packing exactly.
    kp_f32 = prepare_kernel_params(params, compute_dtype=jnp.float32)
    out_f32 = jax.block_until_ready(bottleneck_forward(x, kp_f32, stride=stride))
    np.testing.assert_allclose(np.asarray(out_f32, np.float32), np.asarray(ref),
                               rtol=1e-2, atol=1e-2)

    # bf16 compute path (default perf config for v6e/v7x MXU); tolerance is
    # precision-limited (bf16 inputs, f32 accumulation) vs the f32 reference.
    kp_bf16 = prepare_kernel_params(params, compute_dtype=jnp.bfloat16)
    out_bf16 = jax.block_until_ready(bottleneck_forward(x, kp_bf16, stride=stride))
    np.testing.assert_allclose(np.asarray(out_bf16, np.float32), np.asarray(ref),
                               rtol=1e-1, atol=1e-1)

    # larger batch to exercise the multi-image batch-block path (b_blk > 1,
    # grid kept >= 2 for the two v7x TensorCores).
    x8 = jax.random.normal(k_x8, (8, inplanes, spatial, spatial), jnp.float32)
    ref8 = jax.block_until_ready(bottleneck_reference(x8, params, stride=stride))
    out8 = jax.block_until_ready(bottleneck_forward(x8, kp_bf16, stride=stride))
    np.testing.assert_allclose(np.asarray(out8, np.float32), np.asarray(ref8),
                               rtol=1e-1, atol=1e-1)

    print("KERNEL_OK")
</pallas_src>

<mosaic_0001>
module attributes {stable_mosaic.version = 11 : i64} {
  func.func @_bottleneck_kernel(%arg0: i32, %arg1: memref<1x16x16x128xf32, #tpu.memory_space<vmem>>, %arg2: memref<128x128xf32, #tpu.memory_space<vmem>>, %arg3: memref<1x128xf32, #tpu.memory_space<vmem>>, %arg4: memref<1x128xf32, #tpu.memory_space<vmem>>, %arg5: memref<1152x128xf32, #tpu.memory_space<vmem>>, %arg6: memref<1x128xf32, #tpu.memory_space<vmem>>, %arg7: memref<1x128xf32, #tpu.memory_space<vmem>>, %arg8: memref<128x128xf32, #tpu.memory_space<vmem>>, %arg9: memref<1x128xf32, #tpu.memory_space<vmem>>, %arg10: memref<1x128xf32, #tpu.memory_space<vmem>>, %arg11: memref<1x16x16x128xf32, #tpu.memory_space<vmem>>, %arg12: memref<1x18x32x128xf32, #tpu.memory_space<vmem>>) attributes {dimension_semantics = [#tpu.dimension_semantics<parallel>], iteration_bounds = array<i64: 2>, scalar_prefetch = 0 : i64, scratch_operands = 1 : i64, tpu.core_type = #tpu.core_type<tc>, window_params = [{transform_indices = @transform_0, window_bounds = array<i64: 1, 16, 16, 128>}, {pipeline_mode = #tpu.pipeline_mode<synchronous>, transform_indices = @transform_1, window_bounds = array<i64: 128, 128>}, {pipeline_mode = #tpu.pipeline_mode<synchronous>, transform_indices = @transform_2, window_bounds = array<i64: 1, 128>}, {pipeline_mode = #tpu.pipeline_mode<synchronous>, transform_indices = @transform_3, window_bounds = array<i64: 1, 128>}, {pipeline_mode = #tpu.pipeline_mode<synchronous>, transform_indices = @transform_4, window_bounds = array<i64: 1152, 128>}, {pipeline_mode = #tpu.pipeline_mode<synchronous>, transform_indices = @transform_5, window_bounds = array<i64: 1, 128>}, {pipeline_mode = #tpu.pipeline_mode<synchronous>, transform_indices = @transform_6, window_bounds = array<i64: 1, 128>}, {pipeline_mode = #tpu.pipeline_mode<synchronous>, transform_indices = @transform_7, window_bounds = array<i64: 128, 128>}, {pipeline_mode = #tpu.pipeline_mode<synchronous>, transform_indices = @transform_8, window_bounds = array<i64: 1, 128>}, {pipeline_mode = #tpu.pipeline_mode<synchronous>, transform_indices = @transform_9, window_bounds = array<i64: 1, 128>}, {transform_indices = @transform_10, window_bounds = array<i64: 1, 16, 16, 128>}]} {
    %c0 = arith.constant 0 : index
    %c0_0 = arith.constant 0 : index
    %c0_1 = arith.constant 0 : index
    %c0_2 = arith.constant 0 : index
    %0 = vector.load %arg1[%c0, %c0_0, %c0_1, %c0_2] : memref<1x16x16x128xf32, #tpu.memory_space<vmem>>, vector<1x16x16x128xf32>
    %1 = vector.shape_cast %0 : vector<1x16x16x128xf32> to vector<256x128xf32>
    %c0_3 = arith.constant 0 : index
    %c0_4 = arith.constant 0 : index
    %2 = vector.load %arg2[%c0_3, %c0_4] : memref<128x128xf32, #tpu.memory_space<vmem>>, vector<128x128xf32>
    %cst = arith.constant dense<0.000000e+00> : vector<256x128xf32>
    %3 = tpu.matmul %1, %2, %cst {dimension_numbers = #tpu.dot_dimension_numbers<[1], [0], [0], [1], [0, 0, 1, 1], [], []>} : vector<256x128xf32>, vector<128x128xf32>, vector<256x128xf32> -> vector<256x128xf32>
    %c0_5 = arith.constant 0 : index
    %c0_6 = arith.constant 0 : index
    %4 = vector.load %arg3[%c0_5, %c0_6] : memref<1x128xf32, #tpu.memory_space<vmem>>, vector<1x128xf32>
    %5 = vector.broadcast %4 : vector<1x128xf32> to vector<256x128xf32>
    %6 = arith.mulf %3, %5 : vector<256x128xf32>
    %c0_7 = arith.constant 0 : index
    %c0_8 = arith.constant 0 : index
    %7 = vector.load %arg4[%c0_7, %c0_8] : memref<1x128xf32, #tpu.memory_space<vmem>>, vector<1x128xf32>
    %8 = vector.broadcast %7 : vector<1x128xf32> to vector<256x128xf32>
    %9 = arith.addf %6, %8 : vector<256x128xf32>
    %cst_9 = arith.constant 0.000000e+00 : f32
    %10 = vector.broadcast %cst_9 : f32 to vector<256x128xf32>
    %11 = arith.maximumf %9, %10 : vector<256x128xf32>
    %12 = vector.shape_cast %11 : vector<256x128xf32> to vector<1x16x16x128xf32>
    %c0_10 = arith.constant 0 : index
    %c1 = arith.constant 1 : index
    %c8 = arith.constant 8 : index
    %c0_11 = arith.constant 0 : index
    %13 = vector.load %arg12[%c0_10, %c1, %c8, %c0_11] : memref<1x18x32x128xf32, #tpu.memory_space<vmem>>, vector<1x16x16x128xf32>
    tpu.vector_store %arg12[%c0_10, %c1, %c8, %c0_11], %12 {strides = array<i32>} : memref<1x18x32x128xf32, #tpu.memory_space<vmem>>, vector<1x16x16x128xf32>,
    %cst_12 = arith.constant 0.000000e+00 : f32
    %14 = vector.broadcast %cst_12 : f32 to vector<1x1x32x128xf32>
    %c0_13 = arith.constant 0 : index
    %c0_14 = arith.constant 0 : index
    %c0_15 = arith.constant 0 : index
    %c0_16 = arith.constant 0 : index
    %15 = vector.load %arg12[%c0_13, %c0_14, %c0_15, %c0_16] : memref<1x18x32x128xf32, #tpu.memory_space<vmem>>, vector<1x1x32x128xf32>
    tpu.vector_store %arg12[%c0_13, %c0_14, %c0_15, %c0_16], %14 {strides = array<i32>} : memref<1x18x32x128xf32, #tpu.memory_space<vmem>>, vector<1x1x32x128xf32>,
    %c0_17 = arith.constant 0 : index
    %c17 = arith.constant 17 : index
    %c0_18 = arith.constant 0 : index
    %c0_19 = arith.constant 0 : index
    %16 = vector.load %arg12[%c0_17, %c17, %c0_18, %c0_19] : memref<1x18x32x128xf32, #tpu.memory_space<vmem>>, vector<1x1x32x128xf32>
    tpu.vector_store %arg12[%c0_17, %c17, %c0_18, %c0_19], %14 {strides = array<i32>} : memref<1x18x32x128xf32, #tpu.memory_space<vmem>>, vector<1x1x32x128xf32>,
    %cst_20 = arith.constant 0.000000e+00 : f32
    %17 = vector.broadcast %cst_20 : f32 to vector<1x16x1x128xf32>
    %c0_21 = arith.constant 0 : index
    %c1_22 = arith.constant 1 : index
    %c7 = arith.constant 7 : index
    %c0_23 = arith.constant 0 : index
    %18 = vector.load %arg12[%c0_21, %c1_22, %c7, %c0_23] : memref<1x18x32x128xf32, #tpu.memory_space<vmem>>, vector<1x16x1x128xf32>
    tpu.vector_store %arg12[%c0_21, %c1_22, %c7, %c0_23], %17 {strides = array<i32>} : memref<1x18x32x128xf32, #tpu.memory_space<vmem>>, vector<1x16x1x128xf32>,
    %c0_24 = arith.constant 0 : index
    %c1_25 = arith.constant 1 : index
    %c24 = arith.constant 24 : index
    %c0_26 = arith.constant 0 : index
    %19 = vector.load %arg12[%c0_24, %c1_25, %c24, %c0_26] : memref<1x18x32x128xf32, #tpu.memory_space<vmem>>, vector<1x16x1x128xf32>
    tpu.vector_store %arg12[%c0_24, %c1_25, %c24, %c0_26], %17 {strides = array<i32>} : memref<1x18x32x128xf32, #tpu.memory_space<vmem>>, vector<1x16x1x128xf32>,
    %c0_27 = arith.constant 0 : index
    %c0_28 = arith.constant 0 : index
    %c7_29 = arith.constant 7 : index
    %c0_30 = arith.constant 0 : index
    %20 = vector.load %arg12[%c0_27, %c0_28, %c7_29, %c0_30] : memref<1x18x32x128xf32, #tpu.memory_space<vmem>>, vector<1x16x16x128xf32>
    %21 = vector.shape_cast %20 : vector<1x16x16x128xf32> to vector<256x128xf32>
    %c0_31 = arith.constant 0 : index
    %c0_32 = arith.constant 0 : index
    %c8_33 = arith.constant 8 : index
    %c0_34 = arith.constant 0 : index
    %22 = vector.load %arg12[%c0_31, %c0_32, %c8_33, %c0_34] : memref<1x18x32x128xf32, #tpu.memory_space<vmem>>, vector<1x16x16x128xf32>
    %23 = vector.shape_cast %22 : vector<1x16x16x128xf32> to vector<256x128xf32>
    %c0_35 = arith.constant 0 : index
    %c0_36 = arith.constant 0 : index
    %c9 = arith.constant 9 : index
    %c0_37 = arith.constant 0 : index
    %24 = vector.load %arg12[%c0_35, %c0_36, %c9, %c0_37] : memref<1x18x32x128xf32, #tpu.memory_space<vmem>>, vector<1x16x16x128xf32>
    %25 = vector.shape_cast %24 : vector<1x16x16x128xf32> to vector<256x128xf32>
    %c0_38 = arith.constant 0 : index
    %c1_39 = arith.constant 1 : index
    %c7_40 = arith.constant 7 : index
    %c0_41 = arith.constant 0 : index
    %26 = vector.load %arg12[%c0_38, %c1_39, %c7_40, %c0_41] : memref<1x18x32x128xf32, #tpu.memory_space<vmem>>, vector<1x16x16x128xf32>
    %27 = vector.shape_cast %26 : vector<1x16x16x128xf32> to vector<256x128xf32>
    %c0_42 = arith.constant 0 : index
    %c1_43 = arith.constant 1 : index
    %c8_44 = arith.constant 8 : index
    %c0_45 = arith.constant 0 : index
    %28 = vector.load %arg12[%c0_42, %c1_43, %c8_44, %c0_45] : memref<1x18x32x128xf32, #tpu.memory_space<vmem>>, vector<1x16x16x128xf32>
    %29 = vector.shape_cast %28 : vector<1x16x16x128xf32> to vector<256x128xf32>
    %c0_46 = arith.constant 0 : index
    %c1_47 = arith.constant 1 : index
    %c9_48 = arith.constant 9 : index
    %c0_49 = arith.constant 0 : index
    %30 = vector.load %arg12[%c0_46, %c1_47, %c9_48, %c0_49] : memref<1x18x32x128xf32, #tpu.memory_space<vmem>>, vector<1x16x16x128xf32>
    %31 = vector.shape_cast %30 : vector<1x16x16x128xf32> to vector<256x128xf32>
    %c0_50 = arith.constant 0 : index
    %c2 = arith.constant 2 : index
    %c7_51 = arith.constant 7 : index
    %c0_52 = arith.constant 0 : index
    %32 = vector.load %arg12[%c0_50, %c2, %c7_51, %c0_52] : memref<1x18x32x128xf32, #tpu.memory_space<vmem>>, vector<1x16x16x128xf32>
    %33 = vector.shape_cast %32 : vector<1x16x16x128xf32> to vector<256x128xf32>
    %c0_53 = arith.constant 0 : index
    %c2_54 = arith.constant 2 : index
    %c8_55 = arith.constant 8 : index
    %c0_56 = arith.constant 0 : index
    %34 = vector.load %arg12[%c0_53, %c2_54, %c8_55, %c0_56] : memref<1x18x32x128xf32, #tpu.memory_space<vmem>>, vector<1x16x16x128xf32>
    %35 = vector.shape_cast %34 : vector<1x16x16x128xf32> to vector<256x128xf32>
    %c0_57 = arith.constant 0 : index
    %c2_58 = arith.constant 2 : index
    %c9_59 = arith.constant 9 : index
    %c0_60 = arith.constant 0 : index
    %36 = vector.load %arg12[%c0_57, %c2_58, %c9_59, %c0_60] : memref<1x18x32x128xf32, #tpu.memory_space<vmem>>, vector<1x16x16x128xf32>
    %37 = vector.shape_cast %36 : vector<1x16x16x128xf32> to vector<256x128xf32>
    %38 = tpu.concatenate %21, %23, %25, %27, %29, %31, %33, %35, %37 in 1 : vector<256x128xf32>, vector<256x128xf32>, vector<256x128xf32>, vector<256x128xf32>, vector<256x128xf32>, vector<256x128xf32>, vector<256x128xf32>, vector<256x128xf32>, vector<256x128xf32> -> vector<256x1152xf32>
    %c0_61 = arith.constant 0 : index
    %c0_62 = arith.constant 0 : index
    %39 = vector.load %arg5[%c0_61, %c0_62] : memref<1152x128xf32, #tpu.memory_space<vmem>>, vector<1152x128xf32>
    %cst_63 = arith.constant dense<0.000000e+00> : vector<256x128xf32>
    %40 = tpu.matmul %38, %39, %cst_63 {dimension_numbers = #tpu.dot_dimension_numbers<[1], [0], [0], [1], [0, 0, 1, 1], [], []>} : vector<256x1152xf32>, vector<1152x128xf32>, vector<256x128xf32> -> vector<256x128xf32>
    %c0_64 = arith.constant 0 : index
    %c0_65 = arith.constant 0 : index
    %41 = vector.load %arg6[%c0_64, %c0_65] : memref<1x128xf32, #tpu.memory_space<vmem>>, vector<1x128xf32>
    %42 = vector.broadcast %41 : vector<1x128xf32> to vector<256x128xf32>
    %43 = arith.mulf %40, %42 : vector<256x128xf32>
    %c0_66 = arith.constant 0 : index
    %c0_67 = arith.constant 0 : index
    %44 = vector.load %arg7[%c0_66, %c0_67] : memref<1x128xf32, #tpu.memory_space<vmem>>, vector<1x128xf32>
    %45 = vector.broadcast %44 : vector<1x128xf32> to vector<256x128xf32>
    %46 = arith.addf %43, %45 : vector<256x128xf32>
    %cst_68 = arith.constant 0.000000e+00 : f32
    %47 = vector.broadcast %cst_68 : f32 to vector<256x128xf32>
    %48 = arith.maximumf %46, %47 : vector<256x128xf32>
    %c0_69 = arith.constant 0 : index
    %c0_70 = arith.constant 0 : index
    %49 = vector.load %arg8[%c0_69, %c0_70] : memref<128x128xf32, #tpu.memory_space<vmem>>, vector<128x128xf32>
    %cst_71 = arith.constant dense<0.000000e+00> : vector<256x128xf32>
    %50 = tpu.matmul %48, %49, %cst_71 {dimension_numbers = #tpu.dot_dimension_numbers<[1], [0], [0], [1], [0, 0, 1, 1], [], []>} : vector<256x128xf32>, vector<128x128xf32>, vector<256x128xf32> -> vector<256x128xf32>
    %c0_72 = arith.constant 0 : index
    %c0_73 = arith.constant 0 : index
    %51 = vector.load %arg9[%c0_72, %c0_73] : memref<1x128xf32, #tpu.memory_space<vmem>>, vector<1x128xf32>
    %52 = vector.broadcast %51 : vector<1x128xf32> to vector<256x128xf32>
    %53 = arith.mulf %50, %52 : vector<256x128xf32>
    %c0_74 = arith.constant 0 : index
    %c0_75 = arith.constant 0 : index
    %54 = vector.load %arg10[%c0_74, %c0_75] : memref<1x128xf32, #tpu.memory_space<vmem>>, vector<1x128xf32>
    %55 = vector.broadcast %54 : vector<1x128xf32> to vector<256x128xf32>
    %56 = arith.addf %53, %55 : vector<256x128xf32>
    %57 = arith.addf %56, %1 : vector<256x128xf32>
    %cst_76 = arith.constant 0.000000e+00 : f32
    %58 = vector.broadcast %cst_76 : f32 to vector<256x128xf32>
    %59 = arith.maximumf %57, %58 : vector<256x128xf32>
    %60 = vector.shape_cast %59 : vector<256x128xf32> to vector<1x16x16x128xf32>
    %c0_77 = arith.constant 0 : index
    %c0_78 = arith.constant 0 : index
    %c0_79 = arith.constant 0 : index
    %c0_80 = arith.constant 0 : index
    %61 = vector.load %arg11[%c0_77, %c0_78, %c0_79, %c0_80] : memref<1x16x16x128xf32, #tpu.memory_space<vmem>>, vector<1x16x16x128xf32>
    tpu.vector_store %arg11[%c0_77, %c0_78, %c0_79, %c0_80], %60 {strides = array<i32>} : memref<1x16x16x128xf32, #tpu.memory_space<vmem>>, vector<1x16x16x128xf32>,
    return
  }
  func.func @transform_0(%arg0: i32) -> (i32, i32, i32, i32) {
    %c0_i32 = arith.constant 0 : i32
    %c0_i32_0 = arith.constant 0 : i32
    %c0_i32_1 = arith.constant 0 : i32
    %c0_i32_2 = arith.constant 0 : i32
    return %arg0, %c0_i32, %c0_i32_0, %c0_i32_1 : i32, i32, i32, i32
  }
  func.func @transform_1(%arg0: i32) -> (i32, i32) {
    %c0_i32 = arith.constant 0 : i32
    %c0_i32_0 = arith.constant 0 : i32
    %c0_i32_1 = arith.constant 0 : i32
    return %c0_i32, %c0_i32_0 : i32, i32
  }
  func.func @transform_2(%arg0: i32) -> (i32, i32) {
    %c0_i32 = arith.constant 0 : i32
    %c0_i32_0 = arith.constant 0 : i32
    %c0_i32_1 = arith.constant 0 : i32
    return %c0_i32, %c0_i32_0 : i32, i32
  }
  func.func @transform_3(%arg0: i32) -> (i32, i32) {
    %c0_i32 = arith.constant 0 : i32
    %c0_i32_0 = arith.constant 0 : i32
    %c0_i32_1 = arith.constant 0 : i32
    return %c0_i32, %c0_i32_0 : i32, i32
  }
  func.func @transform_4(%arg0: i32) -> (i32, i32) {
    %c0_i32 = arith.constant 0 : i32
    %c0_i32_0 = arith.constant 0 : i32
    %c0_i32_1 = arith.constant 0 : i32
    return %c0_i32, %c0_i32_0 : i32, i32
  }
  func.func @transform_5(%arg0: i32) -> (i32, i32) {
    %c0_i32 = arith.constant 0 : i32
    %c0_i32_0 = arith.constant 0 : i32
    %c0_i32_1 = arith.constant 0 : i32
    return %c0_i32, %c0_i32_0 : i32, i32
  }
  func.func @transform_6(%arg0: i32) -> (i32, i32) {
    %c0_i32 = arith.constant 0 : i32
    %c0_i32_0 = arith.constant 0 : i32
    %c0_i32_1 = arith.constant 0 : i32
    return %c0_i32, %c0_i32_0 : i32, i32
  }
  func.func @transform_7(%arg0: i32) -> (i32, i32) {
    %c0_i32 = arith.constant 0 : i32
    %c0_i32_0 = arith.constant 0 : i32
    %c0_i32_1 = arith.constant 0 : i32
    return %c0_i32, %c0_i32_0 : i32, i32
  }
  func.func @transform_8(%arg0: i32) -> (i32, i32) {
    %c0_i32 = arith.constant 0 : i32
    %c0_i32_0 = arith.constant 0 : i32
    %c0_i32_1 = arith.constant 0 : i32
    return %c0_i32, %c0_i32_0 : i32, i32
  }
  func.func @transform_9(%arg0: i32) -> (i32, i32) {
    %c0_i32 = arith.constant 0 : i32
    %c0_i32_0 = arith.constant 0 : i32
    %c0_i32_1 = arith.constant 0 : i32
    return %c0_i32, %c0_i32_0 : i32, i32
  }
  func.func @transform_10(%arg0: i32) -> (i32, i32, i32, i32) {
    %c0_i32 = arith.constant 0 : i32
    %c0_i32_0 = arith.constant 0 : i32
    %c0_i32_1 = arith.constant 0 : i32
    %c0_i32_2 = arith.constant 0 : i32
    return %arg0, %c0_i32, %c0_i32_0, %c0_i32_1 : i32, i32, i32, i32
  }
}

</mosaic_0001>

<llo_original>
// kernel: tpu_custom_call.1
$region0: #{tpu_custom_call.1}
  #allocation0 [shape = 'u32[]', space=smem, size = 0x4, offset = 0x4, fixed_abs, tag = 'smem constant byte address 0x4 - core index']
  #allocation1 [shape = 'u32[144,128]{1,0:T(1,128)}', space=vmem, size = 0x12000, scoped, tag = 'internal scratch']
  #allocation2 [shape = 'f32[1,18,32,128]{3,2,1,0:T(8,128)}', space=vmem, size = 0x48000, scoped, tag = 'scratch operand']
  %s0 = inlined_call_operand.hbm [shape: f32[2,16,16,128], index: 0, kind: input, shape index: {}]
  %s1 = inlined_call_operand.hbm [shape: f32[128,128], index: 1, kind: input, shape index: {}]
  %s2 = inlined_call_operand.vmem [shape: f32[1,128], index: 2, kind: input, shape index: {}]
  %s3 = inlined_call_operand.vmem [shape: f32[1,128], index: 3, kind: input, shape index: {}]
  %s4 = inlined_call_operand.hbm [shape: f32[1152,128], index: 4, kind: input, shape index: {}]
  %s5 = inlined_call_operand.vmem [shape: f32[1,128], index: 5, kind: input, shape index: {}]
  %s6 = inlined_call_operand.vmem [shape: f32[1,128], index: 6, kind: input, shape index: {}]
  %s7 = inlined_call_operand.hbm [shape: f32[128,128], index: 7, kind: input, shape index: {}]
  %s8 = inlined_call_operand.vmem [shape: f32[1,128], index: 8, kind: input, shape index: {}]
  %s9 = inlined_call_operand.vmem [shape: f32[1,128], index: 9, kind: input, shape index: {}]
  %s10 = inlined_call_operand.hbm [shape: f32[2,16,16,128], index: 10, kind: output, shape index: {}]
  %s11 = sld [smem:[#allocation0]]
  $region89: #{tpu_custom_call.1} parent=0
    _
  %s13 = ssub.s32 1, %s11
  %s14 = scalar_select 0, %s13, %s11
  $region1: #{tpu_custom_call.1} parent=0
    #allocation3 [shape = 'u8[262144]{0}', space=vmem, size = 0x40000, scoped, tag = 'input window, operand 0']
    #allocation4 [shape = 's32[2]{0}', space=sflag, size = 0x8, scoped, tag = 'scoped memory for tpu_custom_call.1']
    #allocation5 [shape = 's32[2]{0}', space=sflag, size = 0x8, scoped, tag = 'scoped memory for tpu_custom_call.1']
    #allocation6 [shape = 'u8[65536]{0}', space=vmem, size = 0x10000, scoped, tag = 'input window, operand 1, single buffered']
    #allocation7 [shape = 's32[1]{0}', space=sflag, size = 0x4, scoped, tag = 'scoped memory for tpu_custom_call.1']
    #allocation8 [shape = 'u8[589824]{0}', space=vmem, size = 0x90000, scoped, tag = 'input window, operand 4, single buffered']
    #allocation9 [shape = 'u8[65536]{0}', space=vmem, size = 0x10000, scoped, tag = 'input window, operand 7, single buffered']
    #allocation10 [shape = 's32[1]{0}', space=sflag, size = 0x4, scoped, tag = 'scoped memory for tpu_custom_call.1']
    #allocation11 [shape = 'u8[262144]{0}', space=vmem, size = 0x40000, scoped, tag = 'output window, operand 0']
    %15 = vsyncpa [#allocation4], 0
    %s16 = scalar_lea.sflag [#allocation4], 1
    %17 = vsyncpa %s16, 0
    %18 = vsyncpa [#allocation7], 0
    %19 = vsyncpa [#allocation10], 0
    %20 = vsyncpa [#allocation5], 0
    %s21 = scalar_lea.sflag [#allocation5], 1
    %22 = vsyncpa %s21, 0
    loop: start=0, step=1, limit=4
    $region2: #{tpu_custom_call.1} parent=1 // loop_pre_header
      _
    $region3: #{tpu_custom_call.1} parent=1 // loop_header
      %s24 = sphi 0, %s28
      %p25 = scmp.ge.s32.totalorder %s24, 4
      %s34 = sphi 0, %s36
      %s37 = sphi 0, %s34
      %s38 = sphi 0, %s37
      %s54 = sphi 0, %s38
      %s58 = sphi 0, %s58
      %s60 = sphi 0, %s58
      %s61 = sphi 0, %s60
      %s75 = sphi 0, %s61
      %s79 = sphi 0, %s79
      %s81 = sphi 0, %s79
      %s82 = sphi 0, %s81
      %s96 = sphi 0, %s82
      %s100 = sphi 0, %s100
      %s102 = sphi 0, %s100
      %s103 = sphi 0, %s102
      %s117 = sphi 0, %s103
      %s121 = sphi 0, %s121
      %s123 = sphi 0, %s121
      %s124 = sphi 0, %s123
      %s138 = sphi 0, %s124
      %s142 = sphi 0, %s142
      %s144 = sphi 0, %s142
      %s145 = sphi 0, %s144
      %s159 = sphi 0, %s145
      %s163 = sphi 0, %s163
      %s165 = sphi 0, %s163
      %s166 = sphi 0, %s165
      %s180 = sphi 0, %s166
      %s184 = sphi 0, %s184
      %s186 = sphi 0, %s184
      %s187 = sphi 0, %s186
      %s201 = sphi 0, %s187
      %s205 = sphi 0, %s205
      %s207 = sphi 0, %s205
      %s208 = sphi 0, %s207
      %s222 = sphi 0, %s208
      %s226 = sphi 0, %s226
      %s228 = sphi 0, %s226
      %s229 = sphi 0, %s228
      %s243 = sphi 0, %s229
      %s249 = sphi 0, %s251
      %s252 = sphi 0, %s249
      %s253 = sphi 0, %s252
      %s269 = sphi 0, %s253
    $region4: #{tpu_custom_call.1} parent=1 // loop_header_branch
      %27 = sbr.rel (%p25) target = $region8
    $region5: #{tpu_custom_call.1} parent=1 // loop_body
      %s29 = ssub.s32 %s24, 1
      %s30 = ssub.s32 %s24, 2
      %s31 = sadd.s32 %s24, 1
      %s32 = ssub.s32 %s24, %s31
      %p33 = scmp.eq.s32.totalorder %s32, 0
      %s35 = sadd.s32 %s34, 1
      %s36 = scalar_select %p33, %s34, %s35
      %p39 = pneg %p33
      %p40 = scmp.eq.s32.totalorder %s24, 1
      %p41 = por %p39, %p40
      %p42 = scmp.ne.s32.totalorder %s34, %s37
      %p43 = scmp.eq.s32.totalorder %s24, 0
      %p44 = por %p42, %p43
      %p45 = scmp.ne.s32.totalorder %s34, %s37
      %p46 = scmp.eq.s32.totalorder %s29, 1
      %p47 = por %p45, %p46
      %p48 = scmp.ne.s32.totalorder %s37, %s38
      %p49 = scmp.eq.s32.totalorder %s29, 0
      %p50 = por %p48, %p49
      %p51 = scmp.ne.s32.totalorder %s37, %s38
      %p52 = scmp.eq.s32.totalorder %s30, 1
      %p53 = por %p51, %p52
      %p55 = scmp.ne.s32.totalorder %s38, %s54
      %p56 = scmp.eq.s32.totalorder %s30, 0
      %p57 = por %p55, %p56
      %s59 = sadd.s32 %s58, 1
      %p62 = scmp.eq.s32.totalorder %s24, 1
      %p63 = scmp.ne.s32.totalorder %s58, %s60
      %p64 = scmp.eq.s32.totalorder %s24, 0
      %p65 = por %p63, %p64
      %p66 = scmp.ne.s32.totalorder %s58, %s60
      %p67 = scmp.eq.s32.totalorder %s29, 1
      %p68 = por %p66, %p67
      %p69 = scmp.ne.s32.totalorder %s60, %s61
      %p70 = scmp.eq.s32.totalorder %s29, 0
      %p71 = por %p69, %p70
      %p72 = scmp.ne.s32.totalorder %s60, %s61
      %p73 = scmp.eq.s32.totalorder %s30, 1
      %p74 = por %p72, %p73
      %p76 = scmp.ne.s32.totalorder %s61, %s75
      %p77 = scmp.eq.s32.totalorder %s30, 0
      %p78 = por %p76, %p77
      %s80 = sadd.s32 %s79, 1
      %p83 = scmp.eq.s32.totalorder %s24, 1
      %p84 = scmp.ne.s32.totalorder %s79, %s81
      %p85 = scmp.eq.s32.totalorder %s24, 0
      %p86 = por %p84, %p85
      %p87 = scmp.ne.s32.totalorder %s79, %s81
      %p88 = scmp.eq.s32.totalorder %s29, 1
      %p89 = por %p87, %p88
      %p90 = scmp.ne.s32.totalorder %s81, %s82
      %p91 = scmp.eq.s32.totalorder %s29, 0
      %p92 = por %p90, %p91
      %p93 = scmp.ne.s32.totalorder %s81, %s82
      %p94 = scmp.eq.s32.totalorder %s30, 1
      %p95 = por %p93, %p94
      %p97 = scmp.ne.s32.totalorder %s82, %s96
      %p98 = scmp.eq.s32.totalorder %s30, 0
      %p99 = por %p97, %p98
      %s101 = sadd.s32 %s100, 1
      %p104 = scmp.eq.s32.totalorder %s24, 1
      %p105 = scmp.ne.s32.totalorder %s100, %s102
      %p106 = scmp.eq.s32.totalorder %s24, 0
      %p107 = por %p105, %p106
      %p108 = scmp.ne.s32.totalorder %s100, %s102
      %p109 = scmp.eq.s32.totalorder %s29, 1
      %p110 = por %p108, %p109
      %p111 = scmp.ne.s32.totalorder %s102, %s103
      %p112 = scmp.eq.s32.totalorder %s29, 0
      %p113 = por %p111, %p112
      %p114 = scmp.ne.s32.totalorder %s102, %s103
      %p115 = scmp.eq.s32.totalorder %s30, 1
      %p116 = por %p114, %p115
      %p118 = scmp.ne.s32.totalorder %s103, %s117
      %p119 = scmp.eq.s32.totalorder %s30, 0
      %p120 = por %p118, %p119
      %s122 = sadd.s32 %s121, 1
      %p125 = scmp.eq.s32.totalorder %s24, 1
      %p126 = scmp.ne.s32.totalorder %s121, %s123
      %p127 = scmp.eq.s32.totalorder %s24, 0
      %p128 = por %p126, %p127
      %p129 = scmp.ne.s32.totalorder %s121, %s123
      %p130 = scmp.eq.s32.totalorder %s29, 1
      %p131 = por %p129, %p130
      %p132 = scmp.ne.s32.totalorder %s123, %s124
      %p133 = scmp.eq.s32.totalorder %s29, 0
      %p134 = por %p132, %p133
      %p135 = scmp.ne.s32.totalorder %s123, %s124
      %p136 = scmp.eq.s32.totalorder %s30, 1
      %p137 = por %p135, %p136
      %p139 = scmp.ne.s32.totalorder %s124, %s138
      %p140 = scmp.eq.s32.totalorder %s30, 0
      %p141 = por %p139, %p140
      %s143 = sadd.s32 %s142, 1
      %p146 = scmp.eq.s32.totalorder %s24, 1
      %p147 = scmp.ne.s32.totalorder %s142, %s144
      %p148 = scmp.eq.s32.totalorder %s24, 0
      %p149 = por %p147, %p148
      %p150 = scmp.ne.s32.totalorder %s142, %s144
      %p151 = scmp.eq.s32.totalorder %s29, 1
      %p152 = por %p150, %p151
      %p153 = scmp.ne.s32.totalorder %s144, %s145
      %p154 = scmp.eq.s32.totalorder %s29, 0
      %p155 = por %p153, %p154
      %p156 = scmp.ne.s32.totalorder %s144, %s145
      %p157 = scmp.eq.s32.totalorder %s30, 1
      %p158 = por %p156, %p157
      %p160 = scmp.ne.s32.totalorder %s145, %s159
      %p161 = scmp.eq.s32.totalorder %s30, 0
      %p162 = por %p160, %p161
      %s164 = sadd.s32 %s163, 1
      %p167 = scmp.eq.s32.totalorder %s24, 1
      %p168 = scmp.ne.s32.totalorder %s163, %s165
      %p169 = scmp.eq.s32.totalorder %s24, 0
      %p170 = por %p168, %p169
      %p171 = scmp.ne.s32.totalorder %s163, %s165
      %p172 = scmp.eq.s32.totalorder %s29, 1
      %p173 = por %p171, %p172
      %p174 = scmp.ne.s32.totalorder %s165, %s166
      %p175 = scmp.eq.s32.totalorder %s29, 0
      %p176 = por %p174, %p175
      %p177 = scmp.ne.s32.totalorder %s165, %s166
      %p178 = scmp.eq.s32.totalorder %s30, 1
      %p179 = por %p177, %p178
      %p181 = scmp.ne.s32.totalorder %s166, %s180
      %p182 = scmp.eq.s32.totalorder %s30, 0
      %p183 = por %p181, %p182
      %s185 = sadd.s32 %s184, 1
      %p188 = scmp.eq.s32.totalorder %s24, 1
      %p189 = scmp.ne.s32.totalorder %s184, %s186
      %p190 = scmp.eq.s32.totalorder %s24, 0
      %p191 = por %p189, %p190
      %p192 = scmp.ne.s32.totalorder %s184, %s186
      %p193 = scmp.eq.s32.totalorder %s29, 1
      %p194 = por %p192, %p193
      %p195 = scmp.ne.s32.totalorder %s186, %s187
      %p196 = scmp.eq.s32.totalorder %s29, 0
      %p197 = por %p195, %p196
      %p198 = scmp.ne.s32.totalorder %s186, %s187
      %p199 = scmp.eq.s32.totalorder %s30, 1
      %p200 = por %p198, %p199
      %p202 = scmp.ne.s32.totalorder %s187, %s201
      %p203 = scmp.eq.s32.totalorder %s30, 0
      %p204 = por %p202, %p203
      %s206 = sadd.s32 %s205, 1
      %p209 = scmp.eq.s32.totalorder %s24, 1
      %p210 = scmp.ne.s32.totalorder %s205, %s207
      %p211 = scmp.eq.s32.totalorder %s24, 0
      %p212 = por %p210, %p211
      %p213 = scmp.ne.s32.totalorder %s205, %s207
      %p214 = scmp.eq.s32.totalorder %s29, 1
      %p215 = por %p213, %p214
      %p216 = scmp.ne.s32.totalorder %s207, %s208
      %p217 = scmp.eq.s32.totalorder %s29, 0
      %p218 = por %p216, %p217
      %p219 = scmp.ne.s32.totalorder %s207, %s208
      %p220 = scmp.eq.s32.totalorder %s30, 1
      %p221 = por %p219, %p220
      %p223 = scmp.ne.s32.totalorder %s208, %s222
      %p224 = scmp.eq.s32.totalorder %s30, 0
      %p225 = por %p223, %p224
      %s227 = sadd.s32 %s226, 1
      %p230 = scmp.eq.s32.totalorder %s24, 1
      %p231 = scmp.ne.s32.totalorder %s226, %s228
      %p232 = scmp.eq.s32.totalorder %s24, 0
      %p233 = por %p231, %p232
      %p234 = scmp.ne.s32.totalorder %s226, %s228
      %p235 = scmp.eq.s32.totalorder %s29, 1
      %p236 = por %p234, %p235
      %p237 = scmp.ne.s32.totalorder %s228, %s229
      %p238 = scmp.eq.s32.totalorder %s29, 0
      %p239 = por %p237, %p238
      %p240 = scmp.ne.s32.totalorder %s228, %s229
      %p241 = scmp.eq.s32.totalorder %s30, 1
      %p242 = por %p240, %p241
      %p244 = scmp.ne.s32.totalorder %s229, %s243
      %p245 = scmp.eq.s32.totalorder %s30, 0
      %p246 = por %p244, %p245
      %s247 = ssub.s32 %s24, %s31
      %p248 = scmp.eq.s32.totalorder %s247, 0
      %s250 = sadd.s32 %s249, 1
      %s251 = scalar_select %p248, %s249, %s250
      %p254 = pneg %p248
      %p255 = scmp.eq.s32.totalorder %s24, 1
      %p256 = por %p254, %p255
      %p257 = scmp.ne.s32.totalorder %s249, %s252
      %p258 = scmp.eq.s32.totalorder %s24, 0
      %p259 = por %p257, %p258
      %p260 = scmp.ne.s32.totalorder %s249, %s252
      %p261 = scmp.eq.s32.totalorder %s29, 1
      %p262 = por %p260, %p261
      %p263 = scmp.ne.s32.totalorder %s252, %s253
      %p264 = scmp.eq.s32.totalorder %s29, 0
      %p265 = por %p263, %p264
      %p266 = scmp.ne.s32.totalorder %s252, %s253
      %p267 = scmp.eq.s32.totalorder %s30, 1
      %p268 = por %p266, %p267
      %p270 = scmp.ne.s32.totalorder %s253, %s269
      %p271 = scmp.eq.s32.totalorder %s30, 0
      %p272 = por %p270, %p271
      %p273 = scmp.le.s32.totalorder 1, %s24
      %p274 = scmp.lt.s32.totalorder %s24, 3
      %p275 = pnand %p273, %p274
      %p276 = pneg %p275
      // Predicated region
      $region9: #{tpu_custom_call.1} parent=5 // pred_check
        _
      $region10: #{tpu_custom_call.1} parent=5 // pred_check_branch
        %278 = sbr.rel (%p275) target = $region12
      $region11: #{tpu_custom_call.1} parent=5 // pred_region
        %s279 = ssub.s32 %s24, 1
        // Predicated region
        $region13: #{tpu_custom_call.1} parent=11 // pred_check
          %p280 = pneg %p71
        $region14: #{tpu_custom_call.1} parent=11 // pred_check_branch
          %282 = sbr.rel (%p280) target = $region16
        $region15: #{tpu_custom_call.1} parent=11 // pred_region
          %s284 = ssub.s32 2048, 2048
          %285 = vsyncadd [#allocation7], %s284
          %s286 = sshll.u32 [#allocation6], 4
          %s287 = int_to_ptr.vmem [resolvable:$true] %s286
          %292 = dma.hbm_to_vmem [thread:$0]  %s1, 2048, %s287, [#allocation7], 128, 128, 8
        $region16: #{tpu_custom_call.1} parent=11 // pred_fallthru
          _
        // Predicated region
        $region17: #{tpu_custom_call.1} parent=11 // pred_check
          %p293 = pneg %p92
        $region18: #{tpu_custom_call.1} parent=11 // pred_check_branch
          %295 = sbr.rel (%p293) target = $region20
        $region19: #{tpu_custom_call.1} parent=11 // pred_region
          _
        $region20: #{tpu_custom_call.1} parent=11 // pred_fallthru
          _
        // Predicated region
        $region21: #{tpu_custom_call.1} parent=11 // pred_check
          %p296 = pneg %p113
        $region22: #{tpu_custom_call.1} parent=11 // pred_check_branch
          %298 = sbr.rel (%p296) target = $region24
        $region23: #{tpu_custom_call.1} parent=11 // pred_region
          _
        $region24: #{tpu_custom_call.1} parent=11 // pred_fallthru
          _
        // Predicated region
        $region25: #{tpu_custom_call.1} parent=11 // pred_check
          %p299 = pneg %p134
        $region26: #{tpu_custom_call.1} parent=11 // pred_check_branch
          %301 = sbr.rel (%p299) target = $region28
        $region27: #{tpu_custom_call.1} parent=11 // pred_region
          %s303 = ssub.s32 18432, 18432
          %304 = vsyncadd [#allocation7], %s303
          %s305 = sshll.u32 [#allocation8], 4
          %s306 = int_to_ptr.vmem [resolvable:$true] %s305
          %311 = dma.hbm_to_vmem [thread:$0]  %s4, 18432, %s306, [#allocation7], 128, 128, 8
        $region28: #{tpu_custom_call.1} parent=11 // pred_fallthru
          _
        // Predicated region
        $region29: #{tpu_custom_call.1} parent=11 // pred_check
          %p312 = pneg %p155
        $region30: #{tpu_custom_call.1} parent=11 // pred_check_branch
          %314 = sbr.rel (%p312) target = $region32
        $region31: #{tpu_custom_call.1} parent=11 // pred_region
          _
        $region32: #{tpu_custom_call.1} parent=11 // pred_fallthru
          _
        // Predicated region
        $region33: #{tpu_custom_call.1} parent=11 // pred_check
          %p315 = pneg %p176
        $region34: #{tpu_custom_call.1} parent=11 // pred_check_branch
          %317 = sbr.rel (%p315) target = $region36
        $region35: #{tpu_custom_call.1} parent=11 // pred_region
          _
        $region36: #{tpu_custom_call.1} parent=11 // pred_fallthru
          _
        // Predicated region
        $region37: #{tpu_custom_call.1} parent=11 // pred_check
          %p318 = pneg %p197
        $region38: #{tpu_custom_call.1} parent=11 // pred_check_branch
          %320 = sbr.rel (%p318) target = $region40
        $region39: #{tpu_custom_call.1} parent=11 // pred_region
          %s322 = ssub.s32 2048, 2048
          %323 = vsyncadd [#allocation10], %s322
          %s324 = sshll.u32 [#allocation9], 4
          %s325 = int_to_ptr.vmem [resolvable:$true] %s324
          %330 = dma.hbm_to_vmem [thread:$0]  %s7, 2048, %s325, [#allocation10], 128, 128, 8
        $region40: #{tpu_custom_call.1} parent=11 // pred_fallthru
          _
        // Predicated region
        $region41: #{tpu_custom_call.1} parent=11 // pred_check
          %p331 = pneg %p218
        $region42: #{tpu_custom_call.1} parent=11 // pred_check_branch
          %333 = sbr.rel (%p331) target = $region44
        $region43: #{tpu_custom_call.1} parent=11 // pred_region
          _
        $region44: #{tpu_custom_call.1} parent=11 // pred_fallthru
          _
        // Predicated region
        $region45: #{tpu_custom_call.1} parent=11 // pred_check
          %p334 = pneg %p239
        $region46: #{tpu_custom_call.1} parent=11 // pred_check_branch
          %336 = sbr.rel (%p334) target = $region48
        $region47: #{tpu_custom_call.1} parent=11 // pred_region
          _
        $region48: #{tpu_custom_call.1} parent=11 // pred_fallthru
          _
      $region12: #{tpu_custom_call.1} parent=5 // pred_fallthru
        _
      %p337 = scmp.lt.s32.totalorder %s24, 2
      // Predicated region
      $region49: #{tpu_custom_call.1} parent=5 // pred_check
        %p338 = pneg %p337
      $region50: #{tpu_custom_call.1} parent=5 // pred_check_branch
        %340 = sbr.rel (%p338) target = $region52
      $region51: #{tpu_custom_call.1} parent=5 // pred_region
        // Predicated region
        $region53: #{tpu_custom_call.1} parent=51 // pred_check
          %p341 = pneg %p44
        $region54: #{tpu_custom_call.1} parent=51 // pred_check_branch
          %343 = sbr.rel (%p341) target = $region56
        $region55: #{tpu_custom_call.1} parent=51 // pred_region
          %s344 = sand.u32 %s34, 1
          %s345 = scalar_lea.sflag [#allocation4], %s344
          %s346 = sand.u32 %s34, 1
          %s347 = smul.addr %s346, 256
          %s348 = scalar_lea.vmem [#allocation3], %s347
          %s350 = ssub.s32 4096, 4096
          %351 = vsyncadd %s345, %s350
          %s352 = smul.addr %s24, 32
          %s353 = smul.addr %s352, 128
          %s354 = scalar_lea.hbm %s0, %s353
          %s355 = sshll.u32 %s348, 4
          %s356 = int_to_ptr.vmem [resolvable:$true] %s355
          %361 = dma.hbm_to_vmem [thread:$0]  %s354, 4096, %s356, %s345, 128, 128, 8
        $region56: #{tpu_custom_call.1} parent=51 // pred_fallthru
          _
      $region52: #{tpu_custom_call.1} parent=5 // pred_fallthru
        _
      %p362 = scmp.le.s32.totalorder 1, %s24
      %p363 = scmp.lt.s32.totalorder %s24, 3
      %p364 = pnand %p362, %p363
      %p365 = pneg %p364
      // Predicated region
      $region57: #{tpu_custom_call.1} parent=5 // pred_check
        _
      $region58: #{tpu_custom_call.1} parent=5 // pred_check_branch
        %367 = sbr.rel (%p364) target = $region60
      $region59: #{tpu_custom_call.1} parent=5 // pred_region
        %s368 = ssub.s32 %s24, 1
        %s369 = sand.u32 %s37, 1
        %s370 = scalar_lea.sflag [#allocation4], %s369
        %s371 = sand.u32 %s37, 1
        %s372 = smul.addr %s371, 256
        %s373 = scalar_lea.vmem [#allocation3], %s372
        // Predicated region
        $region61: #{tpu_custom_call.1} parent=59 // pred_check
          %p374 = pneg %p50
        $region62: #{tpu_custom_call.1} parent=59 // pred_check_branch
          %376 = sbr.rel (%p374) target = $region64
        $region63: #{tpu_custom_call.1} parent=59 // pred_region
          %377 = dma.done %s370, 4096
        $region64: #{tpu_custom_call.1} parent=59 // pred_fallthru
          _
        // Predicated region
        $region65: #{tpu_custom_call.1} parent=59 // pred_check
          %p378 = pneg %p71
        $region66: #{tpu_custom_call.1} parent=59 // pred_check_branch
          %380 = sbr.rel (%p378) target = $region68
        $region67: #{tpu_custom_call.1} parent=59 // pred_region
          %381 = dma.done [#allocation7], 2048
        $region68: #{tpu_custom_call.1} parent=59 // pred_fallthru
          _
        // Predicated region
        $region69: #{tpu_custom_call.1} parent=59 // pred_check
          %p382 = pneg %p134
        $region70: #{tpu_custom_call.1} parent=59 // pred_check_branch
          %384 = sbr.rel (%p382) target = $region72
        $region71: #{tpu_custom_call.1} parent=59 // pred_region
          %385 = dma.done [#allocation7], 18432
        $region72: #{tpu_custom_call.1} parent=59 // pred_fallthru
          _
        // Predicated region
        $region73: #{tpu_custom_call.1} parent=59 // pred_check
          %p386 = pneg %p197
        $region74: #{tpu_custom_call.1} parent=59 // pred_check_branch
          %388 = sbr.rel (%p386) target = $region76
        $region75: #{tpu_custom_call.1} parent=59 // pred_region
          %389 = dma.done [#allocation10], 2048
        $region76: #{tpu_custom_call.1} parent=59 // pred_fallthru
          _
        %s390 = sand.u32 %s37, 1
        %s391 = scalar_lea.sflag [#allocation4], %s390
        %s392 = sand.u32 %s37, 1
        %s393 = smul.addr %s392, 256
        %s394 = scalar_lea.vmem [#allocation3], %s393
        %p395 = pneg %p50
        %p396 = pneg %p47
        %p397 = pneg %p71
        %p398 = pneg %p68
        %p399 = pneg %p92
        %p400 = pneg %p89
        %p401 = pneg %p113
        %p402 = pneg %p110
        %p403 = pneg %p134
        %p404 = pneg %p131
        %p405 = pneg %p155
        %p406 = pneg %p152
        %p407 = pneg %p176
        %p408 = pneg %p173
        %p409 = pneg %p197
        %p410 = pneg %p194
        %p411 = pneg %p218
        %p412 = pneg %p215
        %p413 = pneg %p239
        %p414 = pneg %p236
        %p415 = pneg %p265
        %p416 = pneg %p262
        %s417 = sand.u32 %s252, 1
        %s418 = scalar_lea.sflag [#allocation5], %s417
        %s419 = sand.u32 %s252, 1
        %s420 = smul.addr %s419, 256
        %s421 = scalar_lea.vmem [#allocation11], %s420
        %v422 = vld [vmem:[%s373] sm:$0xff]
        %v423 = vld [vmem:[%s373 + $0x8] sm:$0xff]
        %v424 = vld [vmem:[%s373 + $0x10] sm:$0xff]
        %v425 = vld [vmem:[%s373 + $0x18] sm:$0xff]
        %v426 = vld [vmem:[%s373 + $0x20] sm:$0xff]
        %v427 = vld [vmem:[%s373 + $0x28] sm:$0xff]
        %v428 = vld [vmem:[%s373 + $0x30] sm:$0xff]
        %v429 = vld [vmem:[%s373 + $0x38] sm:$0xff]
        %v430 = vld [vmem:[%s373 + $0x40] sm:$0xff]
        %v431 = vld [vmem:[%s373 + $0x48] sm:$0xff]
        %v432 = vld [vmem:[%s373 + $0x50] sm:$0xff]
        %v433 = vld [vmem:[%s373 + $0x58] sm:$0xff]
        %v434 = vld [vmem:[%s373 + $0x60] sm:$0xff]
        %v435 = vld [vmem:[%s373 + $0x68] sm:$0xff]
        %v436 = vld [vmem:[%s373 + $0x70] sm:$0xff]
        %v437 = vld [vmem:[%s373 + $0x78] sm:$0xff]
        %v438 = vld [vmem:[%s373 + $0x80] sm:$0xff]
        %v439 = vld [vmem:[%s373 + $0x88] sm:$0xff]
        %v440 = vld [vmem:[%s373 + $0x90] sm:$0xff]
        %v441 = vld [vmem:[%s373 + $0x98] sm:$0xff]
        %v442 = vld [vmem:[%s373 + $0xa0] sm:$0xff]
        %v443 = vld [vmem:[%s373 + $0xa8] sm:$0xff]
        %v444 = vld [vmem:[%s373 + $0xb0] sm:$0xff]
        %v445 = vld [vmem:[%s373 + $0xb8] sm:$0xff]
        %v446 = vld [vmem:[%s373 + $0xc0] sm:$0xff]
        %v447 = vld [vmem:[%s373 + $0xc8] sm:$0xff]
        %v448 = vld [vmem:[%s373 + $0xd0] sm:$0xff]
        %v449 = vld [vmem:[%s373 + $0xd8] sm:$0xff]
        %v450 = vld [vmem:[%s373 + $0xe0] sm:$0xff]
        %v451 = vld [vmem:[%s373 + $0xe8] sm:$0xff]
        %v452 = vld [vmem:[%s373 + $0xf0] sm:$0xff]
        %v453 = vld [vmem:[%s373 + $0xf8] sm:$0xff]
        %v454 = vld [vmem:[#allocation6] sm:$0xff]
        %v455 = vld [vmem:[#allocation6 + $0x8] sm:$0xff]
        %v456 = vld [vmem:[#allocation6 + $0x10] sm:$0xff]
        %v457 = vld [vmem:[#allocation6 + $0x18] sm:$0xff]
        %v458 = vld [vmem:[#allocation6 + $0x20] sm:$0xff]
        %v459 = vld [vmem:[#allocation6 + $0x28] sm:$0xff]
        %v460 = vld [vmem:[#allocation6 + $0x30] sm:$0xff]
        %v461 = vld [vmem:[#allocation6 + $0x38] sm:$0xff]
        %v462 = vld [vmem:[#allocation6 + $0x40] sm:$0xff]
        %v463 = vld [vmem:[#allocation6 + $0x48] sm:$0xff]
        %v464 = vld [vmem:[#allocation6 + $0x50] sm:$0xff]
        %v465 = vld [vmem:[#allocation6 + $0x58] sm:$0xff]
        %v466 = vld [vmem:[#allocation6 + $0x60] sm:$0xff]
        %v467 = vld [vmem:[#allocation6 + $0x68] sm:$0xff]
        %v468 = vld [vmem:[#allocation6 + $0x70] sm:$0xff]
        %v469 = vld [vmem:[#allocation6 + $0x78] sm:$0xff]
        %470 = vmatprep.subr.mxu0 0.0
        %471 = vmatpush1.msra.mxu0 %v454
        %472 = vmatprep.subr.mxu0 0.0
        %473 = vmatpush1.msra.mxu0 %v455
        %474 = vmatprep.subr.mxu0 0.0
        %475 = vmatpush1.msra.mxu0 %v456
        %476 = vmatprep.subr.mxu0 0.0
        %477 = vmatpush1.msra.mxu0 %v457
        %478 = vmatprep.subr.mxu0 0.0
        %479 = vmatpush1.msra.mxu0 %v458
        %480 = vmatprep.subr.mxu0 0.0
        %481 = vmatpush1.msra.mxu0 %v459
        %482 = vmatprep.subr.mxu0 0.0
        %483 = vmatpush1.msra.mxu0 %v460
        %484 = vmatprep.subr.mxu0 0.0
        %485 = vmatpush1.msra.mxu0 %v461
        %486 = vmatprep.subr.mxu0 0.0
        %487 = vmatpush1.msra.mxu0 %v462
        %488 = vmatprep.subr.mxu0 0.0
        %489 = vmatpush1.msra.mxu0 %v463
        %490 = vmatprep.subr.mxu0 0.0
        %491 = vmatpush1.msra.mxu0 %v464
        %492 = vmatprep.subr.mxu0 0.0
        %493 = vmatpush1.msra.mxu0 %v465
        %494 = vmatprep.subr.mxu0 0.0
        %495 = vmatpush1.msra.mxu0 %v466
        %496 = vmatprep.subr.mxu0 0.0
        %497 = vmatpush1.msra.mxu0 %v467
        %498 = vmatprep.subr.mxu0 0.0
        %499 = vmatpush1.msra.mxu0 %v468
        %500 = vmatprep.subr.mxu0 0.0
        %501 = vmatpush1.msra.mxu0 %v469
        %502 = vmatprep.subr.mxu0 0.0
        %503 = vmatpush1.msra.mxu0 0.0
        %504 = vmatprep.subr.mxu0 0.0
        %505 = vmatpush1.msra.mxu0 0.0
        %506 = vmatprep.subr.mxu0 0.0
        %507 = vmatpush1.msra.mxu0 0.0
        %508 = vmatprep.subr.mxu0 0.0
        %509 = vmatpush1.msra.mxu0 0.0
        %510 = vmatprep.subr.mxu0 0.0
        %511 = vmatpush1.msra.mxu0 0.0
        %512 = vmatprep.subr.mxu0 0.0
        %513 = vmatpush1.msra.mxu0 0.0
        %514 = vmatprep.subr.mxu0 0.0
        %515 = vmatpush1.msra.mxu0 0.0
        %516 = vmatprep.subr.mxu0 0.0
        %517 = vmatpush1.msra.mxu0 0.0
        %518 = vmatprep.subr.mxu0 0.0
        %519 = vmatpush1.msra.mxu0 0.0
        %520 = vmatprep.subr.mxu0 0.0
        %521 = vmatpush1.msra.mxu0 0.0
        %522 = vmatprep.subr.mxu0 0.0
        %523 = vmatpush1.msra.mxu0 0.0
        %524 = vmatprep.subr.mxu0 0.0
        %525 = vmatpush1.msra.mxu0 0.0
        %526 = vmatprep.subr.mxu0 0.0
        %527 = vmatpush1.msra.mxu0 0.0
        %528 = vmatprep.subr.mxu0 0.0
        %529 = vmatpush1.msra.mxu0 0.0
        %530 = vmatprep.subr.mxu0 0.0
        %531 = vmatpush1.msra.mxu0 0.0
        %532 = vmatprep.subr.mxu0 0.0
        %533 = vmatpush1.msra.mxu0 0.0
        %534 = vmatprep.mubr.f32.mxu0 0.0
        %535 = vmatmul.mubr.f32.gmra.mrb[0].mxu0 %v422
        %v536 = vpop.f32.mrb[0].mxu0
        %v537 = vadd.f32 0.0, %v536
        %v538 = vpop.f32.mrb[0].mxu0
        %539 = vmatprep.mubr.f32.mxu0 0.0
        %540 = vmatmul.mubr.f32.gmra.mrb[0].mxu0 %v423
        %v541 = vpop.f32.mrb[0].mxu0
        %v542 = vadd.f32 0.0, %v541
        %v543 = vpop.f32.mrb[0].mxu0
        %544 = vmatprep.mubr.f32.mxu0 0.0
        %545 = vmatmul.mubr.f32.gmra.mrb[0].mxu0 %v424
        %v546 = vpop.f32.mrb[0].mxu0
        %v547 = vadd.f32 0.0, %v546
        %v548 = vpop.f32.mrb[0].mxu0
        %549 = vmatprep.mubr.f32.mxu0 0.0
        %550 = vmatmul.mubr.f32.gmra.mrb[0].mxu0 %v425
        %v551 = vpop.f32.mrb[0].mxu0
        %v552 = vadd.f32 0.0, %v551
        %v553 = vpop.f32.mrb[0].mxu0
        %554 = vmatprep.mubr.f32.mxu0 0.0
        %555 = vmatmul.mubr.f32.gmra.mrb[0].mxu0 %v426
        %v556 = vpop.f32.mrb[0].mxu0
        %v557 = vadd.f32 0.0, %v556
        %v558 = vpop.f32.mrb[0].mxu0
        %559 = vmatprep.mubr.f32.mxu0 0.0
        %560 = vmatmul.mubr.f32.gmra.mrb[0].mxu0 %v427
        %v561 = vpop.f32.mrb[0].mxu0
        %v562 = vadd.f32 0.0, %v561
        %v563 = vpop.f32.mrb[0].mxu0
        %564 = vmatprep.mubr.f32.mxu0 0.0
        %565 = vmatmul.mubr.f32.gmra.mrb[0].mxu0 %v428
        %v566 = vpop.f32.mrb[0].mxu0
        %v567 = vadd.f32 0.0, %v566
        %v568 = vpop.f32.mrb[0].mxu0
        %569 = vmatprep.mubr.f32.mxu0 0.0
        %570 = vmatmul.mubr.f32.gmra.mrb[0].mxu0 %v429
        %v571 = vpop.f32.mrb[0].mxu0
        %v572 = vadd.f32 0.0, %v571
        %v573 = vpop.f32.mrb[0].mxu0
        %574 = vmatprep.mubr.f32.mxu0 0.0
        %575 = vmatmul.mubr.f32.gmra.mrb[0].mxu0 %v430
        %v576 = vpop.f32.mrb[0].mxu0
        %v577 = vadd.f32 0.0, %v576
        %v578 = vpop.f32.mrb[0].mxu0
        %579 = vmatprep.mubr.f32.mxu0 0.0
        %580 = vmatmul.mubr.f32.gmra.mrb[0].mxu0 %v431
        %v581 = vpop.f32.mrb[0].mxu0
        %v582 = vadd.f32 0.0, %v581
        %v583 = vpop.f32.mrb[0].mxu0
        %584 = vmatprep.mubr.f32.mxu0 0.0
        %585 = vmatmul.mubr.f32.gmra.mrb[0].mxu0 %v432
        %v586 = vpop.f32.mrb[0].mxu0
        %v587 = vadd.f32 0.0, %v586
        %v588 = vpop.f32.mrb[0].mxu0
        %589 = vmatprep.mubr.f32.mxu0 0.0
        %590 = vmatmul.mubr.f32.gmra.mrb[0].mxu0 %v433
        %v591 = vpop.f32.mrb[0].mxu0
        %v592 = vadd.f32 0.0, %v591
        %v593 = vpop.f32.mrb[0].mxu0
        %594 = vmatprep.mubr.f32.mxu0 0.0
        %595 = vmatmul.mubr.f32.gmra.mrb[0].mxu0 %v434
        %v596 = vpop.f32.mrb[0].mxu0
        %v597 = vadd.f32 0.0, %v596
        %v598 = vpop.f32.mrb[0].mxu0
        %599 = vmatprep.mubr.f32.mxu0 0.0
        %600 = vmatmul.mubr.f32.gmra.mrb[0].mxu0 %v435
        %v601 = vpop.f32.mrb[0].mxu0
        %v602 = vadd.f32 0.0, %v601
        %v603 = vpop.f32.mrb[0].mxu0
        %604 = vmatprep.mubr.f32.mxu0 0.0
        %605 = vmatmul.mubr.f32.gmra.mrb[0].mxu0 %v436
        %v606 = vpop.f32.mrb[0].mxu0
        %v607 = vadd.f32 0.0, %v606
        %v608 = vpop.f32.mrb[0].mxu0
        %609 = vmatprep.mubr.f32.mxu0 0.0
        %610 = vmatmul.mubr.f32.gmra.mrb[0].mxu0 %v437
        %v611 = vpop.f32.mrb[0].mxu0
        %v612 = vadd.f32 0.0, %v611
        %v613 = vpop.f32.mrb[0].mxu0
        %614 = vmatprep.mubr.f32.mxu0 0.0
        %615 = vmatmul.mubr.f32.gmra.mrb[0].mxu0 %v438
        %v616 = vpop.f32.mrb[0].mxu0
        %v617 = vadd.f32 0.0, %v616
        %v618 = vpop.f32.mrb[0].mxu0
        %619 = vmatprep.mubr.f32.mxu0 0.0
        %620 = vmatmul.mubr.f32.gmra.mrb[0].mxu0 %v439
        %v621 = vpop.f32.mrb[0].mxu0
        %v622 = vadd.f32 0.0, %v621
        %v623 = vpop.f32.mrb[0].mxu0
        %624 = vmatprep.mubr.f32.mxu0 0.0
        %625 = vmatmul.mubr.f32.gmra.mrb[0].mxu0 %v440
        %v626 = vpop.f32.mrb[0].mxu0
        %v627 = vadd.f32 0.0, %v626
        %v628 = vpop.f32.mrb[0].mxu0
        %629 = vmatprep.mubr.f32.mxu0 0.0
        %630 = vmatmul.mubr.f32.gmra.mrb[0].mxu0 %v441
        %v631 = vpop.f32.mrb[0].mxu0
        %v632 = vadd.f32 0.0, %v631
        %v633 = vpop.f32.mrb[0].mxu0
        %634 = vmatprep.mubr.f32.mxu0 0.0
        %635 = vmatmul.mubr.f32.gmra.mrb[0].mxu0 %v442
        %v636 = vpop.f32.mrb[0].mxu0
        %v637 = vadd.f32 0.0, %v636
        %v638 = vpop.f32.mrb[0].mxu0
        %639 = vmatprep.mubr.f32.mxu0 0.0
        %640 = vmatmul.mubr.f32.gmra.mrb[0].mxu0 %v443
        %v641 = vpop.f32.mrb[0].mxu0
        %v642 = vadd.f32 0.0, %v641
        %v643 = vpop.f32.mrb[0].mxu0
        %644 = vmatprep.mubr.f32.mxu0 0.0
        %645 = vmatmul.mubr.f32.gmra.mrb[0].mxu0 %v444
        %v646 = vpop.f32.mrb[0].mxu0
        %v647 = vadd.f32 0.0, %v646
        %v648 = vpop.f32.mrb[0].mxu0
        %649 = vmatprep.mubr.f32.mxu0 0.0
        %650 = vmatmul.mubr.f32.gmra.mrb[0].mxu0 %v445
        %v651 = vpop.f32.mrb[0].mxu0
        %v652 = vadd.f32 0.0, %v651
        %v653 = vpop.f32.mrb[0].mxu0
        %654 = vmatprep.mubr.f32.mxu0 0.0
        %655 = vmatmul.mubr.f32.gmra.mrb[0].mxu0 %v446
        %v656 = vpop.f32.mrb[0].mxu0
        %v657 = vadd.f32 0.0, %v656
        %v658 = vpop.f32.mrb[0].mxu0
        %659 = vmatprep.mubr.f32.mxu0 0.0
        %660 = vmatmul.mubr.f32.gmra.mrb[0].mxu0 %v447
        %v661 = vpop.f32.mrb[0].mxu0
        %v662 = vadd.f32 0.0, %v661
        %v663 = vpop.f32.mrb[0].mxu0
        %664 = vmatprep.mubr.f32.mxu0 0.0
        %665 = vmatmul.mubr.f32.gmra.mrb[0].mxu0 %v448
        %v666 = vpop.f32.mrb[0].mxu0
        %v667 = vadd.f32 0.0, %v666
        %v668 = vpop.f32.mrb[0].mxu0
        %669 = vmatprep.mubr.f32.mxu0 0.0
        %670 = vmatmul.mubr.f32.gmra.mrb[0].mxu0 %v449
        %v671 = vpop.f32.mrb[0].mxu0
        %v672 = vadd.f32 0.0, %v671
        %v673 = vpop.f32.mrb[0].mxu0
        %674 = vmatprep.mubr.f32.mxu0 0.0
        %675 = vmatmul.mubr.f32.gmra.mrb[0].mxu0 %v450
        %v676 = vpop.f32.mrb[0].mxu0
        %v677 = vadd.f32 0.0, %v676
        %v678 = vpop.f32.mrb[0].mxu0
        %679 = vmatprep.mubr.f32.mxu0 0.0
        %680 = vmatmul.mubr.f32.gmra.mrb[0].mxu0 %v451
        %v681 = vpop.f32.mrb[0].mxu0
        %v682 = vadd.f32 0.0, %v681
        %v683 = vpop.f32.mrb[0].mxu0
        %684 = vmatprep.mubr.f32.mxu0 0.0
        %685 = vmatmul.mubr.f32.gmra.mrb[0].mxu0 %v452
        %v686 = vpop.f32.mrb[0].mxu0
        %v687 = vadd.f32 0.0, %v686
        %v688 = vpop.f32.mrb[0].mxu0
        %689 = vmatprep.mubr.f32.mxu0 0.0
        %690 = vmatmul.mubr.f32.gmra.mrb[0].mxu0 %v453
        %v691 = vpop.f32.mrb[0].mxu0
        %v692 = vadd.f32 0.0, %v691
        %v693 = vpop.f32.mrb[0].mxu0
        %694 = vdwg.mxu0
        %v695 = vld [vmem:[%s2] sm:$0x1]
        %v697 = vlaneseq
        %v698 = vshrl.u32 %v697, 7
        %v699 = vsub.s32 0, %v698
        %v700 = vrot.slane %v695, %v699
        %v702 = vmul.f32 %v537, %v700
        %v703 = vmul.f32 %v542, %v700
        %v704 = vmul.f32 %v547, %v700
        %v705 = vmul.f32 %v552, %v700
        %v706 = vmul.f32 %v557, %v700
        %v707 = vmul.f32 %v562, %v700
        %v708 = vmul.f32 %v567, %v700
        %v709 = vmul.f32 %v572, %v700
        %v710 = vmul.f32 %v577, %v700
        %v711 = vmul.f32 %v582, %v700
        %v712 = vmul.f32 %v587, %v700
        %v713 = vmul.f32 %v592, %v700
        %v714 = vmul.f32 %v597, %v700
        %v715 = vmul.f32 %v602, %v700
        %v716 = vmul.f32 %v607, %v700
        %v717 = vmul.f32 %v612, %v700
        %v718 = vmul.f32 %v617, %v700
        %v719 = vmul.f32 %v622, %v700
        %v720 = vmul.f32 %v627, %v700
        %v721 = vmul.f32 %v632, %v700
        %v722 = vmul.f32 %v637, %v700
        %v723 = vmul.f32 %v642, %v700
        %v724 = vmul.f32 %v647, %v700
        %v725 = vmul.f32 %v652, %v700
        %v726 = vmul.f32 %v657, %v700
        %v727 = vmul.f32 %v662, %v700
        %v728 = vmul.f32 %v667, %v700
        %v729 = vmul.f32 %v672, %v700
        %v730 = vmul.f32 %v677, %v700
        %v731 = vmul.f32 %v682, %v700
        %v732 = vmul.f32 %v687, %v700
        %v733 = vmul.f32 %v692, %v700
        %v734 = vld [vmem:[%s3] sm:$0x1]
        %v736 = vlaneseq
        %v737 = vshrl.u32 %v736, 7
        %v738 = vsub.s32 0, %v737
        %v739 = vrot.slane %v734, %v738
        %v741 = vadd.f32 %v702, %v739
        %v742 = vadd.f32 %v703, %v739
        %v743 = vadd.f32 %v704, %v739
        %v744 = vadd.f32 %v705, %v739
        %v745 = vadd.f32 %v706, %v739
        %v746 = vadd.f32 %v707, %v739
        %v747 = vadd.f32 %v708, %v739
        %v748 = vadd.f32 %v709, %v739
        %v749 = vadd.f32 %v710, %v739
        %v750 = vadd.f32 %v711, %v739
        %v751 = vadd.f32 %v712, %v739
        %v752 = vadd.f32 %v713, %v739
        %v753 = vadd.f32 %v714, %v739
        %v754 = vadd.f32 %v715, %v739
        %v755 = vadd.f32 %v716, %v739
        %v756 = vadd.f32 %v717, %v739
        %v757 = vadd.f32 %v718, %v739
        %v758 = vadd.f32 %v719, %v739
        %v759 = vadd.f32 %v720, %v739
        %v760 = vadd.f32 %v721, %v739
        %v761 = vadd.f32 %v722, %v739
        %v762 = vadd.f32 %v723, %v739
        %v763 = vadd.f32 %v724, %v739
        %v764 = vadd.f32 %v725, %v739
        %v765 = vadd.f32 %v726, %v739
        %v766 = vadd.f32 %v727, %v739
        %v767 = vadd.f32 %v728, %v739
        %v768 = vadd.f32 %v729, %v739
        %v769 = vadd.f32 %v730, %v739
        %v770 = vadd.f32 %v731, %v739
        %v771 = vadd.f32 %v732, %v739
        %v772 = vadd.f32 %v733, %v739
        %v773 = vmax.f32 %v741, 0.0
        %v774 = vmax.f32 %v742, 0.0
        %v775 = vmax.f32 %v743, 0.0
        %v776 = vmax.f32 %v744, 0.0
        %v777 = vmax.f32 %v745, 0.0
        %v778 = vmax.f32 %v746, 0.0
        %v779 = vmax.f32 %v747, 0.0
        %v780 = vmax.f32 %v748, 0.0
        %v781 = vmax.f32 %v749, 0.0
        %v782 = vmax.f32 %v750, 0.0
        %v783 = vmax.f32 %v751, 0.0
        %v784 = vmax.f32 %v752, 0.0
        %v785 = vmax.f32 %v753, 0.0
        %v786 = vmax.f32 %v754, 0.0
        %v787 = vmax.f32 %v755, 0.0
        %v788 = vmax.f32 %v756, 0.0
        %v789 = vmax.f32 %v757, 0.0
        %v790 = vmax.f32 %v758, 0.0
        %v791 = vmax.f32 %v759, 0.0
        %v792 = vmax.f32 %v760, 0.0
        %v793 = vmax.f32 %v761, 0.0
        %v794 = vmax.f32 %v762, 0.0
        %v795 = vmax.f32 %v763, 0.0
        %v796 = vmax.f32 %v764, 0.0
        %v797 = vmax.f32 %v765, 0.0
        %v798 = vmax.f32 %v766, 0.0
        %v799 = vmax.f32 %v767, 0.0
        %v800 = vmax.f32 %v768, 0.0
        %v801 = vmax.f32 %v769, 0.0
        %v802 = vmax.f32 %v770, 0.0
        %v803 = vmax.f32 %v771, 0.0
        %v804 = vmax.f32 %v772, 0.0
        %s805 = scalar_lea.vmem [#allocation2], 32
        %806 = vst [vmem:[%s805 + $0x8] sm:$0xff] %v773
        %807 = vst [vmem:[%s805 + $0x10] sm:$0xff] %v774
        %808 = vst [vmem:[%s805 + $0x28] sm:$0xff] %v775
        %809 = vst [vmem:[%s805 + $0x30] sm:$0xff] %v776
        %810 = vst [vmem:[%s805 + $0x48] sm:$0xff] %v777
        %811 = vst [vmem:[%s805 + $0x50] sm:$0xff] %v778
        %812 = vst [vmem:[%s805 + $0x68] sm:$0xff] %v779
        %813 = vst [vmem:[%s805 + $0x70] sm:$0xff] %v780
        %814 = vst [vmem:[%s805 + $0x88] sm:$0xff] %v781
        %815 = vst [vmem:[%s805 + $0x90] sm:$0xff] %v782
        %816 = vst [vmem:[%s805 + $0xa8] sm:$0xff] %v783
        %817 = vst [vmem:[%s805 + $0xb0] sm:$0xff] %v784
        %818 = vst [vmem:[%s805 + $0xc8] sm:$0xff] %v785
        %819 = vst [vmem:[%s805 + $0xd0] sm:$0xff] %v786
        %820 = vst [vmem:[%s805 + $0xe8] sm:$0xff] %v787
        %821 = vst [vmem:[%s805 + $0xf0] sm:$0xff] %v788
        %822 = vst [vmem:[%s805 + $0x108] sm:$0xff] %v789
        %823 = vst [vmem:[%s805 + $0x110] sm:$0xff] %v790
        %824 = vst [vmem:[%s805 + $0x128] sm:$0xff] %v791
        %825 = vst [vmem:[%s805 + $0x130] sm:$0xff] %v792
        %826 = vst [vmem:[%s805 + $0x148] sm:$0xff] %v793
        %827 = vst [vmem:[%s805 + $0x150] sm:$0xff] %v794
        %828 = vst [vmem:[%s805 + $0x168] sm:$0xff] %v795
        %829 = vst [vmem:[%s805 + $0x170] sm:$0xff] %v796
        %830 = vst [vmem:[%s805 + $0x188] sm:$0xff] %v797
        %831 = vst [vmem:[%s805 + $0x190] sm:$0xff] %v798
        %832 = vst [vmem:[%s805 + $0x1a8] sm:$0xff] %v799
        %833 = vst [vmem:[%s805 + $0x1b0] sm:$0xff] %v800
        %834 = vst [vmem:[%s805 + $0x1c8] sm:$0xff] %v801
        %835 = vst [vmem:[%s805 + $0x1d0] sm:$0xff] %v802
        %836 = vst [vmem:[%s805 + $0x1e8] sm:$0xff] %v803
        %837 = vst [vmem:[%s805 + $0x1f0] sm:$0xff] %v804
        %838 = vst [vmem:[#allocation2] sm:$0xff] 0.0
        %839 = vst [vmem:[#allocation2 + $0x8] sm:$0xff] 0.0
        %840 = vst [vmem:[#allocation2 + $0x10] sm:$0xff] 0.0
        %841 = vst [vmem:[#allocation2 + $0x18] sm:$0xff] 0.0
        %s842 = scalar_lea.vmem [#allocation2], 544
        %843 = vst [vmem:[%s842] sm:$0xff] 0.0
        %844 = vst [vmem:[%s842 + $0x8] sm:$0xff] 0.0
        %845 = vst [vmem:[%s842 + $0x10] sm:$0xff] 0.0
        %846 = vst [vmem:[%s842 + $0x18] sm:$0xff] 0.0
        %847 = vst [vmem:[%s805 + $0x7] sm:$0x1] 0.0
        %848 = vst [vmem:[%s805 + $0x27] sm:$0x1] 0.0
        %849 = vst [vmem:[%s805 + $0x47] sm:$0x1] 0.0
        %850 = vst [vmem:[%s805 + $0x67] sm:$0x1] 0.0
        %851 = vst [vmem:[%s805 + $0x87] sm:$0x1] 0.0
        %852 = vst [vmem:[%s805 + $0xa7] sm:$0x1] 0.0
        %853 = vst [vmem:[%s805 + $0xc7] sm:$0x1] 0.0
        %854 = vst [vmem:[%s805 + $0xe7] sm:$0x1] 0.0
        %855 = vst [vmem:[%s805 + $0x107] sm:$0x1] 0.0
        %856 = vst [vmem:[%s805 + $0x127] sm:$0x1] 0.0
        %857 = vst [vmem:[%s805 + $0x147] sm:$0x1] 0.0
        %858 = vst [vmem:[%s805 + $0x167] sm:$0x1] 0.0
        %859 = vst [vmem:[%s805 + $0x187] sm:$0x1] 0.0
        %860 = vst [vmem:[%s805 + $0x1a7] sm:$0x1] 0.0
        %861 = vst [vmem:[%s805 + $0x1c7] sm:$0x1] 0.0
        %862 = vst [vmem:[%s805 + $0x1e7] sm:$0x1] 0.0
        %863 = vst [vmem:[%s805 + $0x18] sm:$0x1] 0.0
        %864 = vst [vmem:[%s805 + $0x38] sm:$0x1] 0.0
        %865 = vst [vmem:[%s805 + $0x58] sm:$0x1] 0.0
        %866 = vst [vmem:[%s805 + $0x78] sm:$0x1] 0.0
        %867 = vst [vmem:[%s805 + $0x98] sm:$0x1] 0.0
        %868 = vst [vmem:[%s805 + $0xb8] sm:$0x1] 0.0
        %869 = vst [vmem:[%s805 + $0xd8] sm:$0x1] 0.0
        %870 = vst [vmem:[%s805 + $0xf8] sm:$0x1] 0.0
        %871 = vst [vmem:[%s805 + $0x118] sm:$0x1] 0.0
        %872 = vst [vmem:[%s805 + $0x138] sm:$0x1] 0.0
        %873 = vst [vmem:[%s805 + $0x158] sm:$0x1] 0.0
        %874 = vst [vmem:[%s805 + $0x178] sm:$0x1] 0.0
        %875 = vst [vmem:[%s805 + $0x198] sm:$0x1] 0.0
        %876 = vst [vmem:[%s805 + $0x1b8] sm:$0x1] 0.0
        %877 = vst [vmem:[%s805 + $0x1d8] sm:$0x1] 0.0
        %878 = vst [vmem:[%s805 + $0x1f8] sm:$0x1] 0.0
        %v879 = vld [vmem:[#allocation2 + $0x7] sm:$0xff]
        %v880 = vld [vmem:[#allocation2 + $0xf] sm:$0xff]
        %v881 = vld [vmem:[#allocation2 + $0x27] sm:$0xff]
        %v882 = vld [vmem:[#allocation2 + $0x2f] sm:$0xff]
        %v883 = vld [vmem:[#allocation2 + $0x47] sm:$0xff]
        %v884 = vld [vmem:[#allocation2 + $0x4f] sm:$0xff]
        %v885 = vld [vmem:[#allocation2 + $0x67] sm:$0xff]
        %v886 = vld [vmem:[#allocation2 + $0x6f] sm:$0xff]
        %v887 = vld [vmem:[#allocation2 + $0x87] sm:$0xff]
        %v888 = vld [vmem:[#allocation2 + $0x8f] sm:$0xff]
        %v889 = vld [vmem:[#allocation2 + $0xa7] sm:$0xff]
        %v890 = vld [vmem:[#allocation2 + $0xaf] sm:$0xff]
        %v891 = vld [vmem:[#allocation2 + $0xc7] sm:$0xff]
        %v892 = vld [vmem:[#allocation2 + $0xcf] sm:$0xff]
        %v893 = vld [vmem:[#allocation2 + $0xe7] sm:$0xff]
        %v894 = vld [vmem:[#allocation2 + $0xef] sm:$0xff]
        %v895 = vld [vmem:[#allocation2 + $0x107] sm:$0xff]
        %v896 = vld [vmem:[#allocation2 + $0x10f] sm:$0xff]
        %v897 = vld [vmem:[#allocation2 + $0x127] sm:$0xff]
        %v898 = vld [vmem:[#allocation2 + $0x12f] sm:$0xff]
        %v899 = vld [vmem:[#allocation2 + $0x147] sm:$0xff]
        %v900 = vld [vmem:[#allocation2 + $0x14f] sm:$0xff]
        %v901 = vld [vmem:[#allocation2 + $0x167] sm:$0xff]
        %v902 = vld [vmem:[#allocation2 + $0x16f] sm:$0xff]
        %v903 = vld [vmem:[#allocation2 + $0x187] sm:$0xff]
        %v904 = vld [vmem:[#allocation2 + $0x18f] sm:$0xff]
        %v905 = vld [vmem:[#allocation2 + $0x1a7] sm:$0xff]
        %v906 = vld [vmem:[#allocation2 + $0x1af] sm:$0xff]
        %v907 = vld [vmem:[#allocation2 + $0x1c7] sm:$0xff]
        %v908 = vld [vmem:[#allocation2 + $0x1cf] sm:$0xff]
        %v909 = vld [vmem:[#allocation2 + $0x1e7] sm:$0xff]
        %v910 = vld [vmem:[#allocation2 + $0x1ef] sm:$0xff]
        %v911 = vld [vmem:[#allocation2 + $0x8] sm:$0xff]
        %v912 = vld [vmem:[#allocation2 + $0x10] sm:$0xff]
        %v913 = vld [vmem:[#allocation2 + $0x28] sm:$0xff]
        %v914 = vld [vmem:[#allocation2 + $0x30] sm:$0xff]
        %v915 = vld [vmem:[#allocation2 + $0x48] sm:$0xff]
        %v916 = vld [vmem:[#allocation2 + $0x50] sm:$0xff]
        %v917 = vld [vmem:[#allocation2 + $0x68] sm:$0xff]
        %v918 = vld [vmem:[#allocation2 + $0x70] sm:$0xff]
        %v919 = vld [vmem:[#allocation2 + $0x88] sm:$0xff]
        %v920 = vld [vmem:[#allocation2 + $0x90] sm:$0xff]
        %v921 = vld [vmem:[#allocation2 + $0xa8] sm:$0xff]
        %v922 = vld [vmem:[#allocation2 + $0xb0] sm:$0xff]
        %v923 = vld [vmem:[#allocation2 + $0xc8] sm:$0xff]
        %v924 = vld [vmem:[#allocation2 + $0xd0] sm:$0xff]
        %v925 = vld [vmem:[#allocation2 + $0xe8] sm:$0xff]
        %v926 = vld [vmem:[#allocation2 + $0xf0] sm:$0xff]
        %v927 = vld [vmem:[#allocation2 + $0x108] sm:$0xff]
        %v928 = vld [vmem:[#allocation2 + $0x110] sm:$0xff]
        %v929 = vld [vmem:[#allocation2 + $0x128] sm:$0xff]
        %v930 = vld [vmem:[#allocation2 + $0x130] sm:$0xff]
        %v931 = vld [vmem:[#allocation2 + $0x148] sm:$0xff]
        %v932 = vld [vmem:[#allocation2 + $0x150] sm:$0xff]
        %v933 = vld [vmem:[#allocation2 + $0x168] sm:$0xff]
        %v934 = vld [vmem:[#allocation2 + $0x170] sm:$0xff]
        %v935 = vld [vmem:[#allocation2 + $0x188] sm:$0xff]
        %v936 = vld [vmem:[#allocation2 + $0x190] sm:$0xff]
        %v937 = vld [vmem:[#allocation2 + $0x1a8] sm:$0xff]
        %v938 = vld [vmem:[#allocation2 + $0x1b0] sm:$0xff]
        %v939 = vld [vmem:[#allocation2 + $0x1c8] sm:$0xff]
        %v940 = vld [vmem:[#allocation2 + $0x1d0] sm:$0xff]
        %v941 = vld [vmem:[#allocation2 + $0x1e8] sm:$0xff]
        %v942 = vld [vmem:[#allocation2 + $0x1f0] sm:$0xff]
        %v943 = vld [vmem:[#allocation2 + $0x9] sm:$0xff]
        %v944 = vld [vmem:[#allocation2 + $0x11] sm:$0xff]
        %v945 = vld [vmem:[#allocation2 + $0x29] sm:$0xff]
        %v946 = vld [vmem:[#allocation2 + $0x31] sm:$0xff]
        %v947 = vld [vmem:[#allocation2 + $0x49] sm:$0xff]
        %v948 = vld [vmem:[#allocation2 + $0x51] sm:$0xff]
        %v949 = vld [vmem:[#allocation2 + $0x69] sm:$0xff]
        %v950 = vld [vmem:[#allocation2 + $0x71] sm:$0xff]
        %v951 = vld [vmem:[#allocation2 + $0x89] sm:$0xff]
        %v952 = vld [vmem:[#allocation2 + $0x91] sm:$0xff]
        %v953 = vld [vmem:[#allocation2 + $0xa9] sm:$0xff]
        %v954 = vld [vmem:[#allocation2 + $0xb1] sm:$0xff]
        %v955 = vld [vmem:[#allocation2 + $0xc9] sm:$0xff]
        %v956 = vld [vmem:[#allocation2 + $0xd1] sm:$0xff]
        %v957 = vld [vmem:[#allocation2 + $0xe9] sm:$0xff]
        %v958 = vld [vmem:[#allocation2 + $0xf1] sm:$0xff]
        %v959 = vld [vmem:[#allocation2 + $0x109] sm:$0xff]
        %v960 = vld [vmem:[#allocation2 + $0x111] sm:$0xff]
        %v961 = vld [vmem:[#allocation2 + $0x129] sm:$0xff]
        %v962 = vld [vmem:[#allocation2 + $0x131] sm:$0xff]
        %v963 = vld [vmem:[#allocation2 + $0x149] sm:$0xff]
        %v964 = vld [vmem:[#allocation2 + $0x151] sm:$0xff]
        %v965 = vld [vmem:[#allocation2 + $0x169] sm:$0xff]
        %v966 = vld [vmem:[#allocation2 + $0x171] sm:$0xff]
        %v967 = vld [vmem:[#allocation2 + $0x189] sm:$0xff]
        %v968 = vld [vmem:[#allocation2 + $0x191] sm:$0xff]
        %v969 = vld [vmem:[#allocation2 + $0x1a9] sm:$0xff]
        %v970 = vld [vmem:[#allocation2 + $0x1b1] sm:$0xff]
        %v971 = vld [vmem:[#allocation2 + $0x1c9] sm:$0xff]
        %v972 = vld [vmem:[#allocation2 + $0x1d1] sm:$0xff]
        %v973 = vld [vmem:[#allocation2 + $0x1e9] sm:$0xff]
        %v974 = vld [vmem:[#allocation2 + $0x1f1] sm:$0xff]
        %v975 = vld [vmem:[%s805 + $0x7] sm:$0xff]
        %v976 = vld [vmem:[%s805 + $0xf] sm:$0xff]
        %v977 = vld [vmem:[%s805 + $0x27] sm:$0xff]
        %v978 = vld [vmem:[%s805 + $0x2f] sm:$0xff]
        %v979 = vld [vmem:[%s805 + $0x47] sm:$0xff]
        %v980 = vld [vmem:[%s805 + $0x4f] sm:$0xff]
        %v981 = vld [vmem:[%s805 + $0x67] sm:$0xff]
        %v982 = vld [vmem:[%s805 + $0x6f] sm:$0xff]
        %v983 = vld [vmem:[%s805 + $0x87] sm:$0xff]
        %v984 = vld [vmem:[%s805 + $0x8f] sm:$0xff]
        %v985 = vld [vmem:[%s805 + $0xa7] sm:$0xff]
        %v986 = vld [vmem:[%s805 + $0xaf] sm:$0xff]
        %v987 = vld [vmem:[%s805 + $0xc7] sm:$0xff]
        %v988 = vld [vmem:[%s805 + $0xcf] sm:$0xff]
        %v989 = vld [vmem:[%s805 + $0xe7] sm:$0xff]
        %v990 = vld [vmem:[%s805 + $0xef] sm:$0xff]
        %v991 = vld [vmem:[%s805 + $0x107] sm:$0xff]
        %v992 = vld [vmem:[%s805 + $0x10f] sm:$0xff]
        %v993 = vld [vmem:[%s805 + $0x127] sm:$0xff]
        %v994 = vld [vmem:[%s805 + $0x12f] sm:$0xff]
        %v995 = vld [vmem:[%s805 + $0x147] sm:$0xff]
        %v996 = vld [vmem:[%s805 + $0x14f] sm:$0xff]
        %v997 = vld [vmem:[%s805 + $0x167] sm:$0xff]
        %v998 = vld [vmem:[%s805 + $0x16f] sm:$0xff]
        %v999 = vld [vmem:[%s805 + $0x187] sm:$0xff]
        %v1000 = vld [vmem:[%s805 + $0x18f] sm:$0xff]
        %v1001 = vld [vmem:[%s805 + $0x1a7] sm:$0xff]
        %v1002 = vld [vmem:[%s805 + $0x1af] sm:$0xff]
        %v1003 = vld [vmem:[%s805 + $0x1c7] sm:$0xff]
        %v1004 = vld [vmem:[%s805 + $0x1cf] sm:$0xff]
        %v1005 = vld [vmem:[%s805 + $0x1e7] sm:$0xff]
        %v1006 = vld [vmem:[%s805 + $0x1ef] sm:$0xff]
        %v1007 = vld [vmem:[%s805 + $0x8] sm:$0xff]
        %v1008 = vld [vmem:[%s805 + $0x10] sm:$0xff]
        %v1009 = vld [vmem:[%s805 + $0x28] sm:$0xff]
        %v1010 = vld [vmem:[%s805 + $0x30] sm:$0xff]
        %v1011 = vld [vmem:[%s805 + $0x48] sm:$0xff]
        %v1012 = vld [vmem:[%s805 + $0x50] sm:$0xff]
        %v1013 = vld [vmem:[%s805 + $0x68] sm:$0xff]
        %v1014 = vld [vmem:[%s805 + $0x70] sm:$0xff]
        %v1015 = vld [vmem:[%s805 + $0x88] sm:$0xff]
        %v1016 = vld [vmem:[%s805 + $0x90] sm:$0xff]
        %v1017 = vld [vmem:[%s805 + $0xa8] sm:$0xff]
        %v1018 = vld [vmem:[%s805 + $0xb0] sm:$0xff]
        %v1019 = vld [vmem:[%s805 + $0xc8] sm:$0xff]
        %v1020 = vld [vmem:[%s805 + $0xd0] sm:$0xff]
        %v1021 = vld [vmem:[%s805 + $0xe8] sm:$0xff]
        %v1022 = vld [vmem:[%s805 + $0xf0] sm:$0xff]
        %v1023 = vld [vmem:[%s805 + $0x108] sm:$0xff]
        %v1024 = vld [vmem:[%s805 + $0x110] sm:$0xff]
        %v1025 = vld [vmem:[%s805 + $0x128] sm:$0xff]
        %v1026 = vld [vmem:[%s805 + $0x130] sm:$0xff]
        %v1027 = vld [vmem:[%s805 + $0x148] sm:$0xff]
        %v1028 = vld [vmem:[%s805 + $0x150] sm:$0xff]
        %v1029 = vld [vmem:[%s805 + $0x168] sm:$0xff]
        %v1030 = vld [vmem:[%s805 + $0x170] sm:$0xff]
        %v1031 = vld [vmem:[%s805 + $0x188] sm:$0xff]
        %v1032 = vld [vmem:[%s805 + $0x190] sm:$0xff]
        %v1033 = vld [vmem:[%s805 + $0x1a8] sm:$0xff]
        %v1034 = vld [vmem:[%s805 + $0x1b0] sm:$0xff]
        %v1035 = vld [vmem:[%s805 + $0x1c8] sm:$0xff]
        %v1036 = vld [vmem:[%s805 + $0x1d0] sm:$0xff]
        %v1037 = vld [vmem:[%s805 + $0x1e8] sm:$0xff]
        %v1038 = vld [vmem:[%s805 + $0x1f0] sm:$0xff]
        %v1039 = vld [vmem:[%s805 + $0x9] sm:$0xff]
        %v1040 = vld [vmem:[%s805 + $0x11] sm:$0xff]
        %v1041 = vld [vmem:[%s805 + $0x29] sm:$0xff]
        %v1042 = vld [vmem:[%s805 + $0x31] sm:$0xff]
        %v1043 = vld [vmem:[%s805 + $0x49] sm:$0xff]
        %v1044 = vld [vmem:[%s805 + $0x51] sm:$0xff]
        %v1045 = vld [vmem:[%s805 + $0x69] sm:$0xff]
        %v1046 = vld [vmem:[%s805 + $0x71] sm:$0xff]
        %v1047 = vld [vmem:[%s805 + $0x89] sm:$0xff]
        %v1048 = vld [vmem:[%s805 + $0x91] sm:$0xff]
        %v1049 = vld [vmem:[%s805 + $0xa9] sm:$0xff]
        %v1050 = vld [vmem:[%s805 + $0xb1] sm:$0xff]
        %v1051 = vld [vmem:[%s805 + $0xc9] sm:$0xff]
        %v1052 = vld [vmem:[%s805 + $0xd1] sm:$0xff]
        %v1053 = vld [vmem:[%s805 + $0xe9] sm:$0xff]
        %v1054 = vld [vmem:[%s805 + $0xf1] sm:$0xff]
        %v1055 = vld [vmem:[%s805 + $0x109] sm:$0xff]
        %v1056 = vld [vmem:[%s805 + $0x111] sm:$0xff]
        %v1057 = vld [vmem:[%s805 + $0x129] sm:$0xff]
        %v1058 = vld [vmem:[%s805 + $0x131] sm:$0xff]
        %v1059 = vld [vmem:[%s805 + $0x149] sm:$0xff]
        %v1060 = vld [vmem:[%s805 + $0x151] sm:$0xff]
        %v1061 = vld [vmem:[%s805 + $0x169] sm:$0xff]
        %v1062 = vld [vmem:[%s805 + $0x171] sm:$0xff]
        %v1063 = vld [vmem:[%s805 + $0x189] sm:$0xff]
        %v1064 = vld [vmem:[%s805 + $0x191] sm:$0xff]
        %v1065 = vld [vmem:[%s805 + $0x1a9] sm:$0xff]
        %v1066 = vld [vmem:[%s805 + $0x1b1] sm:$0xff]
        %v1067 = vld [vmem:[%s805 + $0x1c9] sm:$0xff]
        %v1068 = vld [vmem:[%s805 + $0x1d1] sm:$0xff]
        %v1069 = vld [vmem:[%s805 + $0x1e9] sm:$0xff]
        %v1070 = vld [vmem:[%s805 + $0x1f1] sm:$0xff]
        %s1071 = scalar_lea.vmem [#allocation2], 64
        %v1072 = vld [vmem:[%s1071 + $0x7] sm:$0xff]
        %v1073 = vld [vmem:[%s1071 + $0xf] sm:$0xff]
        %v1074 = vld [vmem:[%s1071 + $0x27] sm:$0xff]
        %v1075 = vld [vmem:[%s1071 + $0x2f] sm:$0xff]
        %v1076 = vld [vmem:[%s1071 + $0x47] sm:$0xff]
        %v1077 = vld [vmem:[%s1071 + $0x4f] sm:$0xff]
        %v1078 = vld [vmem:[%s1071 + $0x67] sm:$0xff]
        %v1079 = vld [vmem:[%s1071 + $0x6f] sm:$0xff]
        %v1080 = vld [vmem:[%s1071 + $0x87] sm:$0xff]
        %v1081 = vld [vmem:[%s1071 + $0x8f] sm:$0xff]
        %v1082 = vld [vmem:[%s1071 + $0xa7] sm:$0xff]
        %v1083 = vld [vmem:[%s1071 + $0xaf] sm:$0xff]
        %v1084 = vld [vmem:[%s1071 + $0xc7] sm:$0xff]
        %v1085 = vld [vmem:[%s1071 + $0xcf] sm:$0xff]
        %v1086 = vld [vmem:[%s1071 + $0xe7] sm:$0xff]
        %v1087 = vld [vmem:[%s1071 + $0xef] sm:$0xff]
        %v1088 = vld [vmem:[%s1071 + $0x107] sm:$0xff]
        %v1089 = vld [vmem:[%s1071 + $0x10f] sm:$0xff]
        %v1090 = vld [vmem:[%s1071 + $0x127] sm:$0xff]
        %v1091 = vld [vmem:[%s1071 + $0x12f] sm:$0xff]
        %v1092 = vld [vmem:[%s1071 + $0x147] sm:$0xff]
        %v1093 = vld [vmem:[%s1071 + $0x14f] sm:$0xff]
        %v1094 = vld [vmem:[%s1071 + $0x167] sm:$0xff]
        %v1095 = vld [vmem:[%s1071 + $0x16f] sm:$0xff]
        %v1096 = vld [vmem:[%s1071 + $0x187] sm:$0xff]
        %v1097 = vld [vmem:[%s1071 + $0x18f] sm:$0xff]
        %v1098 = vld [vmem:[%s1071 + $0x1a7] sm:$0xff]
        %v1099 = vld [vmem:[%s1071 + $0x1af] sm:$0xff]
        %v1100 = vld [vmem:[%s1071 + $0x1c7] sm:$0xff]
        %v1101 = vld [vmem:[%s1071 + $0x1cf] sm:$0xff]
        %v1102 = vld [vmem:[%s1071 + $0x1e7] sm:$0xff]
        %v1103 = vld [vmem:[%s1071 + $0x1ef] sm:$0xff]
        %v1104 = vld [vmem:[%s1071 + $0x8] sm:$0xff]
        %v1105 = vld [vmem:[%s1071 + $0x10] sm:$0xff]
        %v1106 = vld [vmem:[%s1071 + $0x28] sm:$0xff]
        %v1107 = vld [vmem:[%s1071 + $0x30] sm:$0xff]
        %v1108 = vld [vmem:[%s1071 + $0x48] sm:$0xff]
        %v1109 = vld [vmem:[%s1071 + $0x50] sm:$0xff]
        %v1110 = vld [vmem:[%s1071 + $0x68] sm:$0xff]
        %v1111 = vld [vmem:[%s1071 + $0x70] sm:$0xff]
        %v1112 = vld [vmem:[%s1071 + $0x88] sm:$0xff]
        %v1113 = vld [vmem:[%s1071 + $0x90] sm:$0xff]
        %v1114 = vld [vmem:[%s1071 + $0xa8] sm:$0xff]
        %v1115 = vld [vmem:[%s1071 + $0xb0] sm:$0xff]
        %v1116 = vld [vmem:[%s1071 + $0xc8] sm:$0xff]
        %v1117 = vld [vmem:[%s1071 + $0xd0] sm:$0xff]
        %v1118 = vld [vmem:[%s1071 + $0xe8] sm:$0xff]
        %v1119 = vld [vmem:[%s1071 + $0xf0] sm:$0xff]
        %v1120 = vld [vmem:[%s1071 + $0x108] sm:$0xff]
        %v1121 = vld [vmem:[%s1071 + $0x110] sm:$0xff]
        %v1122 = vld [vmem:[%s1071 + $0x128] sm:$0xff]
        %v1123 = vld [vmem:[%s1071 + $0x130] sm:$0xff]
        %v1124 = vld [vmem:[%s1071 + $0x148] sm:$0xff]
        %v1125 = vld [vmem:[%s1071 + $0x150] sm:$0xff]
        %v1126 = vld [vmem:[%s1071 + $0x168] sm:$0xff]
        %v1127 = vld [vmem:[%s1071 + $0x170] sm:$0xff]
        %v1128 = vld [vmem:[%s1071 + $0x188] sm:$0xff]
        %v1129 = vld [vmem:[%s1071 + $0x190] sm:$0xff]
        %v1130 = vld [vmem:[%s1071 + $0x1a8] sm:$0xff]
        %v1131 = vld [vmem:[%s1071 + $0x1b0] sm:$0xff]
        %v1132 = vld [vmem:[%s1071 + $0x1c8] sm:$0xff]
        %v1133 = vld [vmem:[%s1071 + $0x1d0] sm:$0xff]
        %v1134 = vld [vmem:[%s1071 + $0x1e8] sm:$0xff]
        %v1135 = vld [vmem:[%s1071 + $0x1f0] sm:$0xff]
        %v1136 = vld [vmem:[%s1071 + $0x9] sm:$0xff]
        %v1137 = vld [vmem:[%s1071 + $0x11] sm:$0xff]
        %v1138 = vld [vmem:[%s1071 + $0x29] sm:$0xff]
        %v1139 = vld [vmem:[%s1071 + $0x31] sm:$0xff]
        %v1140 = vld [vmem:[%s1071 + $0x49] sm:$0xff]
        %v1141 = vld [vmem:[%s1071 + $0x51] sm:$0xff]
        %v1142 = vld [vmem:[%s1071 + $0x69] sm:$0xff]
        %v1143 = vld [vmem:[%s1071 + $0x71] sm:$0xff]
        %v1144 = vld [vmem:[%s1071 + $0x89] sm:$0xff]
        %v1145 = vld [vmem:[%s1071 + $0x91] sm:$0xff]
        %v1146 = vld [vmem:[%s1071 + $0xa9] sm:$0xff]
        %v1147 = vld [vmem:[%s1071 + $0xb1] sm:$0xff]
        %v1148 = vld [vmem:[%s1071 + $0xc9] sm:$0xff]
        %v1149 = vld [vmem:[%s1071 + $0xd1] sm:$0xff]
        %v1150 = vld [vmem:[%s1071 + $0xe9] sm:$0xff]
        %v1151 = vld [vmem:[%s1071 + $0xf1] sm:$0xff]
        %v1152 = vld [vmem:[%s1071 + $0x109] sm:$0xff]
        %v1153 = vld [vmem:[%s1071 + $0x111] sm:$0xff]
        %v1154 = vld [vmem:[%s1071 + $0x129] sm:$0xff]
        %v1155 = vld [vmem:[%s1071 + $0x131] sm:$0xff]
        %v1156 = vld [vmem:[%s1071 + $0x149] sm:$0xff]
        %v1157 = vld [vmem:[%s1071 + $0x151] sm:$0xff]
        %v1158 = vld [vmem:[%s1071 + $0x169] sm:$0xff]
        %v1159 = vld [vmem:[%s1071 + $0x171] sm:$0xff]
        %v1160 = vld [vmem:[%s1071 + $0x189] sm:$0xff]
        %v1161 = vld [vmem:[%s1071 + $0x191] sm:$0xff]
        %v1162 = vld [vmem:[%s1071 + $0x1a9] sm:$0xff]
        %v1163 = vld [vmem:[%s1071 + $0x1b1] sm:$0xff]
        %v1164 = vld [vmem:[%s1071 + $0x1c9] sm:$0xff]
        %v1165 = vld [vmem:[%s1071 + $0x1d1] sm:$0xff]
        %v1166 = vld [vmem:[%s1071 + $0x1e9] sm:$0xff]
        %v1167 = vld [vmem:[%s1071 + $0x1f1] sm:$0xff]
        %v1168 = vld [vmem:[#allocation8] sm:$0xff]
        %v1169 = vld [vmem:[#allocation8 + $0x8] sm:$0xff]
        %v1170 = vld [vmem:[#allocation8 + $0x10] sm:$0xff]
        %v1171 = vld [vmem:[#allocation8 + $0x18] sm:$0xff]
        %v1172 = vld [vmem:[#allocation8 + $0x20] sm:$0xff]
        %v1173 = vld [vmem:[#allocation8 + $0x28] sm:$0xff]
        %v1174 = vld [vmem:[#allocation8 + $0x30] sm:$0xff]
        %v1175 = vld [vmem:[#allocation8 + $0x38] sm:$0xff]
        %v1176 = vld [vmem:[#allocation8 + $0x40] sm:$0xff]
        %v1177 = vld [vmem:[#allocation8 + $0x48] sm:$0xff]
        %v1178 = vld [vmem:[#allocation8 + $0x50] sm:$0xff]
        %v1179 = vld [vmem:[#allocation8 + $0x58] sm:$0xff]
        %v1180 = vld [vmem:[#allocation8 + $0x60] sm:$0xff]
        %v1181 = vld [vmem:[#allocation8 + $0x68] sm:$0xff]
        %v1182 = vld [vmem:[#allocation8 + $0x70] sm:$0xff]
        %v1183 = vld [vmem:[#allocation8 + $0x78] sm:$0xff]
        %v1184 = vld [vmem:[#allocation8 + $0x80] sm:$0xff]
        %v1185 = vld [vmem:[#allocation8 + $0x88] sm:$0xff]
        %v1186 = vld [vmem:[#allocation8 + $0x90] sm:$0xff]
        %v1187 = vld [vmem:[#allocation8 + $0x98] sm:$0xff]
        %v1188 = vld [vmem:[#allocation8 + $0xa0] sm:$0xff]
        %v1189 = vld [vmem:[#allocation8 + $0xa8] sm:$0xff]
        %v1190 = vld [vmem:[#allocation8 + $0xb0] sm:$0xff]
        %v1191 = vld [vmem:[#allocation8 + $0xb8] sm:$0xff]
        %v1192 = vld [vmem:[#allocation8 + $0xc0] sm:$0xff]
        %v1193 = vld [vmem:[#allocation8 + $0xc8] sm:$0xff]
        %v1194 = vld [vmem:[#allocation8 + $0xd0] sm:$0xff]
        %v1195 = vld [vmem:[#allocation8 + $0xd8] sm:$0xff]
        %v1196 = vld [vmem:[#allocation8 + $0xe0] sm:$0xff]
        %v1197 = vld [vmem:[#allocation8 + $0xe8] sm:$0xff]
        %v1198 = vld [vmem:[#allocation8 + $0xf0] sm:$0xff]
        %v1199 = vld [vmem:[#allocation8 + $0xf8] sm:$0xff]
        %v1200 = vld [vmem:[#allocation8 + $0x100] sm:$0xff]
        %v1201 = vld [vmem:[#allocation8 + $0x108] sm:$0xff]
        %v1202 = vld [vmem:[#allocation8 + $0x110] sm:$0xff]
        %v1203 = vld [vmem:[#allocation8 + $0x118] sm:$0xff]
        %v1204 = vld [vmem:[#allocation8 + $0x120] sm:$0xff]
        %v1205 = vld [vmem:[#allocation8 + $0x128] sm:$0xff]
        %v1206 = vld [vmem:[#allocation8 + $0x130] sm:$0xff]
        %v1207 = vld [vmem:[#allocation8 + $0x138] sm:$0xff]
        %v1208 = vld [vmem:[#allocation8 + $0x140] sm:$0xff]
        %v1209 = vld [vmem:[#allocation8 + $0x148] sm:$0xff]
        %v1210 = vld [vmem:[#allocation8 + $0x150] sm:$0xff]
        %v1211 = vld [vmem:[#allocation8 + $0x158] sm:$0xff]
        %v1212 = vld [vmem:[#allocation8 + $0x160] sm:$0xff]
        %v1213 = vld [vmem:[#allocation8 + $0x168] sm:$0xff]
        %v1214 = vld [vmem:[#allocation8 + $0x170] sm:$0xff]
        %v1215 = vld [vmem:[#allocation8 + $0x178] sm:$0xff]
        %v1216 = vld [vmem:[#allocation8 + $0x180] sm:$0xff]
        %v1217 = vld [vmem:[#allocation8 + $0x188] sm:$0xff]
        %v1218 = vld [vmem:[#allocation8 + $0x190] sm:$0xff]
        %v1219 = vld [vmem:[#allocation8 + $0x198] sm:$0xff]
        %v1220 = vld [vmem:[#allocation8 + $0x1a0] sm:$0xff]
        %v1221 = vld [vmem:[#allocation8 + $0x1a8] sm:$0xff]
        %v1222 = vld [vmem:[#allocation8 + $0x1b0] sm:$0xff]
        %v1223 = vld [vmem:[#allocation8 + $0x1b8] sm:$0xff]
        %v1224 = vld [vmem:[#allocation8 + $0x1c0] sm:$0xff]
        %v1225 = vld [vmem:[#allocation8 + $0x1c8] sm:$0xff]
        %v1226 = vld [vmem:[#allocation8 + $0x1d0] sm:$0xff]
        %v1227 = vld [vmem:[#allocation8 + $0x1d8] sm:$0xff]
        %v1228 = vld [vmem:[#allocation8 + $0x1e0] sm:$0xff]
        %v1229 = vld [vmem:[#allocation8 + $0x1e8] sm:$0xff]
        %v1230 = vld [vmem:[#allocation8 + $0x1f0] sm:$0xff]
        %v1231 = vld [vmem:[#allocation8 + $0x1f8] sm:$0xff]
        %v1232 = vld [vmem:[#allocation8 + $0x200] sm:$0xff]
        %v1233 = vld [vmem:[#allocation8 + $0x208] sm:$0xff]
        %v1234 = vld [vmem:[#allocation8 + $0x210] sm:$0xff]
        %v1235 = vld [vmem:[#allocation8 + $0x218] sm:$0xff]
        %v1236 = vld [vmem:[#allocation8 + $0x220] sm:$0xff]
        %v1237 = vld [vmem:[#allocation8 + $0x228] sm:$0xff]
        %v1238 = vld [vmem:[#allocation8 + $0x230] sm:$0xff]
        %v1239 = vld [vmem:[#allocation8 + $0x238] sm:$0xff]
        %v1240 = vld [vmem:[#allocation8 + $0x240] sm:$0xff]
        %v1241 = vld [vmem:[#allocation8 + $0x248] sm:$0xff]
        %v1242 = vld [vmem:[#allocation8 + $0x250] sm:$0xff]
        %v1243 = vld [vmem:[#allocation8 + $0x258] sm:$0xff]
        %v1244 = vld [vmem:[#allocation8 + $0x260] sm:$0xff]
        %v1245 = vld [vmem:[#allocation8 + $0x268] sm:$0xff]
        %v1246 = vld [vmem:[#allocation8 + $0x270] sm:$0xff]
        %v1247 = vld [vmem:[#allocation8 + $0x278] sm:$0xff]
        %v1248 = vld [vmem:[#allocation8 + $0x280] sm:$0xff]
        %v1249 = vld [vmem:[#allocation8 + $0x288] sm:$0xff]
        %v1250 = vld [vmem:[#allocation8 + $0x290] sm:$0xff]
        %v1251 = vld [vmem:[#allocation8 + $0x298] sm:$0xff]
        %v1252 = vld [vmem:[#allocation8 + $0x2a0] sm:$0xff]
        %v1253 = vld [vmem:[#allocation8 + $0x2a8] sm:$0xff]
        %v1254 = vld [vmem:[#allocation8 + $0x2b0] sm:$0xff]
        %v1255 = vld [vmem:[#allocation8 + $0x2b8] sm:$0xff]
        %v1256 = vld [vmem:[#allocation8 + $0x2c0] sm:$0xff]
        %v1257 = vld [vmem:[#allocation8 + $0x2c8] sm:$0xff]
        %v1258 = vld [vmem:[#allocation8 + $0x2d0] sm:$0xff]
        %v1259 = vld [vmem:[#allocation8 + $0x2d8] sm:$0xff]
        %v1260 = vld [vmem:[#allocation8 + $0x2e0] sm:$0xff]
        %v1261 = vld [vmem:[#allocation8 + $0x2e8] sm:$0xff]
        %v1262 = vld [vmem:[#allocation8 + $0x2f0] sm:$0xff]
        %v1263 = vld [vmem:[#allocation8 + $0x2f8] sm:$0xff]
        %v1264 = vld [vmem:[#allocation8 + $0x300] sm:$0xff]
        %v1265 = vld [vmem:[#allocation8 + $0x308] sm:$0xff]
        %v1266 = vld [vmem:[#allocation8 + $0x310] sm:$0xff]
        %v1267 = vld [vmem:[#allocation8 + $0x318] sm:$0xff]
        %v1268 = vld [vmem:[#allocation8 + $0x320] sm:$0xff]
        %v1269 = vld [vmem:[#allocation8 + $0x328] sm:$0xff]
        %v1270 = vld [vmem:[#allocation8 + $0x330] sm:$0xff]
        %v1271 = vld [vmem:[#allocation8 + $0x338] sm:$0xff]
        %v1272 = vld [vmem:[#allocation8 + $0x340] sm:$0xff]
        %v1273 = vld [vmem:[#allocation8 + $0x348] sm:$0xff]
        %v1274 = vld [vmem:[#allocation8 + $0x350] sm:$0xff]
        %v1275 = vld [vmem:[#allocation8 + $0x358] sm:$0xff]
        %v1276 = vld [vmem:[#allocation8 + $0x360] sm:$0xff]
        %v1277 = vld [vmem:[#allocation8 + $0x368] sm:$0xff]
        %v1278 = vld [vmem:[#allocation8 + $0x370] sm:$0xff]
        %v1279 = vld [vmem:[#allocation8 + $0x378] sm:$0xff]
        %v1280 = vld [vmem:[#allocation8 + $0x380] sm:$0xff]
        %v1281 = vld [vmem:[#allocation8 + $0x388] sm:$0xff]
        %v1282 = vld [vmem:[#allocation8 + $0x390] sm:$0xff]
        %v1283 = vld [vmem:[#allocation8 + $0x398] sm:$0xff]
        %v1284 = vld [vmem:[#allocation8 + $0x3a0] sm:$0xff]
        %v1285 = vld [vmem:[#allocation8 + $0x3a8] sm:$0xff]
        %v1286 = vld [vmem:[#allocation8 + $0x3b0] sm:$0xff]
        %v1287 = vld [vmem:[#allocation8 + $0x3b8] sm:$0xff]
        %v1288 = vld [vmem:[#allocation8 + $0x3c0] sm:$0xff]
        %v1289 = vld [vmem:[#allocation8 + $0x3c8] sm:$0xff]
        %v1290 = vld [vmem:[#allocation8 + $0x3d0] sm:$0xff]
        %v1291 = vld [vmem:[#allocation8 + $0x3d8] sm:$0xff]
        %v1292 = vld [vmem:[#allocation8 + $0x3e0] sm:$0xff]
        %v1293 = vld [vmem:[#allocation8 + $0x3e8] sm:$0xff]
        %v1294 = vld [vmem:[#allocation8 + $0x3f0] sm:$0xff]
        %v1295 = vld [vmem:[#allocation8 + $0x3f8] sm:$0xff]
        %v1296 = vld [vmem:[#allocation8 + $0x400] sm:$0xff]
        %v1297 = vld [vmem:[#allocation8 + $0x408] sm:$0xff]
        %v1298 = vld [vmem:[#allocation8 + $0x410] sm:$0xff]
        %v1299 = vld [vmem:[#allocation8 + $0x418] sm:$0xff]
        %v1300 = vld [vmem:[#allocation8 + $0x420] sm:$0xff]
        %v1301 = vld [vmem:[#allocation8 + $0x428] sm:$0xff]
        %v1302 = vld [vmem:[#allocation8 + $0x430] sm:$0xff]
        %v1303 = vld [vmem:[#allocation8 + $0x438] sm:$0xff]
        %v1304 = vld [vmem:[#allocation8 + $0x440] sm:$0xff]
        %v1305 = vld [vmem:[#allocation8 + $0x448] sm:$0xff]
        %v1306 = vld [vmem:[#allocation8 + $0x450] sm:$0xff]
        %v1307 = vld [vmem:[#allocation8 + $0x458] sm:$0xff]
        %v1308 = vld [vmem:[#allocation8 + $0x460] sm:$0xff]
        %v1309 = vld [vmem:[#allocation8 + $0x468] sm:$0xff]
        %v1310 = vld [vmem:[#allocation8 + $0x470] sm:$0xff]
        %v1311 = vld [vmem:[#allocation8 + $0x478] sm:$0xff]
        %1312 = vmatprep.subr.mxu0 0.0
        %1313 = vmatpush1.msra.mxu0 %v1168
        %1314 = vmatprep.subr.mxu0 0.0
        %1315 = vmatpush1.msra.mxu0 %v1169
        %1316 = vmatprep.subr.mxu0 0.0
        %1317 = vmatpush1.msra.mxu0 %v1170
        %1318 = vmatprep.subr.mxu0 0.0
        %1319 = vmatpush1.msra.mxu0 %v1171
        %1320 = vmatprep.subr.mxu0 0.0
        %1321 = vmatpush1.msra.mxu0 %v1172
        %1322 = vmatprep.subr.mxu0 0.0
        %1323 = vmatpush1.msra.mxu0 %v1173
        %1324 = vmatprep.subr.mxu0 0.0
        %1325 = vmatpush1.msra.mxu0 %v1174
        %1326 = vmatprep.subr.mxu0 0.0
        %1327 = vmatpush1.msra.mxu0 %v1175
        %1328 = vmatprep.subr.mxu0 0.0
        %1329 = vmatpush1.msra.mxu0 %v1176
        %1330 = vmatprep.subr.mxu0 0.0
        %1331 = vmatpush1.msra.mxu0 %v1177
        %1332 = vmatprep.subr.mxu0 0.0
        %1333 = vmatpush1.msra.mxu0 %v1178
        %1334 = vmatprep.subr.mxu0 0.0
        %1335 = vmatpush1.msra.mxu0 %v1179
        %1336 = vmatprep.subr.mxu0 0.0
        %1337 = vmatpush1.msra.mxu0 %v1180
        %1338 = vmatprep.subr.mxu0 0.0
        %1339 = vmatpush1.msra.mxu0 %v1181
        %1340 = vmatprep.subr.mxu0 0.0
        %1341 = vmatpush1.msra.mxu0 %v1182
        %1342 = vmatprep.subr.mxu0 0.0
        %1343 = vmatpush1.msra.mxu0 %v1183
        %1344 = vmatprep.subr.mxu0 0.0
        %1345 = vmatpush1.msra.mxu0 %v1184
        %1346 = vmatprep.subr.mxu0 0.0
        %1347 = vmatpush1.msra.mxu0 %v1185
        %1348 = vmatprep.subr.mxu0 0.0
        %1349 = vmatpush1.msra.mxu0 %v1186
        %1350 = vmatprep.subr.mxu0 0.0
        %1351 = vmatpush1.msra.mxu0 %v1187
        %1352 = vmatprep.subr.mxu0 0.0
        %1353 = vmatpush1.msra.mxu0 %v1188
        %1354 = vmatprep.subr.mxu0 0.0
        %1355 = vmatpush1.msra.mxu0 %v1189
        %1356 = vmatprep.subr.mxu0 0.0
        %1357 = vmatpush1.msra.mxu0 %v1190
        %1358 = vmatprep.subr.mxu0 0.0
        %1359 = vmatpush1.msra.mxu0 %v1191
        %1360 = vmatprep.subr.mxu0 0.0
        %1361 = vmatpush1.msra.mxu0 %v1192
        %1362 = vmatprep.subr.mxu0 0.0
        %1363 = vmatpush1.msra.mxu0 %v1193
        %1364 = vmatprep.subr.mxu0 0.0
        %1365 = vmatpush1.msra.mxu0 %v1194
        %1366 = vmatprep.subr.mxu0 0.0
        %1367 = vmatpush1.msra.mxu0 %v1195
        %1368 = vmatprep.subr.mxu0 0.0
        %1369 = vmatpush1.msra.mxu0 %v1196
        %1370 = vmatprep.subr.mxu0 0.0
        %1371 = vmatpush1.msra.mxu0 %v1197
        %1372 = vmatprep.subr.mxu0 0.0
        %1373 = vmatpush1.msra.mxu0 %v1198
        %1374 = vmatprep.subr.mxu0 0.0
        %1375 = vmatpush1.msra.mxu0 %v1199
        %1376 = vmatprep.mubr.f32.mxu0 %v911
        %1377 = vmatmul.mubr.f32.gmra.mrb[0].mxu0 %v879
        %v1378 = vpop.f32.mrb[0].mxu0
        %v1379 = vadd.f32 0.0, %v1378
        %v1380 = vpop.f32.mrb[0].mxu0
        %1381 = vmatprep.mubr.f32.mxu0 %v912
        %1382 = vmatmul.mubr.f32.gmra.mrb[0].mxu0 %v880
        %v1383 = vpop.f32.mrb[0].mxu0
        %v1384 = vadd.f32 0.0, %v1383
        %v1385 = vpop.f32.mrb[0].mxu0
        %1386 = vmatprep.mubr.f32.mxu0 %v913
        %1387 = vmatmul.mubr.f32.gmra.mrb[0].mxu0 %v881
        %v1388 = vpop.f32.mrb[0].mxu0
        %v1389 = vadd.f32 0.0, %v1388
        %v1390 = vpop.f32.mrb[0].mxu0
        %1391 = vmatprep.mubr.f32.mxu0 %v914
        %1392 = vmatmul.mubr.f32.gmra.mrb[0].mxu0 %v882
        %v1393 = vpop.f32.mrb[0].mxu0
        %v1394 = vadd.f32 0.0, %v1393
        %v1395 = vpop.f32.mrb[0].mxu0
        %1396 = vmatprep.mubr.f32.mxu0 %v915
        %1397 = vmatmul.mubr.f32.gmra.mrb[0].mxu0 %v883
        %v1398 = vpop.f32.mrb[0].mxu0
        %v1399 = vadd.f32 0.0, %v1398
        %v1400 = vpop.f32.mrb[0].mxu0
        %1401 = vmatprep.mubr.f32.mxu0 %v916
        %1402 = vmatmul.mubr.f32.gmra.mrb[0].mxu0 %v884
        %v1403 = vpop.f32.mrb[0].mxu0
        %v1404 = vadd.f32 0.0, %v1403
        %v1405 = vpop.f32.mrb[0].mxu0
        %1406 = vmatprep.mubr.f32.mxu0 %v917
        %1407 = vmatmul.mubr.f32.gmra.mrb[0].mxu0 %v885
        %v1408 = vpop.f32.mrb[0].mxu0
        %v1409 = vadd.f32 0.0, %v1408
        %v1410 = vpop.f32.mrb[0].mxu0
        %1411 = vmatprep.mubr.f32.mxu0 %v918
        %1412 = vmatmul.mubr.f32.gmra.mrb[0].mxu0 %v886
        %v1413 = vpop.f32.mrb[0].mxu0
        %v1414 = vadd.f32 0.0, %v1413
        %v1415 = vpop.f32.mrb[0].mxu0
        %1416 = vmatprep.mubr.f32.mxu0 %v919
        %1417 = vmatmul.mubr.f32.gmra.mrb[0].mxu0 %v887
        %v1418 = vpop.f32.mrb[0].mxu0
        %v1419 = vadd.f32 0.0, %v1418
        %v1420 = vpop.f32.mrb[0].mxu0
        %1421 = vmatprep.mubr.f32.mxu0 %v920
        %1422 = vmatmul.mubr.f32.gmra.mrb[0].mxu0 %v888
        %v1423 = vpop.f32.mrb[0].mxu0
        %v1424 = vadd.f32 0.0, %v1423
        %v1425 = vpop.f32.mrb[0].mxu0
        %1426 = vmatprep.mubr.f32.mxu0 %v921
        %1427 = vmatmul.mubr.f32.gmra.mrb[0].mxu0 %v889
        %v1428 = vpop.f32.mrb[0].mxu0
        %v1429 = vadd.f32 0.0, %v1428
        %v1430 = vpop.f32.mrb[0].mxu0
        %1431 = vmatprep.mubr.f32.mxu0 %v922
        %1432 = vmatmul.mubr.f32.gmra.mrb[0].mxu0 %v890
        %v1433 = vpop.f32.mrb[0].mxu0
        %v1434 = vadd.f32 0.0, %v1433
        %v1435 = vpop.f32.mrb[0].mxu0
        %1436 = vmatprep.mubr.f32.mxu0 %v923
        %1437 = vmatmul.mubr.f32.gmra.mrb[0].mxu0 %v891
        %v1438 = vpop.f32.mrb[0].mxu0
        %v1439 = vadd.f32 0.0, %v1438
        %v1440 = vpop.f32.mrb[0].mxu0
        %1441 = vmatprep.mubr.f32.mxu0 %v924
        %1442 = vmatmul.mubr.f32.gmra.mrb[0].mxu0 %v892
        %v1443 = vpop.f32.mrb[0].mxu0
        %v1444 = vadd.f32 0.0, %v1443
        %v1445 = vpop.f32.mrb[0].mxu0
        %1446 = vmatprep.mubr.f32.mxu0 %v925
        %1447 = vmatmul.mubr.f32.gmra.mrb[0].mxu0 %v893
        %v1448 = vpop.f32.mrb[0].mxu0
        %v1449 = vadd.f32 0.0, %v1448
        %v1450 = vpop.f32.mrb[0].mxu0
        %1451 = vmatprep.mubr.f32.mxu0 %v926
        %1452 = vmatmul.mubr.f32.gmra.mrb[0].mxu0 %v894
        %v1453 = vpop.f32.mrb[0].mxu0
        %v1454 = vadd.f32 0.0, %v1453
        %v1455 = vpop.f32.mrb[0].mxu0
        %1456 = vmatprep.mubr.f32.mxu0 %v927
        %1457 = vmatmul.mubr.f32.gmra.mrb[0].mxu0 %v895
        %v1458 = vpop.f32.mrb[0].mxu0
        %v1459 = vadd.f32 0.0, %v1458
        %v1460 = vpop.f32.mrb[0].mxu0
        %1461 = vmatprep.mubr.f32.mxu0 %v928
        %1462 = vmatmul.mubr.f32.gmra.mrb[0].mxu0 %v896
        %v1463 = vpop.f32.mrb[0].mxu0
        %v1464 = vadd.f32 0.0, %v1463
        %v1465 = vpop.f32.mrb[0].mxu0
        %1466 = vmatprep.mubr.f32.mxu0 %v929
        %1467 = vmatmul.mubr.f32.gmra.mrb[0].mxu0 %v897
        %v1468 = vpop.f32.mrb[0].mxu0
        %v1469 = vadd.f32 0.0, %v1468
        %v1470 = vpop.f32.mrb[0].mxu0
        %1471 = vmatprep.mubr.f32.mxu0 %v930
        %1472 = vmatmul.mubr.f32.gmra.mrb[0].mxu0 %v898
        %v1473 = vpop.f32.mrb[0].mxu0
        %v1474 = vadd.f32 0.0, %v1473
        %v1475 = vpop.f32.mrb[0].mxu0
        %1476 = vmatprep.mubr.f32.mxu0 %v931
        %1477 = vmatmul.mubr.f32.gmra.mrb[0].mxu0 %v899
        %v1478 = vpop.f32.mrb[0].mxu0
        %v1479 = vadd.f32 0.0, %v1478
        %v1480 = vpop.f32.mrb[0].mxu0
        %1481 = vmatprep.mubr.f32.mxu0 %v932
        %1482 = vmatmul.mubr.f32.gmra.mrb[0].mxu0 %v900
        %v1483 = vpop.f32.mrb[0].mxu0
        %v1484 = vadd.f32 0.0, %v1483
        %v1485 = vpop.f32.mrb[0].mxu0
        %1486 = vmatprep.mubr.f32.mxu0 %v933
        %1487 = vmatmul.mubr.f32.gmra.mrb[0].mxu0 %v901
        %v1488 = vpop.f32.mrb[0].mxu0
        %v1489 = vadd.f32 0.0, %v1488
        %v1490 = vpop.f32.mrb[0].mxu0
        %1491 = vmatprep.mubr.f32.mxu0 %v934
        %1492 = vmatmul.mubr.f32.gmra.mrb[0].mxu0 %v902
        %v1493 = vpop.f32.mrb[0].mxu0
        %v1494 = vadd.f32 0.0, %v1493
        %v1495 = vpop.f32.mrb[0].mxu0
        %1496 = vmatprep.mubr.f32.mxu0 %v935
        %1497 = vmatmul.mubr.f32.gmra.mrb[0].mxu0 %v903
        %v1498 = vpop.f32.mrb[0].mxu0
        %v1499 = vadd.f32 0.0, %v1498
        %v1500 = vpop.f32.mrb[0].mxu0
        %1501 = vmatprep.mubr.f32.mxu0 %v936
        %1502 = vmatmul.mubr.f32.gmra.mrb[0].mxu0 %v904
        %v1503 = vpop.f32.mrb[0].mxu0
        %v1504 = vadd.f32 0.0, %v1503
        %v1505 = vpop.f32.mrb[0].mxu0
        %1506 = vmatprep.mubr.f32.mxu0 %v937
        %1507 = vmatmul.mubr.f32.gmra.mrb[0].mxu0 %v905
        %v1508 = vpop.f32.mrb[0].mxu0
        %v1509 = vadd.f32 0.0, %v1508
        %v1510 = vpop.f32.mrb[0].mxu0
        %1511 = vmatprep.mubr.f32.mxu0 %v938
        %1512 = vmatmul.mubr.f32.gmra.mrb[0].mxu0 %v906
        %v1513 = vpop.f32.mrb[0].mxu0
        %v1514 = vadd.f32 0.0, %v1513
        %v1515 = vpop.f32.mrb[0].mxu0
        %1516 = vmatprep.mubr.f32.mxu0 %v939
        %1517 = vmatmul.mubr.f32.gmra.mrb[0].mxu0 %v907
        %v1518 = vpop.f32.mrb[0].mxu0
        %v1519 = vadd.f32 0.0, %v1518
        %v1520 = vpop.f32.mrb[0].mxu0
        %1521 = vmatprep.mubr.f32.mxu0 %v940
        %1522 = vmatmul.mubr.f32.gmra.mrb[0].mxu0 %v908
        %v1523 = vpop.f32.mrb[0].mxu0
        %v1524 = vadd.f32 0.0, %v1523
        %v1525 = vpop.f32.mrb[0].mxu0
        %1526 = vmatprep.mubr.f32.mxu0 %v941
        %1527 = vmatmul.mubr.f32.gmra.mrb[0].mxu0 %v909
        %v1528 = vpop.f32.mrb[0].mxu0
        %v1529 = vadd.f32 0.0, %v1528
        %v1530 = vpop.f32.mrb[0].mxu0
        %1531 = vmatprep.mubr.f32.mxu0 %v942
        %1532 = vmatmul.mubr.f32.gmra.mrb[0].mxu0 %v910
        %v1533 = vpop.f32.mrb[0].mxu0
        %v1534 = vadd.f32 0.0, %v1533
        %v1535 = vpop.f32.mrb[0].mxu0
        %1536 = vdwg.mxu0
        %1537 = vmatprep.subr.mxu0 0.0
        %1538 = vmatpush1.msra.mxu0 %v1200
        %1539 = vmatprep.subr.mxu0 0.0
        %1540 = vmatpush1.msra.mxu0 %v1201
        %1541 = vmatprep.subr.mxu0 0.0
        %1542 = vmatpush1.msra.mxu0 %v1202
        %1543 = vmatprep.subr.mxu0 0.0
        %1544 = vmatpush1.msra.mxu0 %v1203
        %1545 = vmatprep.subr.mxu0 0.0
        %1546 = vmatpush1.msra.mxu0 %v1204
        %1547 = vmatprep.subr.mxu0 0.0
        %1548 = vmatpush1.msra.mxu0 %v1205
        %1549 = vmatprep.subr.mxu0 0.0
        %1550 = vmatpush1.msra.mxu0 %v1206
        %1551 = vmatprep.subr.mxu0 0.0
        %1552 = vmatpush1.msra.mxu0 %v1207
        %1553 = vmatprep.subr.mxu0 0.0
        %1554 = vmatpush1.msra.mxu0 %v1208
        %1555 = vmatprep.subr.mxu0 0.0
        %1556 = vmatpush1.msra.mxu0 %v1209
        %1557 = vmatprep.subr.mxu0 0.0
        %1558 = vmatpush1.msra.mxu0 %v1210
        %1559 = vmatprep.subr.mxu0 0.0
        %1560 = vmatpush1.msra.mxu0 %v1211
        %1561 = vmatprep.subr.mxu0 0.0
        %1562 = vmatpush1.msra.mxu0 %v1212
        %1563 = vmatprep.subr.mxu0 0.0
        %1564 = vmatpush1.msra.mxu0 %v1213
        %1565 = vmatprep.subr.mxu0 0.0
        %1566 = vmatpush1.msra.mxu0 %v1214
        %1567 = vmatprep.subr.mxu0 0.0
        %1568 = vmatpush1.msra.mxu0 %v1215
        %1569 = vmatprep.subr.mxu0 0.0
        %1570 = vmatpush1.msra.mxu0 %v1216
        %1571 = vmatprep.subr.mxu0 0.0
        %1572 = vmatpush1.msra.mxu0 %v1217
        %1573 = vmatprep.subr.mxu0 0.0
        %1574 = vmatpush1.msra.mxu0 %v1218
        %1575 = vmatprep.subr.mxu0 0.0
        %1576 = vmatpush1.msra.mxu0 %v1219
        %1577 = vmatprep.subr.mxu0 0.0
        %1578 = vmatpush1.msra.mxu0 %v1220
        %1579 = vmatprep.subr.mxu0 0.0
        %1580 = vmatpush1.msra.mxu0 %v1221
        %1581 = vmatprep.subr.mxu0 0.0
        %1582 = vmatpush1.msra.mxu0 %v1222
        %1583 = vmatprep.subr.mxu0 0.0
        %1584 = vmatpush1.msra.mxu0 %v1223
        %1585 = vmatprep.subr.mxu0 0.0
        %1586 = vmatpush1.msra.mxu0 %v1224
        %1587 = vmatprep.subr.mxu0 0.0
        %1588 = vmatpush1.msra.mxu0 %v1225
        %1589 = vmatprep.subr.mxu0 0.0
        %1590 = vmatpush1.msra.mxu0 %v1226
        %1591 = vmatprep.subr.mxu0 0.0
        %1592 = vmatpush1.msra.mxu0 %v1227
        %1593 = vmatprep.subr.mxu0 0.0
        %1594 = vmatpush1.msra.mxu0 %v1228
        %1595 = vmatprep.subr.mxu0 0.0
        %1596 = vmatpush1.msra.mxu0 %v1229
        %1597 = vmatprep.subr.mxu0 0.0
        %1598 = vmatpush1.msra.mxu0 %v1230
        %1599 = vmatprep.subr.mxu0 0.0
        %1600 = vmatpush1.msra.mxu0 %v1231
        %1601 = vmatprep.mubr.f32.mxu0 %v975
        %1602 = vmatmul.mubr.f32.gmra.mrb[0].mxu0 %v943
        %v1603 = vpop.f32.mrb[0].mxu0
        %v1604 = vadd.f32 %v1379, %v1603
        %v1605 = vpop.f32.mrb[0].mxu0
        %1606 = vmatprep.mubr.f32.mxu0 %v976
        %1607 = vmatmul.mubr.f32.gmra.mrb[0].mxu0 %v944
        %v1608 = vpop.f32.mrb[0].mxu0
        %v1609 = vadd.f32 %v1384, %v1608
        %v1610 = vpop.f32.mrb[0].mxu0
        %1611 = vmatprep.mubr.f32.mxu0 %v977
        %1612 = vmatmul.mubr.f32.gmra.mrb[0].mxu0 %v945
        %v1613 = vpop.f32.mrb[0].mxu0
        %v1614 = vadd.f32 %v1389, %v1613
        %v1615 = vpop.f32.mrb[0].mxu0
        %1616 = vmatprep.mubr.f32.mxu0 %v978
        %1617 = vmatmul.mubr.f32.gmra.mrb[0].mxu0 %v946
        %v1618 = vpop.f32.mrb[0].mxu0
        %v1619 = vadd.f32 %v1394, %v1618
        %v1620 = vpop.f32.mrb[0].mxu0
        %1621 = vmatprep.mubr.f32.mxu0 %v979
        %1622 = vmatmul.mubr.f32.gmra.mrb[0].mxu0 %v947
        %v1623 = vpop.f32.mrb[0].mxu0
        %v1624 = vadd.f32 %v1399, %v1623
        %v1625 = vpop.f32.mrb[0].mxu0
        %1626 = vmatprep.mubr.f32.mxu0 %v980
        %1627 = vmatmul.mubr.f32.gmra.mrb[0].mxu0 %v948
        %v1628 = vpop.f32.mrb[0].mxu0
        %v1629 = vadd.f32 %v1404, %v1628
        %v1630 = vpop.f32.mrb[0].mxu0
        %1631 = vmatprep.mubr.f32.mxu0 %v981
        %1632 = vmatmul.mubr.f32.gmra.mrb[0].mxu0 %v949
        %v1633 = vpop.f32.mrb[0].mxu0
        %v1634 = vadd.f32 %v1409, %v1633
        %v1635 = vpop.f32.mrb[0].mxu0
        %1636 = vmatprep.mubr.f32.mxu0 %v982
        %1637 = vmatmul.mubr.f32.gmra.mrb[0].mxu0 %v950
        %v1638 = vpop.f32.mrb[0].mxu0
        %v1639 = vadd.f32 %v1414, %v1638
        %v1640 = vpop.f32.mrb[0].mxu0
        %1641 = vmatprep.mubr.f32.mxu0 %v983
        %1642 = vmatmul.mubr.f32.gmra.mrb[0].mxu0 %v951
        %v1643 = vpop.f32.mrb[0].mxu0
        %v1644 = vadd.f32 %v1419, %v1643
        %v1645 = vpop.f32.mrb[0].mxu0
        %1646 = vmatprep.mubr.f32.mxu0 %v984
        %1647 = vmatmul.mubr.f32.gmra.mrb[0].mxu0 %v952
        %v1648 = vpop.f32.mrb[0].mxu0
        %v1649 = vadd.f32 %v1424, %v1648
        %v1650 = vpop.f32.mrb[0].mxu0
        %1651 = vmatprep.mubr.f32.mxu0 %v985
        %1652 = vmatmul.mubr.f32.gmra.mrb[0].mxu0 %v953
        %v1653 = vpop.f32.mrb[0].mxu0
        %v1654 = vadd.f32 %v1429, %v1653
        %v1655 = vpop.f32.mrb[0].mxu0
        %1656 = vmatprep.mubr.f32.mxu0 %v986
        %1657 = vmatmul.mubr.f32.gmra.mrb[0].mxu0 %v954
        %v1658 = vpop.f32.mrb[0].mxu0
        %v1659 = vadd.f32 %v1434, %v1658
        %v1660 = vpop.f32.mrb[0].mxu0
        %1661 = vmatprep.mubr.f32.mxu0 %v987
        %1662 = vmatmul.mubr.f32.gmra.mrb[0].mxu0 %v955
        %v1663 = vpop.f32.mrb[0].mxu0
        %v1664 = vadd.f32 %v1439, %v1663
        %v1665 = vpop.f32.mrb[0].mxu0
        %1666 = vmatprep.mubr.f32.mxu0 %v988
        %1667 = vmatmul.mubr.f32.gmra.mrb[0].mxu0 %v956
        %v1668 = vpop.f32.mrb[0].mxu0
        %v1669 = vadd.f32 %v1444, %v1668
        %v1670 = vpop.f32.mrb[0].mxu0
        %1671 = vmatprep.mubr.f32.mxu0 %v989
        %1672 = vmatmul.mubr.f32.gmra.mrb[0].mxu0 %v957
        %v1673 = vpop.f32.mrb[0].mxu0
        %v1674 = vadd.f32 %v1449, %v1673
        %v1675 = vpop.f32.mrb[0].mxu0
        %1676 = vmatprep.mubr.f32.mxu0 %v990
        %1677 = vmatmul.mubr.f32.gmra.mrb[0].mxu0 %v958
        %v1678 = vpop.f32.mrb[0].mxu0
        %v1679 = vadd.f32 %v1454, %v1678
        %v1680 = vpop.f32.mrb[0].mxu0
        %1681 = vmatprep.mubr.f32.mxu0 %v991
        %1682 = vmatmul.mubr.f32.gmra.mrb[0].mxu0 %v959
        %v1683 = vpop.f32.mrb[0].mxu0
        %v1684 = vadd.f32 %v1459, %v1683
        %v1685 = vpop.f32.mrb[0].mxu0
        %1686 = vmatprep.mubr.f32.mxu0 %v992
        %1687 = vmatmul.mubr.f32.gmra.mrb[0].mxu0 %v960
        %v1688 = vpop.f32.mrb[0].mxu0
        %v1689 = vadd.f32 %v1464, %v1688
        %v1690 = vpop.f32.mrb[0].mxu0
        %1691 = vmatprep.mubr.f32.mxu0 %v993
        %1692 = vmatmul.mubr.f32.gmra.mrb[0].mxu0 %v961
        %v1693 = vpop.f32.mrb[0].mxu0
        %v1694 = vadd.f32 %v1469, %v1693
        %v1695 = vpop.f32.mrb[0].mxu0
        %1696 = vmatprep.mubr.f32.mxu0 %v994
        %1697 = vmatmul.mubr.f32.gmra.mrb[0].mxu0 %v962
        %v1698 = vpop.f32.mrb[0].mxu0
        %v1699 = vadd.f32 %v1474, %v1698
        %v1700 = vpop.f32.mrb[0].mxu0
        %1701 = vmatprep.mubr.f32.mxu0 %v995
        %1702 = vmatmul.mubr.f32.gmra.mrb[0].mxu0 %v963
        %v1703 = vpop.f32.mrb[0].mxu0
        %v1704 = vadd.f32 %v1479, %v1703
        %v1705 = vpop.f32.mrb[0].mxu0
        %1706 = vmatprep.mubr.f32.mxu0 %v996
        %1707 = vmatmul.mubr.f32.gmra.mrb[0].mxu0 %v964
        %v1708 = vpop.f32.mrb[0].mxu0
        %v1709 = vadd.f32 %v1484, %v1708
        %v1710 = vpop.f32.mrb[0].mxu0
        %1711 = vmatprep.mubr.f32.mxu0 %v997
        %1712 = vmatmul.mubr.f32.gmra.mrb[0].mxu0 %v965
        %v1713 = vpop.f32.mrb[0].mxu0
        %v1714 = vadd.f32 %v1489, %v1713
        %v1715 = vpop.f32.mrb[0].mxu0
        %1716 = vmatprep.mubr.f32.mxu0 %v998
        %1717 = vmatmul.mubr.f32.gmra.mrb[0].mxu0 %v966
        %v1718 = vpop.f32.mrb[0].mxu0
        %v1719 = vadd.f32 %v1494, %v1718
        %v1720 = vpop.f32.mrb[0].mxu0
        %1721 = vmatprep.mubr.f32.mxu0 %v999
        %1722 = vmatmul.mubr.f32.gmra.mrb[0].mxu0 %v967
        %v1723 = vpop.f32.mrb[0].mxu0
        %v1724 = vadd.f32 %v1499, %v1723
        %v1725 = vpop.f32.mrb[0].mxu0
        %1726 = vmatprep.mubr.f32.mxu0 %v1000
        %1727 = vmatmul.mubr.f32.gmra.mrb[0].mxu0 %v968
        %v1728 = vpop.f32.mrb[0].mxu0
        %v1729 = vadd.f32 %v1504, %v1728
        %v1730 = vpop.f32.mrb[0].mxu0
        %1731 = vmatprep.mubr.f32.mxu0 %v1001
        %1732 = vmatmul.mubr.f32.gmra.mrb[0].mxu0 %v969
        %v1733 = vpop.f32.mrb[0].mxu0
        %v1734 = vadd.f32 %v1509, %v1733
        %v1735 = vpop.f32.mrb[0].mxu0
        %1736 = vmatprep.mubr.f32.mxu0 %v1002
        %1737 = vmatmul.mubr.f32.gmra.mrb[0].mxu0 %v970
        %v1738 = vpop.f32.mrb[0].mxu0
        %v1739 = vadd.f32 %v1514, %v1738
        %v1740 = vpop.f32.mrb[0].mxu0
        %1741 = vmatprep.mubr.f32.mxu0 %v1003
        %1742 = vmatmul.mubr.f32.gmra.mrb[0].mxu0 %v971
        %v1743 = vpop.f32.mrb[0].mxu0
        %v1744 = vadd.f32 %v1519, %v1743
        %v1745 = vpop.f32.mrb[0].mxu0
        %1746 = vmatprep.mubr.f32.mxu0 %v1004
        %1747 = vmatmul.mubr.f32.gmra.mrb[0].mxu0 %v972
        %v1748 = vpop.f32.mrb[0].mxu0
        %v1749 = vadd.f32 %v1524, %v1748
        %v1750 = vpop.f32.mrb[0].mxu0
        %1751 = vmatprep.mubr.f32.mxu0 %v1005
        %1752 = vmatmul.mubr.f32.gmra.mrb[0].mxu0 %v973
        %v1753 = vpop.f32.mrb[0].mxu0
        %v1754 = vadd.f32 %v1529, %v1753
        %v1755 = vpop.f32.mrb[0].mxu0
        %1756 = vmatprep.mubr.f32.mxu0 %v1006
        %1757 = vmatmul.mubr.f32.gmra.mrb[0].mxu0 %v974
        %v1758 = vpop.f32.mrb[0].mxu0
        %v1759 = vadd.f32 %v1534, %v1758
        %v1760 = vpop.f32.mrb[0].mxu0
        %1761 = vdwg.mxu0
        %1762 = vmatprep.subr.mxu0 0.0
        %1763 = vmatpush1.msra.mxu0 %v1232
        %1764 = vmatprep.subr.mxu0 0.0
        %1765 = vmatpush1.msra.mxu0 %v1233
        %1766 = vmatprep.subr.mxu0 0.0
        %1767 = vmatpush1.msra.mxu0 %v1234
        %1768 = vmatprep.subr.mxu0 0.0
        %1769 = vmatpush1.msra.mxu0 %v1235
        %1770 = vmatprep.subr.mxu0 0.0
        %1771 = vmatpush1.msra.mxu0 %v1236
        %1772 = vmatprep.subr.mxu0 0.0
        %1773 = vmatpush1.msra.mxu0 %v1237
        %1774 = vmatprep.subr.mxu0 0.0
        %1775 = vmatpush1.msra.mxu0 %v1238
        %1776 = vmatprep.subr.mxu0 0.0
        %1777 = vmatpush1.msra.mxu0 %v1239
        %1778 = vmatprep.subr.mxu0 0.0
        %1779 = vmatpush1.msra.mxu0 %v1240
        %1780 = vmatprep.subr.mxu0 0.0
        %1781 = vmatpush1.msra.mxu0 %v1241
        %1782 = vmatprep.subr.mxu0 0.0
        %1783 = vmatpush1.msra.mxu0 %v1242
        %1784 = vmatprep.subr.mxu0 0.0
        %1785 = vmatpush1.msra.mxu0 %v1243
        %1786 = vmatprep.subr.mxu0 0.0
        %1787 = vmatpush1.msra.mxu0 %v1244
        %1788 = vmatprep.subr.mxu0 0.0
        %1789 = vmatpush1.msra.mxu0 %v1245
        %1790 = vmatprep.subr.mxu0 0.0
        %1791 = vmatpush1.msra.mxu0 %v1246
        %1792 = vmatprep.subr.mxu0 0.0
        %1793 = vmatpush1.msra.mxu0 %v1247
        %1794 = vmatprep.subr.mxu0 0.0
        %1795 = vmatpush1.msra.mxu0 %v1248
        %1796 = vmatprep.subr.mxu0 0.0
        %1797 = vmatpush1.msra.mxu0 %v1249
        %1798 = vmatprep.subr.mxu0 0.0
        %1799 = vmatpush1.msra.mxu0 %v1250
        %1800 = vmatprep.subr.mxu0 0.0
        %1801 = vmatpush1.msra.mxu0 %v1251
        %1802 = vmatprep.subr.mxu0 0.0
        %1803 = vmatpush1.msra.mxu0 %v1252
        %1804 = vmatprep.subr.mxu0 0.0
        %1805 = vmatpush1.msra.mxu0 %v1253
        %1806 = vmatprep.subr.mxu0 0.0
        %1807 = vmatpush1.msra.mxu0 %v1254
        %1808 = vmatprep.subr.mxu0 0.0
        %1809 = vmatpush1.msra.mxu0 %v1255
        %1810 = vmatprep.subr.mxu0 0.0
        %1811 = vmatpush1.msra.mxu0 %v1256
        %1812 = vmatprep.subr.mxu0 0.0
        %1813 = vmatpush1.msra.mxu0 %v1257
        %1814 = vmatprep.subr.mxu0 0.0
        %1815 = vmatpush1.msra.mxu0 %v1258
        %1816 = vmatprep.subr.mxu0 0.0
        %1817 = vmatpush1.msra.mxu0 %v1259
        %1818 = vmatprep.subr.mxu0 0.0
        %1819 = vmatpush1.msra.mxu0 %v1260
        %1820 = vmatprep.subr.mxu0 0.0
        %1821 = vmatpush1.msra.mxu0 %v1261
        %1822 = vmatprep.subr.mxu0 0.0
        %1823 = vmatpush1.msra.mxu0 %v1262
        %1824 = vmatprep.subr.mxu0 0.0
        %1825 = vmatpush1.msra.mxu0 %v1263
        %1826 = vmatprep.mubr.f32.mxu0 %v1039
        %1827 = vmatmul.mubr.f32.gmra.mrb[0].mxu0 %v1007
        %v1828 = vpop.f32.mrb[0].mxu0
        %v1829 = vadd.f32 %v1604, %v1828
        %v1830 = vpop.f32.mrb[0].mxu0
        %1831 = vmatprep.mubr.f32.mxu0 %v1040
        %1832 = vmatmul.mubr.f32.gmra.mrb[0].mxu0 %v1008
        %v1833 = vpop.f32.mrb[0].mxu0
        %v1834 = vadd.f32 %v1609, %v1833
        %v1835 = vpop.f32.mrb[0].mxu0
        %1836 = vmatprep.mubr.f32.mxu0 %v1041
        %1837 = vmatmul.mubr.f32.gmra.mrb[0].mxu0 %v1009
        %v1838 = vpop.f32.mrb[0].mxu0
        %v1839 = vadd.f32 %v1614, %v1838
        %v1840 = vpop.f32.mrb[0].mxu0
        %1841 = vmatprep.mubr.f32.mxu0 %v1042
        %1842 = vmatmul.mubr.f32.gmra.mrb[0].mxu0 %v1010
        %v1843 = vpop.f32.mrb[0].mxu0
        %v1844 = vadd.f32 %v1619, %v1843
        %v1845 = vpop.f32.mrb[0].mxu0
        %1846 = vmatprep.mubr.f32.mxu0 %v1043
        %1847 = vmatmul.mubr.f32.gmra.mrb[0].mxu0 %v1011
        %v1848 = vpop.f32.mrb[0].mxu0
        %v1849 = vadd.f32 %v1624, %v1848
        %v1850 = vpop.f32.mrb[0].mxu0
        %1851 = vmatprep.mubr.f32.mxu0 %v1044
        %1852 = vmatmul.mubr.f32.gmra.mrb[0].mxu0 %v1012
        %v1853 = vpop.f32.mrb[0].mxu0
        %v1854 = vadd.f32 %v1629, %v1853
        %v1855 = vpop.f32.mrb[0].mxu0
        %1856 = vmatprep.mubr.f32.mxu0 %v1045
        %1857 = vmatmul.mubr.f32.gmra.mrb[0].mxu0 %v1013
        %v1858 = vpop.f32.mrb[0].mxu0
        %v1859 = vadd.f32 %v1634, %v1858
        %v1860 = vpop.f32.mrb[0].mxu0
        %1861 = vmatprep.mubr.f32.mxu0 %v1046
        %1862 = vmatmul.mubr.f32.gmra.mrb[0].mxu0 %v1014
        %v1863 = vpop.f32.mrb[0].mxu0
        %v1864 = vadd.f32 %v1639, %v1863
        %v1865 = vpop.f32.mrb[0].mxu0
        %1866 = vmatprep.mubr.f32.mxu0 %v1047
        %1867 = vmatmul.mubr.f32.gmra.mrb[0].mxu0 %v1015
        %v1868 = vpop.f32.mrb[0].mxu0
        %v1869 = vadd.f32 %v1644, %v1868
        %v1870 = vpop.f32.mrb[0].mxu0
        %1871 = vmatprep.mubr.f32.mxu0 %v1048
        %1872 = vmatmul.mubr.f32.gmra.mrb[0].mxu0 %v1016
        %v1873 = vpop.f32.mrb[0].mxu0
        %v1874 = vadd.f32 %v1649, %v1873
        %v1875 = vpop.f32.mrb[0].mxu0
        %1876 = vmatprep.mubr.f32.mxu0 %v1049
        %1877 = vmatmul.mubr.f32.gmra.mrb[0].mxu0 %v1017
        %v1878 = vpop.f32.mrb[0].mxu0
        %v1879 = vadd.f32 %v1654, %v1878
        %v1880 = vpop.f32.mrb[0].mxu0
        %1881 = vmatprep.mubr.f32.mxu0 %v1050
        %1882 = vmatmul.mubr.f32.gmra.mrb[0].mxu0 %v1018
        %v1883 = vpop.f32.mrb[0].mxu0
        %v1884 = vadd.f32 %v1659, %v1883
        %v1885 = vpop.f32.mrb[0].mxu0
        %1886 = vmatprep.mubr.f32.mxu0 %v1051
        %1887 = vmatmul.mubr.f32.gmra.mrb[0].mxu0 %v1019
        %v1888 = vpop.f32.mrb[0].mxu0
        %v1889 = vadd.f32 %v1664, %v1888
        %v1890 = vpop.f32.mrb[0].mxu0
        %1891 = vmatprep.mubr.f32.mxu0 %v1052
        %1892 = vmatmul.mubr.f32.gmra.mrb[0].mxu0 %v1020
        %v1893 = vpop.f32.mrb[0].mxu0
        %v1894 = vadd.f32 %v1669, %v1893
        %v1895 = vpop.f32.mrb[0].mxu0
        %1896 = vmatprep.mubr.f32.mxu0 %v1053
        %1897 = vmatmul.mubr.f32.gmra.mrb[0].mxu0 %v1021
        %v1898 = vpop.f32.mrb[0].mxu0
        %v1899 = vadd.f32 %v1674, %v1898
        %v1900 = vpop.f32.mrb[0].mxu0
        %1901 = vmatprep.mubr.f32.mxu0 %v1054
        %1902 = vmatmul.mubr.f32.gmra.mrb[0].mxu0 %v1022
        %v1903 = vpop.f32.mrb[0].mxu0
        %v1904 = vadd.f32 %v1679, %v1903
        %v1905 = vpop.f32.mrb[0].mxu0
        %1906 = vmatprep.mubr.f32.mxu0 %v1055
        %1907 = vmatmul.mubr.f32.gmra.mrb[0].mxu0 %v1023
        %v1908 = vpop.f32.mrb[0].mxu0
        %v1909 = vadd.f32 %v1684, %v1908
        %v1910 = vpop.f32.mrb[0].mxu0
        %1911 = vmatprep.mubr.f32.mxu0 %v1056
        %1912 = vmatmul.mubr.f32.gmra.mrb[0].mxu0 %v1024
        %v1913 = vpop.f32.mrb[0].mxu0
        %v1914 = vadd.f32 %v1689, %v1913
        %v1915 = vpop.f32.mrb[0].mxu0
        %1916 = vmatprep.mubr.f32.mxu0 %v1057
        %1917 = vmatmul.mubr.f32.gmra.mrb[0].mxu0 %v1025
        %v1918 = vpop.f32.mrb[0].mxu0
        %v1919 = vadd.f32 %v1694, %v1918
        %v1920 = vpop.f32.mrb[0].mxu0
        %1921 = vmatprep.mubr.f32.mxu0 %v1058
        %1922 = vmatmul.mubr.f32.gmra.mrb[0].mxu0 %v1026
        %v1923 = vpop.f32.mrb[0].mxu0
        %v1924 = vadd.f32 %v1699, %v1923
        %v1925 = vpop.f32.mrb[0].mxu0
        %1926 = vmatprep.mubr.f32.mxu0 %v1059
        %1927 = vmatmul.mubr.f32.gmra.mrb[0].mxu0 %v1027
        %v1928 = vpop.f32.mrb[0].mxu0
        %v1929 = vadd.f32 %v1704, %v1928
        %v1930 = vpop.f32.mrb[0].mxu0
        %1931 = vmatprep.mubr.f32.mxu0 %v1060
        %1932 = vmatmul.mubr.f32.gmra.mrb[0].mxu0 %v1028
        %v1933 = vpop.f32.mrb[0].mxu0
        %v1934 = vadd.f32 %v1709, %v1933
        %v1935 = vpop.f32.mrb[0].mxu0
        %1936 = vmatprep.mubr.f32.mxu0 %v1061
        %1937 = vmatmul.mubr.f32.gmra.mrb[0].mxu0 %v1029
        %v1938 = vpop.f32.mrb[0].mxu0
        %v1939 = vadd.f32 %v1714, %v1938
        %v1940 = vpop.f32.mrb[0].mxu0
        %1941 = vmatprep.mubr.f32.mxu0 %v1062
        %1942 = vmatmul.mubr.f32.gmra.mrb[0].mxu0 %v1030
        %v1943 = vpop.f32.mrb[0].mxu0
        %v1944 = vadd.f32 %v1719, %v1943
        %v1945 = vpop.f32.mrb[0].mxu0
        %1946 = vmatprep.mubr.f32.mxu0 %v1063
        %1947 = vmatmul.mubr.f32.gmra.mrb[0].mxu0 %v1031
        %v1948 = vpop.f32.mrb[0].mxu0
        %v1949 = vadd.f32 %v1724, %v1948
        %v1950 = vpop.f32.mrb[0].mxu0
        %1951 = vmatprep.mubr.f32.mxu0 %v1064
        %1952 = vmatmul.mubr.f32.gmra.mrb[0].mxu0 %v1032
        %v1953 = vpop.f32.mrb[0].mxu0
        %v1954 = vadd.f32 %v1729, %v1953
        %v1955 = vpop.f32.mrb[0].mxu0
        %1956 = vmatprep.mubr.f32.mxu0 %v1065
        %1957 = vmatmul.mubr.f32.gmra.mrb[0].mxu0 %v1033
        %v1958 = vpop.f32.mrb[0].mxu0
        %v1959 = vadd.f32 %v1734, %v1958
        %v1960 = vpop.f32.mrb[0].mxu0
        %1961 = vmatprep.mubr.f32.mxu0 %v1066
        %1962 = vmatmul.mubr.f32.gmra.mrb[0].mxu0 %v1034
        %v1963 = vpop.f32.mrb[0].mxu0
        %v1964 = vadd.f32 %v1739, %v1963
        %v1965 = vpop.f32.mrb[0].mxu0
        %1966 = vmatprep.mubr.f32.mxu0 %v1067
        %1967 = vmatmul.mubr.f32.gmra.mrb[0].mxu0 %v1035
        %v1968 = vpop.f32.mrb[0].mxu0
        %v1969 = vadd.f32 %v1744, %v1968
        %v1970 = vpop.f32.mrb[0].mxu0
        %1971 = vmatprep.mubr.f32.mxu0 %v1068
        %1972 = vmatmul.mubr.f32.gmra.mrb[0].mxu0 %v1036
        %v1973 = vpop.f32.mrb[0].mxu0
        %v1974 = vadd.f32 %v1749, %v1973
        %v1975 = vpop.f32.mrb[0].mxu0
        %1976 = vmatprep.mubr.f32.mxu0 %v1069
        %1977 = vmatmul.mubr.f32.gmra.mrb[0].mxu0 %v1037
        %v1978 = vpop.f32.mrb[0].mxu0
        %v1979 = vadd.f32 %v1754, %v1978
        %v1980 = vpop.f32.mrb[0].mxu0
        %1981 = vmatprep.mubr.f32.mxu0 %v1070
        %1982 = vmatmul.mubr.f32.gmra.mrb[0].mxu0 %v1038
        %v1983 = vpop.f32.mrb[0].mxu0
        %v1984 = vadd.f32 %v1759, %v1983
        %v1985 = vpop.f32.mrb[0].mxu0
        %1986 = vdwg.mxu0
        %1987 = vmatprep.subr.mxu0 0.0
        %1988 = vmatpush1.msra.mxu0 %v1264
        %1989 = vmatprep.subr.mxu0 0.0
        %1990 = vmatpush1.msra.mxu0 %v1265
        %1991 = vmatprep.subr.mxu0 0.0
        %1992 = vmatpush1.msra.mxu0 %v1266
        %1993 = vmatprep.subr.mxu0 0.0
        %1994 = vmatpush1.msra.mxu0 %v1267
        %1995 = vmatprep.subr.mxu0 0.0
        %1996 = vmatpush1.msra.mxu0 %v1268
        %1997 = vmatprep.subr.mxu0 0.0
        %1998 = vmatpush1.msra.mxu0 %v1269
        %1999 = vmatprep.subr.mxu0 0.0
        %2000 = vmatpush1.msra.mxu0 %v1270
        %2001 = vmatprep.subr.mxu0 0.0
        %2002 = vmatpush1.msra.mxu0 %v1271
        %2003 = vmatprep.subr.mxu0 0.0
        %2004 = vmatpush1.msra.mxu0 %v1272
        %2005 = vmatprep.subr.mxu0 0.0
        %2006 = vmatpush1.msra.mxu0 %v1273
        %2007 = vmatprep.subr.mxu0 0.0
        %2008 = vmatpush1.msra.mxu0 %v1274
        %2009 = vmatprep.subr.mxu0 0.0
        %2010 = vmatpush1.msra.mxu0 %v1275
        %2011 = vmatprep.subr.mxu0 0.0
        %2012 = vmatpush1.msra.mxu0 %v1276
        %2013 = vmatprep.subr.mxu0 0.0
        %2014 = vmatpush1.msra.mxu0 %v1277
        %2015 = vmatprep.subr.mxu0 0.0
        %2016 = vmatpush1.msra.mxu0 %v1278
        %2017 = vmatprep.subr.mxu0 0.0
        %2018 = vmatpush1.msra.mxu0 %v1279
        %2019 = vmatprep.subr.mxu0 0.0
        %2020 = vmatpush1.msra.mxu0 %v1280
        %2021 = vmatprep.subr.mxu0 0.0
        %2022 = vmatpush1.msra.mxu0 %v1281
        %2023 = vmatprep.subr.mxu0 0.0
        %2024 = vmatpush1.msra.mxu0 %v1282
        %2025 = vmatprep.subr.mxu0 0.0
        %2026 = vmatpush1.msra.mxu0 %v1283
        %2027 = vmatprep.subr.mxu0 0.0
        %2028 = vmatpush1.msra.mxu0 %v1284
        %2029 = vmatprep.subr.mxu0 0.0
        %2030 = vmatpush1.msra.mxu0 %v1285
        %2031 = vmatprep.subr.mxu0 0.0
        %2032 = vmatpush1.msra.mxu0 %v1286
        %2033 = vmatprep.subr.mxu0 0.0
        %2034 = vmatpush1.msra.mxu0 %v1287
        %2035 = vmatprep.subr.mxu0 0.0
        %2036 = vmatpush1.msra.mxu0 %v1288
        %2037 = vmatprep.subr.mxu0 0.0
        %2038 = vmatpush1.msra.mxu0 %v1289
        %2039 = vmatprep.subr.mxu0 0.0
        %2040 = vmatpush1.msra.mxu0 %v1290
        %2041 = vmatprep.subr.mxu0 0.0
        %2042 = vmatpush1.msra.mxu0 %v1291
        %2043 = vmatprep.subr.mxu0 0.0
        %2044 = vmatpush1.msra.mxu0 %v1292
        %2045 = vmatprep.subr.mxu0 0.0
        %2046 = vmatpush1.msra.mxu0 %v1293
        %2047 = vmatprep.subr.mxu0 0.0
        %2048 = vmatpush1.msra.mxu0 %v1294
        %2049 = vmatprep.subr.mxu0 0.0
        %2050 = vmatpush1.msra.mxu0 %v1295
        %2051 = vmatprep.mubr.f32.mxu0 %v1104
        %2052 = vmatmul.mubr.f32.gmra.mrb[0].mxu0 %v1072
        %v2053 = vpop.f32.mrb[0].mxu0
        %v2054 = vadd.f32 %v1829, %v2053
        %v2055 = vpop.f32.mrb[0].mxu0
        %2056 = vmatprep.mubr.f32.mxu0 %v1105
        %2057 = vmatmul.mubr.f32.gmra.mrb[0].mxu0 %v1073
        %v2058 = vpop.f32.mrb[0].mxu0
        %v2059 = vadd.f32 %v1834, %v2058
        %v2060 = vpop.f32.mrb[0].mxu0
        %2061 = vmatprep.mubr.f32.mxu0 %v1106
        %2062 = vmatmul.mubr.f32.gmra.mrb[0].mxu0 %v1074
        %v2063 = vpop.f32.mrb[0].mxu0
        %v2064 = vadd.f32 %v1839, %v2063
        %v2065 = vpop.f32.mrb[0].mxu0
        %2066 = vmatprep.mubr.f32.mxu0 %v1107
        %2067 = vmatmul.mubr.f32.gmra.mrb[0].mxu0 %v1075
        %v2068 = vpop.f32.mrb[0].mxu0
        %v2069 = vadd.f32 %v1844, %v2068
        %v2070 = vpop.f32.mrb[0].mxu0
        %2071 = vmatprep.mubr.f32.mxu0 %v1108
        %2072 = vmatmul.mubr.f32.gmra.mrb[0].mxu0 %v1076
        %v2073 = vpop.f32.mrb[0].mxu0
        %v2074 = vadd.f32 %v1849, %v2073
        %v2075 = vpop.f32.mrb[0].mxu0
        %2076 = vmatprep.mubr.f32.mxu0 %v1109
        %2077 = vmatmul.mubr.f32.gmra.mrb[0].mxu0 %v1077
        %v2078 = vpop.f32.mrb[0].mxu0
        %v2079 = vadd.f32 %v1854, %v2078
        %v2080 = vpop.f32.mrb[0].mxu0
        %2081 = vmatprep.mubr.f32.mxu0 %v1110
        %2082 = vmatmul.mubr.f32.gmra.mrb[0].mxu0 %v1078
        %v2083 = vpop.f32.mrb[0].mxu0
        %v2084 = vadd.f32 %v1859, %v2083
        %v2085 = vpop.f32.mrb[0].mxu0
        %2086 = vmatprep.mubr.f32.mxu0 %v1111
        %2087 = vmatmul.mubr.f32.gmra.mrb[0].mxu0 %v1079
        %v2088 = vpop.f32.mrb[0].mxu0
        %v2089 = vadd.f32 %v1864, %v2088
        %v2090 = vpop.f32.mrb[0].mxu0
        %2091 = vmatprep.mubr.f32.mxu0 %v1112
        %2092 = vmatmul.mubr.f32.gmra.mrb[0].mxu0 %v1080
        %v2093 = vpop.f32.mrb[0].mxu0
        %v2094 = vadd.f32 %v1869, %v2093
        %v2095 = vpop.f32.mrb[0].mxu0
        %2096 = vmatprep.mubr.f32.mxu0 %v1113
        %2097 = vmatmul.mubr.f32.gmra.mrb[0].mxu0 %v1081
        %v2098 = vpop.f32.mrb[0].mxu0
        %v2099 = vadd.f32 %v1874, %v2098
        %v2100 = vpop.f32.mrb[0].mxu0
        %2101 = vmatprep.mubr.f32.mxu0 %v1114
        %2102 = vmatmul.mubr.f32.gmra.mrb[0].mxu0 %v1082
        %v2103 = vpop.f32.mrb[0].mxu0
        %v2104 = vadd.f32 %v1879, %v2103
        %v2105 = vpop.f32.mrb[0].mxu0
        %2106 = vmatprep.mubr.f32.mxu0 %v1115
        %2107 = vmatmul.mubr.f32.gmra.mrb[0].mxu0 %v1083
        %v2108 = vpop.f32.mrb[0].mxu0
        %v2109 = vadd.f32 %v1884, %v2108
        %v2110 = vpop.f32.mrb[0].mxu0
        %2111 = vmatprep.mubr.f32.mxu0 %v1116
        %2112 = vmatmul.mubr.f32.gmra.mrb[0].mxu0 %v1084
        %v2113 = vpop.f32.mrb[0].mxu0
        %v2114 = vadd.f32 %v1889, %v2113
        %v2115 = vpop.f32.mrb[0].mxu0
        %2116 = vmatprep.mubr.f32.mxu0 %v1117
        %2117 = vmatmul.mubr.f32.gmra.mrb[0].mxu0 %v1085
        %v2118 = vpop.f32.mrb[0].mxu0
        %v2119 = vadd.f32 %v1894, %v2118
        %v2120 = vpop.f32.mrb[0].mxu0
        %2121 = vmatprep.mubr.f32.mxu0 %v1118
        %2122 = vmatmul.mubr.f32.gmra.mrb[0].mxu0 %v1086
        %v2123 = vpop.f32.mrb[0].mxu0
        %v2124 = vadd.f32 %v1899, %v2123
        %v2125 = vpop.f32.mrb[0].mxu0
        %2126 = vmatprep.mubr.f32.mxu0 %v1119
        %2127 = vmatmul.mubr.f32.gmra.mrb[0].mxu0 %v1087
        %v2128 = vpop.f32.mrb[0].mxu0
        %v2129 = vadd.f32 %v1904, %v2128
        %v2130 = vpop.f32.mrb[0].mxu0
        %2131 = vmatprep.mubr.f32.mxu0 %v1120
        %2132 = vmatmul.mubr.f32.gmra.mrb[0].mxu0 %v1088
        %v2133 = vpop.f32.mrb[0].mxu0
        %v2134 = vadd.f32 %v1909, %v2133
        %v2135 = vpop.f32.mrb[0].mxu0
        %2136 = vmatprep.mubr.f32.mxu0 %v1121
        %2137 = vmatmul.mubr.f32.gmra.mrb[0].mxu0 %v1089
        %v2138 = vpop.f32.mrb[0].mxu0
        %v2139 = vadd.f32 %v1914, %v2138
        %v2140 = vpop.f32.mrb[0].mxu0
        %2141 = vmatprep.mubr.f32.mxu0 %v1122
        %2142 = vmatmul.mubr.f32.gmra.mrb[0].mxu0 %v1090
        %v2143 = vpop.f32.mrb[0].mxu0
        %v2144 = vadd.f32 %v1919, %v2143
        %v2145 = vpop.f32.mrb[0].mxu0
        %2146 = vmatprep.mubr.f32.mxu0 %v1123
        %2147 = vmatmul.mubr.f32.gmra.mrb[0].mxu0 %v1091
        %v2148 = vpop.f32.mrb[0].mxu0
        %v2149 = vadd.f32 %v1924, %v2148
        %v2150 = vpop.f32.mrb[0].mxu0
        %2151 = vmatprep.mubr.f32.mxu0 %v1124
        %2152 = vmatmul.mubr.f32.gmra.mrb[0].mxu0 %v1092
        %v2153 = vpop.f32.mrb[0].mxu0
        %v2154 = vadd.f32 %v1929, %v2153
        %v2155 = vpop.f32.mrb[0].mxu0
        %2156 = vmatprep.mubr.f32.mxu0 %v1125
        %2157 = vmatmul.mubr.f32.gmra.mrb[0].mxu0 %v1093
        %v2158 = vpop.f32.mrb[0].mxu0
        %v2159 = vadd.f32 %v1934, %v2158
        %v2160 = vpop.f32.mrb[0].mxu0
        %2161 = vmatprep.mubr.f32.mxu0 %v1126
        %2162 = vmatmul.mubr.f32.gmra.mrb[0].mxu0 %v1094
        %v2163 = vpop.f32.mrb[0].mxu0
        %v2164 = vadd.f32 %v1939, %v2163
        %v2165 = vpop.f32.mrb[0].mxu0
        %2166 = vmatprep.mubr.f32.mxu0 %v1127
        %2167 = vmatmul.mubr.f32.gmra.mrb[0].mxu0 %v1095
        %v2168 = vpop.f32.mrb[0].mxu0
        %v2169 = vadd.f32 %v1944, %v2168
        %v2170 = vpop.f32.mrb[0].mxu0
        %2171 = vmatprep.mubr.f32.mxu0 %v1128
        %2172 = vmatmul.mubr.f32.gmra.mrb[0].mxu0 %v1096
        %v2173 = vpop.f32.mrb[0].mxu0
        %v2174 = vadd.f32 %v1949, %v2173
        %v2175 = vpop.f32.mrb[0].mxu0
        %2176 = vmatprep.mubr.f32.mxu0 %v1129
        %2177 = vmatmul.mubr.f32.gmra.mrb[0].mxu0 %v1097
        %v2178 = vpop.f32.mrb[0].mxu0
        %v2179 = vadd.f32 %v1954, %v2178
        %v2180 = vpop.f32.mrb[0].mxu0
        %2181 = vmatprep.mubr.f32.mxu0 %v1130
        %2182 = vmatmul.mubr.f32.gmra.mrb[0].mxu0 %v1098
        %v2183 = vpop.f32.mrb[0].mxu0
        %v2184 = vadd.f32 %v1959, %v2183
        %v2185 = vpop.f32.mrb[0].mxu0
        %2186 = vmatprep.mubr.f32.mxu0 %v1131
        %2187 = vmatmul.mubr.f32.gmra.mrb[0].mxu0 %v1099
        %v2188 = vpop.f32.mrb[0].mxu0
        %v2189 = vadd.f32 %v1964, %v2188
        %v2190 = vpop.f32.mrb[0].mxu0
        %2191 = vmatprep.mubr.f32.mxu0 %v1132
        %2192 = vmatmul.mubr.f32.gmra.mrb[0].mxu0 %v1100
        %v2193 = vpop.f32.mrb[0].mxu0
        %v2194 = vadd.f32 %v1969, %v2193
        %v2195 = vpop.f32.mrb[0].mxu0
        %2196 = vmatprep.mubr.f32.mxu0 %v1133
        %2197 = vmatmul.mubr.f32.gmra.mrb[0].mxu0 %v1101
        %v2198 = vpop.f32.mrb[0].mxu0
        %v2199 = vadd.f32 %v1974, %v2198
        %v2200 = vpop.f32.mrb[0].mxu0
        %2201 = vmatprep.mubr.f32.mxu0 %v1134
        %2202 = vmatmul.mubr.f32.gmra.mrb[0].mxu0 %v1102
        %v2203 = vpop.f32.mrb[0].mxu0
        %v2204 = vadd.f32 %v1979, %v2203
        %v2205 = vpop.f32.mrb[0].mxu0
        %2206 = vmatprep.mubr.f32.mxu0 %v1135
        %2207 = vmatmul.mubr.f32.gmra.mrb[0].mxu0 %v1103
        %v2208 = vpop.f32.mrb[0].mxu0
        %v2209 = vadd.f32 %v1984, %v2208
        %v2210 = vpop.f32.mrb[0].mxu0
        %2211 = vdwg.mxu0
        %2212 = vmatprep.subr.mxu0 0.0
        %2213 = vmatpush1.msra.mxu0 %v1296
        %2214 = vmatprep.subr.mxu0 0.0
        %2215 = vmatpush1.msra.mxu0 %v1297
        %2216 = vmatprep.subr.mxu0 0.0
        %2217 = vmatpush1.msra.mxu0 %v1298
        %2218 = vmatprep.subr.mxu0 0.0
        %2219 = vmatpush1.msra.mxu0 %v1299
        %2220 = vmatprep.subr.mxu0 0.0
        %2221 = vmatpush1.msra.mxu0 %v1300
        %2222 = vmatprep.subr.mxu0 0.0
        %2223 = vmatpush1.msra.mxu0 %v1301
        %2224 = vmatprep.subr.mxu0 0.0
        %2225 = vmatpush1.msra.mxu0 %v1302
        %2226 = vmatprep.subr.mxu0 0.0
        %2227 = vmatpush1.msra.mxu0 %v1303
        %2228 = vmatprep.subr.mxu0 0.0
        %2229 = vmatpush1.msra.mxu0 %v1304
        %2230 = vmatprep.subr.mxu0 0.0
        %2231 = vmatpush1.msra.mxu0 %v1305
        %2232 = vmatprep.subr.mxu0 0.0
        %2233 = vmatpush1.msra.mxu0 %v1306
        %2234 = vmatprep.subr.mxu0 0.0
        %2235 = vmatpush1.msra.mxu0 %v1307
        %2236 = vmatprep.subr.mxu0 0.0
        %2237 = vmatpush1.msra.mxu0 %v1308
        %2238 = vmatprep.subr.mxu0 0.0
        %2239 = vmatpush1.msra.mxu0 %v1309
        %2240 = vmatprep.subr.mxu0 0.0
        %2241 = vmatpush1.msra.mxu0 %v1310
        %2242 = vmatprep.subr.mxu0 0.0
        %2243 = vmatpush1.msra.mxu0 %v1311
        %2244 = vmatprep.subr.mxu0 0.0
        %2245 = vmatpush1.msra.mxu0 0.0
        %2246 = vmatprep.subr.mxu0 0.0
        %2247 = vmatpush1.msra.mxu0 0.0
        %2248 = vmatprep.subr.mxu0 0.0
        %2249 = vmatpush1.msra.mxu0 0.0
        %2250 = vmatprep.subr.mxu0 0.0
        %2251 = vmatpush1.msra.mxu0 0.0
        %2252 = vmatprep.subr.mxu0 0.0
        %2253 = vmatpush1.msra.mxu0 0.0
        %2254 = vmatprep.subr.mxu0 0.0
        %2255 = vmatpush1.msra.mxu0 0.0
        %2256 = vmatprep.subr.mxu0 0.0
        %2257 = vmatpush1.msra.mxu0 0.0
        %2258 = vmatprep.subr.mxu0 0.0
        %2259 = vmatpush1.msra.mxu0 0.0
        %2260 = vmatprep.subr.mxu0 0.0
        %2261 = vmatpush1.msra.mxu0 0.0
        %2262 = vmatprep.subr.mxu0 0.0
        %2263 = vmatpush1.msra.mxu0 0.0
        %2264 = vmatprep.subr.mxu0 0.0
        %2265 = vmatpush1.msra.mxu0 0.0
        %2266 = vmatprep.subr.mxu0 0.0
        %2267 = vmatpush1.msra.mxu0 0.0
        %2268 = vmatprep.subr.mxu0 0.0
        %2269 = vmatpush1.msra.mxu0 0.0
        %2270 = vmatprep.subr.mxu0 0.0
        %2271 = vmatpush1.msra.mxu0 0.0
        %2272 = vmatprep.subr.mxu0 0.0
        %2273 = vmatpush1.msra.mxu0 0.0
        %2274 = vmatprep.subr.mxu0 0.0
        %2275 = vmatpush1.msra.mxu0 0.0
        %2276 = vmatprep.mubr.f32.mxu0 0.0
        %2277 = vmatmul.mubr.f32.gmra.mrb[0].mxu0 %v1136
        %v2278 = vpop.f32.mrb[0].mxu0
        %v2279 = vadd.f32 %v2054, %v2278
        %v2280 = vpop.f32.mrb[0].mxu0
        %2281 = vmatprep.mubr.f32.mxu0 0.0
        %2282 = vmatmul.mubr.f32.gmra.mrb[0].mxu0 %v1137
        %v2283 = vpop.f32.mrb[0].mxu0
        %v2284 = vadd.f32 %v2059, %v2283
        %v2285 = vpop.f32.mrb[0].mxu0
        %2286 = vmatprep.mubr.f32.mxu0 0.0
        %2287 = vmatmul.mubr.f32.gmra.mrb[0].mxu0 %v1138
        %v2288 = vpop.f32.mrb[0].mxu0
        %v2289 = vadd.f32 %v2064, %v2288
        %v2290 = vpop.f32.mrb[0].mxu0
        %2291 = vmatprep.mubr.f32.mxu0 0.0
        %2292 = vmatmul.mubr.f32.gmra.mrb[0].mxu0 %v1139
        %v2293 = vpop.f32.mrb[0].mxu0
        %v2294 = vadd.f32 %v2069, %v2293
        %v2295 = vpop.f32.mrb[0].mxu0
        %2296 = vmatprep.mubr.f32.mxu0 0.0
        %2297 = vmatmul.mubr.f32.gmra.mrb[0].mxu0 %v1140
        %v2298 = vpop.f32.mrb[0].mxu0
        %v2299 = vadd.f32 %v2074, %v2298
        %v2300 = vpop.f32.mrb[0].mxu0
        %2301 = vmatprep.mubr.f32.mxu0 0.0
        %2302 = vmatmul.mubr.f32.gmra.mrb[0].mxu0 %v1141
        %v2303 = vpop.f32.mrb[0].mxu0
        %v2304 = vadd.f32 %v2079, %v2303
        %v2305 = vpop.f32.mrb[0].mxu0
        %2306 = vmatprep.mubr.f32.mxu0 0.0
        %2307 = vmatmul.mubr.f32.gmra.mrb[0].mxu0 %v1142
        %v2308 = vpop.f32.mrb[0].mxu0
        %v2309 = vadd.f32 %v2084, %v2308
        %v2310 = vpop.f32.mrb[0].mxu0
        %2311 = vmatprep.mubr.f32.mxu0 0.0
        %2312 = vmatmul.mubr.f32.gmra.mrb[0].mxu0 %v1143
        %v2313 = vpop.f32.mrb[0].mxu0
        %v2314 = vadd.f32 %v2089, %v2313
        %v2315 = vpop.f32.mrb[0].mxu0
        %2316 = vmatprep.mubr.f32.mxu0 0.0
        %2317 = vmatmul.mubr.f32.gmra.mrb[0].mxu0 %v1144
        %v2318 = vpop.f32.mrb[0].mxu0
        %v2319 = vadd.f32 %v2094, %v2318
        %v2320 = vpop.f32.mrb[0].mxu0
        %2321 = vmatprep.mubr.f32.mxu0 0.0
        %2322 = vmatmul.mubr.f32.gmra.mrb[0].mxu0 %v1145
        %v2323 = vpop.f32.mrb[0].mxu0
        %v2324 = vadd.f32 %v2099, %v2323
        %v2325 = vpop.f32.mrb[0].mxu0
        %2326 = vmatprep.mubr.f32.mxu0 0.0
        %2327 = vmatmul.mubr.f32.gmra.mrb[0].mxu0 %v1146
        %v2328 = vpop.f32.mrb[0].mxu0
        %v2329 = vadd.f32 %v2104, %v2328
        %v2330 = vpop.f32.mrb[0].mxu0
        %2331 = vmatprep.mubr.f32.mxu0 0.0
        %2332 = vmatmul.mubr.f32.gmra.mrb[0].mxu0 %v1147
        %v2333 = vpop.f32.mrb[0].mxu0
        %v2334 = vadd.f32 %v2109, %v2333
        %v2335 = vpop.f32.mrb[0].mxu0
        %2336 = vmatprep.mubr.f32.mxu0 0.0
        %2337 = vmatmul.mubr.f32.gmra.mrb[0].mxu0 %v1148
        %v2338 = vpop.f32.mrb[0].mxu0
        %v2339 = vadd.f32 %v2114, %v2338
        %v2340 = vpop.f32.mrb[0].mxu0
        %2341 = vmatprep.mubr.f32.mxu0 0.0
        %2342 = vmatmul.mubr.f32.gmra.mrb[0].mxu0 %v1149
        %v2343 = vpop.f32.mrb[0].mxu0
        %v2344 = vadd.f32 %v2119, %v2343
        %v2345 = vpop.f32.mrb[0].mxu0
        %2346 = vmatprep.mubr.f32.mxu0 0.0
        %2347 = vmatmul.mubr.f32.gmra.mrb[0].mxu0 %v1150
        %v2348 = vpop.f32.mrb[0].mxu0
        %v2349 = vadd.f32 %v2124, %v2348
        %v2350 = vpop.f32.mrb[0].mxu0
        %2351 = vmatprep.mubr.f32.mxu0 0.0
        %2352 = vmatmul.mubr.f32.gmra.mrb[0].mxu0 %v1151
        %v2353 = vpop.f32.mrb[0].mxu0
        %v2354 = vadd.f32 %v2129, %v2353
        %v2355 = vpop.f32.mrb[0].mxu0
        %2356 = vmatprep.mubr.f32.mxu0 0.0
        %2357 = vmatmul.mubr.f32.gmra.mrb[0].mxu0 %v1152
        %v2358 = vpop.f32.mrb[0].mxu0
        %v2359 = vadd.f32 %v2134, %v2358
        %v2360 = vpop.f32.mrb[0].mxu0
        %2361 = vmatprep.mubr.f32.mxu0 0.0
        %2362 = vmatmul.mubr.f32.gmra.mrb[0].mxu0 %v1153
        %v2363 = vpop.f32.mrb[0].mxu0
        %v2364 = vadd.f32 %v2139, %v2363
        %v2365 = vpop.f32.mrb[0].mxu0
        %2366 = vmatprep.mubr.f32.mxu0 0.0
        %2367 = vmatmul.mubr.f32.gmra.mrb[0].mxu0 %v1154
        %v2368 = vpop.f32.mrb[0].mxu0
        %v2369 = vadd.f32 %v2144, %v2368
        %v2370 = vpop.f32.mrb[0].mxu0
        %2371 = vmatprep.mubr.f32.mxu0 0.0
        %2372 = vmatmul.mubr.f32.gmra.mrb[0].mxu0 %v1155
        %v2373 = vpop.f32.mrb[0].mxu0
        %v2374 = vadd.f32 %v2149, %v2373
        %v2375 = vpop.f32.mrb[0].mxu0
        %2376 = vmatprep.mubr.f32.mxu0 0.0
        %2377 = vmatmul.mubr.f32.gmra.mrb[0].mxu0 %v1156
        %v2378 = vpop.f32.mrb[0].mxu0
        %v2379 = vadd.f32 %v2154, %v2378
        %v2380 = vpop.f32.mrb[0].mxu0
        %2381 = vmatprep.mubr.f32.mxu0 0.0
        %2382 = vmatmul.mubr.f32.gmra.mrb[0].mxu0 %v1157
        %v2383 = vpop.f32.mrb[0].mxu0
        %v2384 = vadd.f32 %v2159, %v2383
        %v2385 = vpop.f32.mrb[0].mxu0
        %2386 = vmatprep.mubr.f32.mxu0 0.0
        %2387 = vmatmul.mubr.f32.gmra.mrb[0].mxu0 %v1158
        %v2388 = vpop.f32.mrb[0].mxu0
        %v2389 = vadd.f32 %v2164, %v2388
        %v2390 = vpop.f32.mrb[0].mxu0
        %2391 = vmatprep.mubr.f32.mxu0 0.0
        %2392 = vmatmul.mubr.f32.gmra.mrb[0].mxu0 %v1159
        %v2393 = vpop.f32.mrb[0].mxu0
        %v2394 = vadd.f32 %v2169, %v2393
        %v2395 = vpop.f32.mrb[0].mxu0
        %2396 = vmatprep.mubr.f32.mxu0 0.0
        %2397 = vmatmul.mubr.f32.gmra.mrb[0].mxu0 %v1160
        %v2398 = vpop.f32.mrb[0].mxu0
        %v2399 = vadd.f32 %v2174, %v2398
        %v2400 = vpop.f32.mrb[0].mxu0
        %2401 = vmatprep.mubr.f32.mxu0 0.0
        %2402 = vmatmul.mubr.f32.gmra.mrb[0].mxu0 %v1161
        %v2403 = vpop.f32.mrb[0].mxu0
        %v2404 = vadd.f32 %v2179, %v2403
        %v2405 = vpop.f32.mrb[0].mxu0
        %2406 = vmatprep.mubr.f32.mxu0 0.0
        %2407 = vmatmul.mubr.f32.gmra.mrb[0].mxu0 %v1162
        %v2408 = vpop.f32.mrb[0].mxu0
        %v2409 = vadd.f32 %v2184, %v2408
        %v2410 = vpop.f32.mrb[0].mxu0
        %2411 = vmatprep.mubr.f32.mxu0 0.0
        %2412 = vmatmul.mubr.f32.gmra.mrb[0].mxu0 %v1163
        %v2413 = vpop.f32.mrb[0].mxu0
        %v2414 = vadd.f32 %v2189, %v2413
        %v2415 = vpop.f32.mrb[0].mxu0
        %2416 = vmatprep.mubr.f32.mxu0 0.0
        %2417 = vmatmul.mubr.f32.gmra.mrb[0].mxu0 %v1164
        %v2418 = vpop.f32.mrb[0].mxu0
        %v2419 = vadd.f32 %v2194, %v2418
        %v2420 = vpop.f32.mrb[0].mxu0
        %2421 = vmatprep.mubr.f32.mxu0 0.0
        %2422 = vmatmul.mubr.f32.gmra.mrb[0].mxu0 %v1165
        %v2423 = vpop.f32.mrb[0].mxu0
        %v2424 = vadd.f32 %v2199, %v2423
        %v2425 = vpop.f32.mrb[0].mxu0
        %2426 = vmatprep.mubr.f32.mxu0 0.0
        %2427 = vmatmul.mubr.f32.gmra.mrb[0].mxu0 %v1166
        %v2428 = vpop.f32.mrb[0].mxu0
        %v2429 = vadd.f32 %v2204, %v2428
        %v2430 = vpop.f32.mrb[0].mxu0
        %2431 = vmatprep.mubr.f32.mxu0 0.0
        %2432 = vmatmul.mubr.f32.gmra.mrb[0].mxu0 %v1167
        %v2433 = vpop.f32.mrb[0].mxu0
        %v2434 = vadd.f32 %v2209, %v2433
        %v2435 = vpop.f32.mrb[0].mxu0
        %2436 = vdwg.mxu0
        %v2437 = vld [vmem:[%s5] sm:$0x1]
        %v2439 = vlaneseq
        %v2440 = vshrl.u32 %v2439, 7
        %v2441 = vsub.s32 0, %v2440
        %v2442 = vrot.slane %v2437, %v2441
        %v2444 = vmul.f32 %v2279, %v2442
        %v2445 = vmul.f32 %v2284, %v2442
        %v2446 = vmul.f32 %v2289, %v2442
        %v2447 = vmul.f32 %v2294, %v2442
        %v2448 = vmul.f32 %v2299, %v2442
        %v2449 = vmul.f32 %v2304, %v2442
        %v2450 = vmul.f32 %v2309, %v2442
        %v2451 = vmul.f32 %v2314, %v2442
        %v2452 = vmul.f32 %v2319, %v2442
        %v2453 = vmul.f32 %v2324, %v2442
        %v2454 = vmul.f32 %v2329, %v2442
        %v2455 = vmul.f32 %v2334, %v2442
        %v2456 = vmul.f32 %v2339, %v2442
        %v2457 = vmul.f32 %v2344, %v2442
        %v2458 = vmul.f32 %v2349, %v2442
        %v2459 = vmul.f32 %v2354, %v2442
        %v2460 = vmul.f32 %v2359, %v2442
        %v2461 = vmul.f32 %v2364, %v2442
        %v2462 = vmul.f32 %v2369, %v2442
        %v2463 = vmul.f32 %v2374, %v2442
        %v2464 = vmul.f32 %v2379, %v2442
        %v2465 = vmul.f32 %v2384, %v2442
        %v2466 = vmul.f32 %v2389, %v2442
        %v2467 = vmul.f32 %v2394, %v2442
        %v2468 = vmul.f32 %v2399, %v2442
        %v2469 = vmul.f32 %v2404, %v2442
        %v2470 = vmul.f32 %v2409, %v2442
        %v2471 = vmul.f32 %v2414, %v2442
        %v2472 = vmul.f32 %v2419, %v2442
        %v2473 = vmul.f32 %v2424, %v2442
        %v2474 = vmul.f32 %v2429, %v2442
        %v2475 = vmul.f32 %v2434, %v2442
        %v2476 = vld [vmem:[%s6] sm:$0x1]
        %v2478 = vlaneseq
        %v2479 = vshrl.u32 %v2478, 7
        %v2480 = vsub.s32 0, %v2479
        %v2481 = vrot.slane %v2476, %v2480
        %v2483 = vadd.f32 %v2444, %v2481
        %v2484 = vadd.f32 %v2445, %v2481
        %v2485 = vadd.f32 %v2446, %v2481
        %v2486 = vadd.f32 %v2447, %v2481
        %v2487 = vadd.f32 %v2448, %v2481
        %v2488 = vadd.f32 %v2449, %v2481
        %v2489 = vadd.f32 %v2450, %v2481
        %v2490 = vadd.f32 %v2451, %v2481
        %v2491 = vadd.f32 %v2452, %v2481
        %v2492 = vadd.f32 %v2453, %v2481
        %v2493 = vadd.f32 %v2454, %v2481
        %v2494 = vadd.f32 %v2455, %v2481
        %v2495 = vadd.f32 %v2456, %v2481
        %v2496 = vadd.f32 %v2457, %v2481
        %v2497 = vadd.f32 %v2458, %v2481
        %v2498 = vadd.f32 %v2459, %v2481
        %v2499 = vadd.f32 %v2460, %v2481
        %v2500 = vadd.f32 %v2461, %v2481
        %v2501 = vadd.f32 %v2462, %v2481
        %v2502 = vadd.f32 %v2463, %v2481
        %v2503 = vadd.f32 %v2464, %v2481
        %v2504 = vadd.f32 %v2465, %v2481
        %v2505 = vadd.f32 %v2466, %v2481
        %v2506 = vadd.f32 %v2467, %v2481
        %v2507 = vadd.f32 %v2468, %v2481
        %v2508 = vadd.f32 %v2469, %v2481
        %v2509 = vadd.f32 %v2470, %v2481
        %v2510 = vadd.f32 %v2471, %v2481
        %v2511 = vadd.f32 %v2472, %v2481
        %v2512 = vadd.f32 %v2473, %v2481
        %v2513 = vadd.f32 %v2474, %v2481
        %v2514 = vadd.f32 %v2475, %v2481
        %v2515 = vmax.f32 %v2483, 0.0
        %v2516 = vmax.f32 %v2484, 0.0
        %v2517 = vmax.f32 %v2485, 0.0
        %v2518 = vmax.f32 %v2486, 0.0
        %v2519 = vmax.f32 %v2487, 0.0
        %v2520 = vmax.f32 %v2488, 0.0
        %v2521 = vmax.f32 %v2489, 0.0
        %v2522 = vmax.f32 %v2490, 0.0
        %v2523 = vmax.f32 %v2491, 0.0
        %v2524 = vmax.f32 %v2492, 0.0
        %v2525 = vmax.f32 %v2493, 0.0
        %v2526 = vmax.f32 %v2494, 0.0
        %v2527 = vmax.f32 %v2495, 0.0
        %v2528 = vmax.f32 %v2496, 0.0
        %v2529 = vmax.f32 %v2497, 0.0
        %v2530 = vmax.f32 %v2498, 0.0
        %v2531 = vmax.f32 %v2499, 0.0
        %v2532 = vmax.f32 %v2500, 0.0
        %v2533 = vmax.f32 %v2501, 0.0
        %v2534 = vmax.f32 %v2502, 0.0
        %v2535 = vmax.f32 %v2503, 0.0
        %v2536 = vmax.f32 %v2504, 0.0
        %v2537 = vmax.f32 %v2505, 0.0
        %v2538 = vmax.f32 %v2506, 0.0
        %v2539 = vmax.f32 %v2507, 0.0
        %v2540 = vmax.f32 %v2508, 0.0
        %v2541 = vmax.f32 %v2509, 0.0
        %v2542 = vmax.f32 %v2510, 0.0
        %v2543 = vmax.f32 %v2511, 0.0
        %v2544 = vmax.f32 %v2512, 0.0
        %v2545 = vmax.f32 %v2513, 0.0
        %v2546 = vmax.f32 %v2514, 0.0
        %v2547 = vld [vmem:[#allocation9] sm:$0xff]
        %v2548 = vld [vmem:[#allocation9 + $0x8] sm:$0xff]
        %v2549 = vld [vmem:[#allocation9 + $0x10] sm:$0xff]
        %v2550 = vld [vmem:[#allocation9 + $0x18] sm:$0xff]
        %v2551 = vld [vmem:[#allocation9 + $0x20] sm:$0xff]
        %v2552 = vld [vmem:[#allocation9 + $0x28] sm:$0xff]
        %v2553 = vld [vmem:[#allocation9 + $0x30] sm:$0xff]
        %v2554 = vld [vmem:[#allocation9 + $0x38] sm:$0xff]
        %v2555 = vld [vmem:[#allocation9 + $0x40] sm:$0xff]
        %v2556 = vld [vmem:[#allocation9 + $0x48] sm:$0xff]
        %v2557 = vld [vmem:[#allocation9 + $0x50] sm:$0xff]
        %v2558 = vld [vmem:[#allocation9 + $0x58] sm:$0xff]
        %v2559 = vld [vmem:[#allocation9 + $0x60] sm:$0xff]
        %v2560 = vld [vmem:[#allocation9 + $0x68] sm:$0xff]
        %v2561 = vld [vmem:[#allocation9 + $0x70] sm:$0xff]
        %v2562 = vld [vmem:[#allocation9 + $0x78] sm:$0xff]
        %2563 = vmatprep.subr.mxu0 0.0
        %2564 = vmatpush1.msra.mxu0 %v2547
        %2565 = vmatprep.subr.mxu0 0.0
        %2566 = vmatpush1.msra.mxu0 %v2548
        %2567 = vmatprep.subr.mxu0 0.0
        %2568 = vmatpush1.msra.mxu0 %v2549
        %2569 = vmatprep.subr.mxu0 0.0
        %2570 = vmatpush1.msra.mxu0 %v2550
        %2571 = vmatprep.subr.mxu0 0.0
        %2572 = vmatpush1.msra.mxu0 %v2551
        %2573 = vmatprep.subr.mxu0 0.0
        %2574 = vmatpush1.msra.mxu0 %v2552
        %2575 = vmatprep.subr.mxu0 0.0
        %2576 = vmatpush1.msra.mxu0 %v2553
        %2577 = vmatprep.subr.mxu0 0.0
        %2578 = vmatpush1.msra.mxu0 %v2554
        %2579 = vmatprep.subr.mxu0 0.0
        %2580 = vmatpush1.msra.mxu0 %v2555
        %2581 = vmatprep.subr.mxu0 0.0
        %2582 = vmatpush1.msra.mxu0 %v2556
        %2583 = vmatprep.subr.mxu0 0.0
        %2584 = vmatpush1.msra.mxu0 %v2557
        %2585 = vmatprep.subr.mxu0 0.0
        %2586 = vmatpush1.msra.mxu0 %v2558
        %2587 = vmatprep.subr.mxu0 0.0
        %2588 = vmatpush1.msra.mxu0 %v2559
        %2589 = vmatprep.subr.mxu0 0.0
        %2590 = vmatpush1.msra.mxu0 %v2560
        %2591 = vmatprep.subr.mxu0 0.0
        %2592 = vmatpush1.msra.mxu0 %v2561
        %2593 = vmatprep.subr.mxu0 0.0
        %2594 = vmatpush1.msra.mxu0 %v2562
        %2595 = vmatprep.subr.mxu0 0.0
        %2596 = vmatpush1.msra.mxu0 0.0
        %2597 = vmatprep.subr.mxu0 0.0
        %2598 = vmatpush1.msra.mxu0 0.0
        %2599 = vmatprep.subr.mxu0 0.0
        %2600 = vmatpush1.msra.mxu0 0.0
        %2601 = vmatprep.subr.mxu0 0.0
        %2602 = vmatpush1.msra.mxu0 0.0
        %2603 = vmatprep.subr.mxu0 0.0
        %2604 = vmatpush1.msra.mxu0 0.0
        %2605 = vmatprep.subr.mxu0 0.0
        %2606 = vmatpush1.msra.mxu0 0.0
        %2607 = vmatprep.subr.mxu0 0.0
        %2608 = vmatpush1.msra.mxu0 0.0
        %2609 = vmatprep.subr.mxu0 0.0
        %2610 = vmatpush1.msra.mxu0 0.0
        %2611 = vmatprep.subr.mxu0 0.0
        %2612 = vmatpush1.msra.mxu0 0.0
        %2613 = vmatprep.subr.mxu0 0.0
        %2614 = vmatpush1.msra.mxu0 0.0
        %2615 = vmatprep.subr.mxu0 0.0
        %2616 = vmatpush1.msra.mxu0 0.0
        %2617 = vmatprep.subr.mxu0 0.0
        %2618 = vmatpush1.msra.mxu0 0.0
        %2619 = vmatprep.subr.mxu0 0.0
        %2620 = vmatpush1.msra.mxu0 0.0
        %2621 = vmatprep.subr.mxu0 0.0
        %2622 = vmatpush1.msra.mxu0 0.0
        %2623 = vmatprep.subr.mxu0 0.0
        %2624 = vmatpush1.msra.mxu0 0.0
        %2625 = vmatprep.subr.mxu0 0.0
        %2626 = vmatpush1.msra.mxu0 0.0
        %2627 = vmatprep.mubr.f32.mxu0 0.0
        %2628 = vmatmul.mubr.f32.gmra.mrb[0].mxu0 %v2515
        %v2629 = vpop.f32.mrb[0].mxu0
        %v2630 = vadd.f32 0.0, %v2629
        %v2631 = vpop.f32.mrb[0].mxu0
        %2632 = vmatprep.mubr.f32.mxu0 0.0
        %2633 = vmatmul.mubr.f32.gmra.mrb[0].mxu0 %v2516
        %v2634 = vpop.f32.mrb[0].mxu0
        %v2635 = vadd.f32 0.0, %v2634
        %v2636 = vpop.f32.mrb[0].mxu0
        %2637 = vmatprep.mubr.f32.mxu0 0.0
        %2638 = vmatmul.mubr.f32.gmra.mrb[0].mxu0 %v2517
        %v2639 = vpop.f32.mrb[0].mxu0
        %v2640 = vadd.f32 0.0, %v2639
        %v2641 = vpop.f32.mrb[0].mxu0
        %2642 = vmatprep.mubr.f32.mxu0 0.0
        %2643 = vmatmul.mubr.f32.gmra.mrb[0].mxu0 %v2518
        %v2644 = vpop.f32.mrb[0].mxu0
        %v2645 = vadd.f32 0.0, %v2644
        %v2646 = vpop.f32.mrb[0].mxu0
        %2647 = vmatprep.mubr.f32.mxu0 0.0
        %2648 = vmatmul.mubr.f32.gmra.mrb[0].mxu0 %v2519
        %v2649 = vpop.f32.mrb[0].mxu0
        %v2650 = vadd.f32 0.0, %v2649
        %v2651 = vpop.f32.mrb[0].mxu0
        %2652 = vmatprep.mubr.f32.mxu0 0.0
        %2653 = vmatmul.mubr.f32.gmra.mrb[0].mxu0 %v2520
        %v2654 = vpop.f32.mrb[0].mxu0
        %v2655 = vadd.f32 0.0, %v2654
        %v2656 = vpop.f32.mrb[0].mxu0
        %2657 = vmatprep.mubr.f32.mxu0 0.0
        %2658 = vmatmul.mubr.f32.gmra.mrb[0].mxu0 %v2521
        %v2659 = vpop.f32.mrb[0].mxu0
        %v2660 = vadd.f32 0.0, %v2659
        %v2661 = vpop.f32.mrb[0].mxu0
        %2662 = vmatprep.mubr.f32.mxu0 0.0
        %2663 = vmatmul.mubr.f32.gmra.mrb[0].mxu0 %v2522
        %v2664 = vpop.f32.mrb[0].mxu0
        %v2665 = vadd.f32 0.0, %v2664
        %v2666 = vpop.f32.mrb[0].mxu0
        %2667 = vmatprep.mubr.f32.mxu0 0.0
        %2668 = vmatmul.mubr.f32.gmra.mrb[0].mxu0 %v2523
        %v2669 = vpop.f32.mrb[0].mxu0
        %v2670 = vadd.f32 0.0, %v2669
        %v2671 = vpop.f32.mrb[0].mxu0
        %2672 = vmatprep.mubr.f32.mxu0 0.0
        %2673 = vmatmul.mubr.f32.gmra.mrb[0].mxu0 %v2524
        %v2674 = vpop.f32.mrb[0].mxu0
        %v2675 = vadd.f32 0.0, %v2674
        %v2676 = vpop.f32.mrb[0].mxu0
        %2677 = vmatprep.mubr.f32.mxu0 0.0
        %2678 = vmatmul.mubr.f32.gmra.mrb[0].mxu0 %v2525
        %v2679 = vpop.f32.mrb[0].mxu0
        %v2680 = vadd.f32 0.0, %v2679
        %v2681 = vpop.f32.mrb[0].mxu0
        %2682 = vmatprep.mubr.f32.mxu0 0.0
        %2683 = vmatmul.mubr.f32.gmra.mrb[0].mxu0 %v2526
        %v2684 = vpop.f32.mrb[0].mxu0
        %v2685 = vadd.f32 0.0, %v2684
        %v2686 = vpop.f32.mrb[0].mxu0
        %2687 = vmatprep.mubr.f32.mxu0 0.0
        %2688 = vmatmul.mubr.f32.gmra.mrb[0].mxu0 %v2527
        %v2689 = vpop.f32.mrb[0].mxu0
        %v2690 = vadd.f32 0.0, %v2689
        %v2691 = vpop.f32.mrb[0].mxu0
        %2692 = vmatprep.mubr.f32.mxu0 0.0
        %2693 = vmatmul.mubr.f32.gmra.mrb[0].mxu0 %v2528
        %v2694 = vpop.f32.mrb[0].mxu0
        %v2695 = vadd.f32 0.0, %v2694
        %v2696 = vpop.f32.mrb[0].mxu0
        %2697 = vmatprep.mubr.f32.mxu0 0.0
        %2698 = vmatmul.mubr.f32.gmra.mrb[0].mxu0 %v2529
        %v2699 = vpop.f32.mrb[0].mxu0
        %v2700 = vadd.f32 0.0, %v2699
        %v2701 = vpop.f32.mrb[0].mxu0
        %2702 = vmatprep.mubr.f32.mxu0 0.0
        %2703 = vmatmul.mubr.f32.gmra.mrb[0].mxu0 %v2530
        %v2704 = vpop.f32.mrb[0].mxu0
        %v2705 = vadd.f32 0.0, %v2704
        %v2706 = vpop.f32.mrb[0].mxu0
        %2707 = vmatprep.mubr.f32.mxu0 0.0
        %2708 = vmatmul.mubr.f32.gmra.mrb[0].mxu0 %v2531
        %v2709 = vpop.f32.mrb[0].mxu0
        %v2710 = vadd.f32 0.0, %v2709
        %v2711 = vpop.f32.mrb[0].mxu0
        %2712 = vmatprep.mubr.f32.mxu0 0.0
        %2713 = vmatmul.mubr.f32.gmra.mrb[0].mxu0 %v2532
        %v2714 = vpop.f32.mrb[0].mxu0
        %v2715 = vadd.f32 0.0, %v2714
        %v2716 = vpop.f32.mrb[0].mxu0
        %2717 = vmatprep.mubr.f32.mxu0 0.0
        %2718 = vmatmul.mubr.f32.gmra.mrb[0].mxu0 %v2533
        %v2719 = vpop.f32.mrb[0].mxu0
        %v2720 = vadd.f32 0.0, %v2719
        %v2721 = vpop.f32.mrb[0].mxu0
        %2722 = vmatprep.mubr.f32.mxu0 0.0
        %2723 = vmatmul.mubr.f32.gmra.mrb[0].mxu0 %v2534
        %v2724 = vpop.f32.mrb[0].mxu0
        %v2725 = vadd.f32 0.0, %v2724
        %v2726 = vpop.f32.mrb[0].mxu0
        %2727 = vmatprep.mubr.f32.mxu0 0.0
        %2728 = vmatmul.mubr.f32.gmra.mrb[0].mxu0 %v2535
        %v2729 = vpop.f32.mrb[0].mxu0
        %v2730 = vadd.f32 0.0, %v2729
        %v2731 = vpop.f32.mrb[0].mxu0
        %2732 = vmatprep.mubr.f32.mxu0 0.0
        %2733 = vmatmul.mubr.f32.gmra.mrb[0].mxu0 %v2536
        %v2734 = vpop.f32.mrb[0].mxu0
        %v2735 = vadd.f32 0.0, %v2734
        %v2736 = vpop.f32.mrb[0].mxu0
        %2737 = vmatprep.mubr.f32.mxu0 0.0
        %2738 = vmatmul.mubr.f32.gmra.mrb[0].mxu0 %v2537
        %v2739 = vpop.f32.mrb[0].mxu0
        %v2740 = vadd.f32 0.0, %v2739
        %v2741 = vpop.f32.mrb[0].mxu0
        %2742 = vmatprep.mubr.f32.mxu0 0.0
        %2743 = vmatmul.mubr.f32.gmra.mrb[0].mxu0 %v2538
        %v2744 = vpop.f32.mrb[0].mxu0
        %v2745 = vadd.f32 0.0, %v2744
        %v2746 = vpop.f32.mrb[0].mxu0
        %2747 = vmatprep.mubr.f32.mxu0 0.0
        %2748 = vmatmul.mubr.f32.gmra.mrb[0].mxu0 %v2539
        %v2749 = vpop.f32.mrb[0].mxu0
        %v2750 = vadd.f32 0.0, %v2749
        %v2751 = vpop.f32.mrb[0].mxu0
        %2752 = vmatprep.mubr.f32.mxu0 0.0
        %2753 = vmatmul.mubr.f32.gmra.mrb[0].mxu0 %v2540
        %v2754 = vpop.f32.mrb[0].mxu0
        %v2755 = vadd.f32 0.0, %v2754
        %v2756 = vpop.f32.mrb[0].mxu0
        %2757 = vmatprep.mubr.f32.mxu0 0.0
        %2758 = vmatmul.mubr.f32.gmra.mrb[0].mxu0 %v2541
        %v2759 = vpop.f32.mrb[0].mxu0
        %v2760 = vadd.f32 0.0, %v2759
        %v2761 = vpop.f32.mrb[0].mxu0
        %2762 = vmatprep.mubr.f32.mxu0 0.0
        %2763 = vmatmul.mubr.f32.gmra.mrb[0].mxu0 %v2542
        %v2764 = vpop.f32.mrb[0].mxu0
        %v2765 = vadd.f32 0.0, %v2764
        %v2766 = vpop.f32.mrb[0].mxu0
        %2767 = vmatprep.mubr.f32.mxu0 0.0
        %2768 = vmatmul.mubr.f32.gmra.mrb[0].mxu0 %v2543
        %v2769 = vpop.f32.mrb[0].mxu0
        %v2770 = vadd.f32 0.0, %v2769
        %v2771 = vpop.f32.mrb[0].mxu0
        %2772 = vmatprep.mubr.f32.mxu0 0.0
        %2773 = vmatmul.mubr.f32.gmra.mrb[0].mxu0 %v2544
        %v2774 = vpop.f32.mrb[0].mxu0
        %v2775 = vadd.f32 0.0, %v2774
        %v2776 = vpop.f32.mrb[0].mxu0
        %2777 = vmatprep.mubr.f32.mxu0 0.0
        %2778 = vmatmul.mubr.f32.gmra.mrb[0].mxu0 %v2545
        %v2779 = vpop.f32.mrb[0].mxu0
        %v2780 = vadd.f32 0.0, %v2779
        %v2781 = vpop.f32.mrb[0].mxu0
        %2782 = vmatprep.mubr.f32.mxu0 0.0
        %2783 = vmatmul.mubr.f32.gmra.mrb[0].mxu0 %v2546
        %v2784 = vpop.f32.mrb[0].mxu0
        %v2785 = vadd.f32 0.0, %v2784
        %v2786 = vpop.f32.mrb[0].mxu0
        %2787 = vdwg.mxu0
        %v2788 = vld [vmem:[%s8] sm:$0x1]
        %v2790 = vlaneseq
        %v2791 = vshrl.u32 %v2790, 7
        %v2792 = vsub.s32 0, %v2791
        %v2793 = vrot.slane %v2788, %v2792
        %v2795 = vmul.f32 %v2630, %v2793
        %v2796 = vmul.f32 %v2635, %v2793
        %v2797 = vmul.f32 %v2640, %v2793
        %v2798 = vmul.f32 %v2645, %v2793
        %v2799 = vmul.f32 %v2650, %v2793
        %v2800 = vmul.f32 %v2655, %v2793
        %v2801 = vmul.f32 %v2660, %v2793
        %v2802 = vmul.f32 %v2665, %v2793
        %v2803 = vmul.f32 %v2670, %v2793
        %v2804 = vmul.f32 %v2675, %v2793
        %v2805 = vmul.f32 %v2680, %v2793
        %v2806 = vmul.f32 %v2685, %v2793
        %v2807 = vmul.f32 %v2690, %v2793
        %v2808 = vmul.f32 %v2695, %v2793
        %v2809 = vmul.f32 %v2700, %v2793
        %v2810 = vmul.f32 %v2705, %v2793
        %v2811 = vmul.f32 %v2710, %v2793
        %v2812 = vmul.f32 %v2715, %v2793
        %v2813 = vmul.f32 %v2720, %v2793
        %v2814 = vmul.f32 %v2725, %v2793
        %v2815 = vmul.f32 %v2730, %v2793
        %v2816 = vmul.f32 %v2735, %v2793
        %v2817 = vmul.f32 %v2740, %v2793
        %v2818 = vmul.f32 %v2745, %v2793
        %v2819 = vmul.f32 %v2750, %v2793
        %v2820 = vmul.f32 %v2755, %v2793
        %v2821 = vmul.f32 %v2760, %v2793
        %v2822 = vmul.f32 %v2765, %v2793
        %v2823 = vmul.f32 %v2770, %v2793
        %v2824 = vmul.f32 %v2775, %v2793
        %v2825 = vmul.f32 %v2780, %v2793
        %v2826 = vmul.f32 %v2785, %v2793
        %v2827 = vld [vmem:[%s9] sm:$0x1]
        %v2829 = vlaneseq
        %v2830 = vshrl.u32 %v2829, 7
        %v2831 = vsub.s32 0, %v2830
        %v2832 = vrot.slane %v2827, %v2831
        %v2834 = vadd.f32 %v2795, %v2832
        %v2835 = vadd.f32 %v2796, %v2832
        %v2836 = vadd.f32 %v2797, %v2832
        %v2837 = vadd.f32 %v2798, %v2832
        %v2838 = vadd.f32 %v2799, %v2832
        %v2839 = vadd.f32 %v2800, %v2832
        %v2840 = vadd.f32 %v2801, %v2832
        %v2841 = vadd.f32 %v2802, %v2832
        %v2842 = vadd.f32 %v2803, %v2832
        %v2843 = vadd.f32 %v2804, %v2832
        %v2844 = vadd.f32 %v2805, %v2832
        %v2845 = vadd.f32 %v2806, %v2832
        %v2846 = vadd.f32 %v2807, %v2832
        %v2847 = vadd.f32 %v2808, %v2832
        %v2848 = vadd.f32 %v2809, %v2832
        %v2849 = vadd.f32 %v2810, %v2832
        %v2850 = vadd.f32 %v2811, %v2832
        %v2851 = vadd.f32 %v2812, %v2832
        %v2852 = vadd.f32 %v2813, %v2832
        %v2853 = vadd.f32 %v2814, %v2832
        %v2854 = vadd.f32 %v2815, %v2832
        %v2855 = vadd.f32 %v2816, %v2832
        %v2856 = vadd.f32 %v2817, %v2832
        %v2857 = vadd.f32 %v2818, %v2832
        %v2858 = vadd.f32 %v2819, %v2832
        %v2859 = vadd.f32 %v2820, %v2832
        %v2860 = vadd.f32 %v2821, %v2832
        %v2861 = vadd.f32 %v2822, %v2832
        %v2862 = vadd.f32 %v2823, %v2832
        %v2863 = vadd.f32 %v2824, %v2832
        %v2864 = vadd.f32 %v2825, %v2832
        %v2865 = vadd.f32 %v2826, %v2832
        %v2866 = vadd.f32 %v2834, %v422
        %v2867 = vadd.f32 %v2835, %v423
        %v2868 = vadd.f32 %v2836, %v424
        %v2869 = vadd.f32 %v2837, %v425
        %v2870 = vadd.f32 %v2838, %v426
        %v2871 = vadd.f32 %v2839, %v427
        %v2872 = vadd.f32 %v2840, %v428
        %v2873 = vadd.f32 %v2841, %v429
        %v2874 = vadd.f32 %v2842, %v430
        %v2875 = vadd.f32 %v2843, %v431
        %v2876 = vadd.f32 %v2844, %v432
        %v2877 = vadd.f32 %v2845, %v433
        %v2878 = vadd.f32 %v2846, %v434
        %v2879 = vadd.f32 %v2847, %v435
        %v2880 = vadd.f32 %v2848, %v436
        %v2881 = vadd.f32 %v2849, %v437
        %v2882 = vadd.f32 %v2850, %v438
        %v2883 = vadd.f32 %v2851, %v439
        %v2884 = vadd.f32 %v2852, %v440
        %v2885 = vadd.f32 %v2853, %v441
        %v2886 = vadd.f32 %v2854, %v442
        %v2887 = vadd.f32 %v2855, %v443
        %v2888 = vadd.f32 %v2856, %v444
        %v2889 = vadd.f32 %v2857, %v445
        %v2890 = vadd.f32 %v2858, %v446
        %v2891 = vadd.f32 %v2859, %v447
        %v2892 = vadd.f32 %v2860, %v448
        %v2893 = vadd.f32 %v2861, %v449
        %v2894 = vadd.f32 %v2862, %v450
        %v2895 = vadd.f32 %v2863, %v451
        %v2896 = vadd.f32 %v2864, %v452
        %v2897 = vadd.f32 %v2865, %v453
        %v2898 = vmax.f32 %v2866, 0.0
        %v2899 = vmax.f32 %v2867, 0.0
        %v2900 = vmax.f32 %v2868, 0.0
        %v2901 = vmax.f32 %v2869, 0.0
        %v2902 = vmax.f32 %v2870, 0.0
        %v2903 = vmax.f32 %v2871, 0.0
        %v2904 = vmax.f32 %v2872, 0.0
        %v2905 = vmax.f32 %v2873, 0.0
        %v2906 = vmax.f32 %v2874, 0.0
        %v2907 = vmax.f32 %v2875, 0.0
        %v2908 = vmax.f32 %v2876, 0.0
        %v2909 = vmax.f32 %v2877, 0.0
        %v2910 = vmax.f32 %v2878, 0.0
        %v2911 = vmax.f32 %v2879, 0.0
        %v2912 = vmax.f32 %v2880, 0.0
        %v2913 = vmax.f32 %v2881, 0.0
        %v2914 = vmax.f32 %v2882, 0.0
        %v2915 = vmax.f32 %v2883, 0.0
        %v2916 = vmax.f32 %v2884, 0.0
        %v2917 = vmax.f32 %v2885, 0.0
        %v2918 = vmax.f32 %v2886, 0.0
        %v2919 = vmax.f32 %v2887, 0.0
        %v2920 = vmax.f32 %v2888, 0.0
        %v2921 = vmax.f32 %v2889, 0.0
        %v2922 = vmax.f32 %v2890, 0.0
        %v2923 = vmax.f32 %v2891, 0.0
        %v2924 = vmax.f32 %v2892, 0.0
        %v2925 = vmax.f32 %v2893, 0.0
        %v2926 = vmax.f32 %v2894, 0.0
        %v2927 = vmax.f32 %v2895, 0.0
        %v2928 = vmax.f32 %v2896, 0.0
        %v2929 = vmax.f32 %v2897, 0.0
        %2930 = vst [vmem:[%s421] sm:$0xff] %v2898
        %2931 = vst [vmem:[%s421 + $0x8] sm:$0xff] %v2899
        %2932 = vst [vmem:[%s421 + $0x10] sm:$0xff] %v2900
        %2933 = vst [vmem:[%s421 + $0x18] sm:$0xff] %v2901
        %2934 = vst [vmem:[%s421 + $0x20] sm:$0xff] %v2902
        %2935 = vst [vmem:[%s421 + $0x28] sm:$0xff] %v2903
        %2936 = vst [vmem:[%s421 + $0x30] sm:$0xff] %v2904
        %2937 = vst [vmem:[%s421 + $0x38] sm:$0xff] %v2905
        %2938 = vst [vmem:[%s421 + $0x40] sm:$0xff] %v2906
        %2939 = vst [vmem:[%s421 + $0x48] sm:$0xff] %v2907
        %2940 = vst [vmem:[%s421 + $0x50] sm:$0xff] %v2908
        %2941 = vst [vmem:[%s421 + $0x58] sm:$0xff] %v2909
        %2942 = vst [vmem:[%s421 + $0x60] sm:$0xff] %v2910
        %2943 = vst [vmem:[%s421 + $0x68] sm:$0xff] %v2911
        %2944 = vst [vmem:[%s421 + $0x70] sm:$0xff] %v2912
        %2945 = vst [vmem:[%s421 + $0x78] sm:$0xff] %v2913
        %2946 = vst [vmem:[%s421 + $0x80] sm:$0xff] %v2914
        %2947 = vst [vmem:[%s421 + $0x88] sm:$0xff] %v2915
        %2948 = vst [vmem:[%s421 + $0x90] sm:$0xff] %v2916
        %2949 = vst [vmem:[%s421 + $0x98] sm:$0xff] %v2917
        %2950 = vst [vmem:[%s421 + $0xa0] sm:$0xff] %v2918
        %2951 = vst [vmem:[%s421 + $0xa8] sm:$0xff] %v2919
        %2952 = vst [vmem:[%s421 + $0xb0] sm:$0xff] %v2920
        %2953 = vst [vmem:[%s421 + $0xb8] sm:$0xff] %v2921
        %2954 = vst [vmem:[%s421 + $0xc0] sm:$0xff] %v2922
        %2955 = vst [vmem:[%s421 + $0xc8] sm:$0xff] %v2923
        %2956 = vst [vmem:[%s421 + $0xd0] sm:$0xff] %v2924
        %2957 = vst [vmem:[%s421 + $0xd8] sm:$0xff] %v2925
        %2958 = vst [vmem:[%s421 + $0xe0] sm:$0xff] %v2926
        %2959 = vst [vmem:[%s421 + $0xe8] sm:$0xff] %v2927
        %2960 = vst [vmem:[%s421 + $0xf0] sm:$0xff] %v2928
        %2961 = vst [vmem:[%s421 + $0xf8] sm:$0xff] %v2929
        %s2962 = sand.u32 %s252, 1
        %s2963 = scalar_lea.sflag [#allocation5], %s2962
        %s2964 = sand.u32 %s252, 1
        %s2965 = smul.addr %s2964, 256
        %s2966 = scalar_lea.vmem [#allocation11], %s2965
        // Predicated region
        $region77: #{tpu_custom_call.1} parent=59 // pred_check
          %p2967 = pneg %p262
        $region78: #{tpu_custom_call.1} parent=59 // pred_check_branch
          %2969 = sbr.rel (%p2967) target = $region80
        $region79: #{tpu_custom_call.1} parent=59 // pred_region
          %s2971 = ssub.s32 4096, 4096
          %2972 = vsyncadd %s2963, %s2971
          %s2973 = smul.addr %s29, 32
          %s2974 = smul.addr %s2973, 128
          %s2975 = scalar_lea.hbm %s10, %s2974
          %s2976 = sshll.u32 %s2966, 4
          %s2977 = int_to_ptr.vmem [resolvable:$true] %s2976
          %2982 = dma.vmem_to_hbm [thread:$0]  %s2977, 4096, %s2975, %s2963, 128, 128, 8
        $region80: #{tpu_custom_call.1} parent=59 // pred_fallthru
          _
      $region60: #{tpu_custom_call.1} parent=5 // pred_fallthru
        _
      %p2983 = scmp.le.s32.totalorder 2, %s24
      // Predicated region
      $region81: #{tpu_custom_call.1} parent=5 // pred_check
        %p2984 = pneg %p2983
      $region82: #{tpu_custom_call.1} parent=5 // pred_check_branch
        %2986 = sbr.rel (%p2984) target = $region84
      $region83: #{tpu_custom_call.1} parent=5 // pred_region
        %s2987 = ssub.s32 %s24, 2
        // Predicated region
        $region85: #{tpu_custom_call.1} parent=83 // pred_check
          %p2988 = pneg %p268
        $region86: #{tpu_custom_call.1} parent=83 // pred_check_branch
          %2990 = sbr.rel (%p2988) target = $region88
        $region87: #{tpu_custom_call.1} parent=83 // pred_region
          %s2991 = sand.u32 %s253, 1
          %s2992 = scalar_lea.sflag [#allocation5], %s2991
          %s2993 = sand.u32 %s253, 1
          %s2994 = smul.addr %s2993, 256
          %s2995 = scalar_lea.vmem [#allocation11], %s2994
          %2996 = dma.done %s2992, 4096
        $region88: #{tpu_custom_call.1} parent=83 // pred_fallthru
          _
      $region84: #{tpu_custom_call.1} parent=5 // pred_fallthru
        _
    $region6: #{tpu_custom_call.1} parent=1 // loop_footer
      %s28 = sadd.s32 1, %s24
    $region7: #{tpu_custom_call.1} parent=1 // loop_footer_branch
      %23 = sbr.rel target = $region3
    $region8: #{tpu_custom_call.1} parent=1 // loop_exit
      _
    %2997 = vsyncpa [#allocation4], 1
    %s2998 = scalar_lea.sflag [#allocation4], 1
    %2999 = vsyncpa %s2998, 1
    %3000 = vsyncpa [#allocation7], 1
    %3001 = vsyncpa [#allocation10], 1
    %3002 = vsyncpa [#allocation5], 1
    %s3003 = scalar_lea.sflag [#allocation5], 1
    %3004 = vsyncpa %s3003, 1

</llo_original>
